<compile_context>
chip_gen: v6e
topology: v6e:2x2x1
jax: 0.10.0
libtpu: 0.0.40
codegen_flags: <defaults>
</compile_context>

<pallas_src>
import functools

import jax
import jax.numpy as jnp
import numpy as np
from jax.experimental import pallas as pl
from jax.experimental.pallas import tpu as pltpu

BN_EPS = 1e-5
LANE = 128                     # channel dims padded to the lane width
SUBLANE = 8                    # padded image width rounded to this
MATMUL_DTYPE = jnp.bfloat16    # MXU input / inter-pass activation dtype


def _round_up(x, m):
    return (x + m - 1) // m * m


def _vmem_limit_bytes():
    # v5e/v6e: 128 MiB physical -> 96 MiB scoped; v7x: 64 MiB -> 48 MiB.
    cap = 64 * 1024 * 1024
    try:
        cap = int(pltpu.get_tpu_info().vmem_capacity_bytes)
    except Exception:
        pass
    return int(min(96 * 1024 * 1024, cap * 3 // 4))


VMEM_LIMIT = _vmem_limit_bytes()


# ----------------------------------------------------------------------------
# Pass 1: 3x3 conv (stride 1) + per-image BN statistics, grid over the batch.
# ----------------------------------------------------------------------------
def _conv3x3_kernel(x_ref, w_ref, y_ref, ssum_ref, ssq_ref, *, H, W, Wp):
    """One padded image tile -> conv output (bf16) + per-image sum / sum-of-squares.

    x_ref   : (1, H+2, Wp, Cp) bf16  image at [1:H+1, 1:W+1], zero halo elsewhere
    w_ref   : (9, Cp, Co)      bf16  per-tap weights, tap index t = 3*dy + dx
    y_ref   : (1, H, Wp, Co)   bf16  conv output, image columns at 1..W, pads zeroed
    ssum_ref: (1, 1, Co)       f32   per-image sum over the H*W valid pixels
    ssq_ref : (1, 1, Co)       f32   per-image sum of squares over valid pixels
    """
    cp = x_ref.shape[-1]
    co = y_ref.shape[-1]
    rows = H * Wp

    acc = None
    for dx in range(3):
        part = None
        for dy in range(3):
            t = 3 * dy + dx
            # dy slice is on a non-(sublane/lane) axis and Wp%8==0, Cp%128==0,
            # so the load + reshape are relayout-free; lane-dense K=Cp matmul.
            xt = x_ref[0, dy:dy + H, :, :].reshape(rows, cp)
            c = jnp.dot(xt, w_ref[t], preferred_element_type=jnp.float32)
            part = c if part is None else part + c
        # Shifted accumulation: realise the dx column shift with one XLU sublane
        # roll of the f32 partial sum.  Wrap-around only lands in pad columns,
        # which are masked below.
        shift = (1 - dx) % rows
        if shift:
            part = pltpu.roll(part, shift=shift, axis=0)
        acc = part if acc is None else acc + part

    # Valid output columns are 1..W inside each Wp-row (pad columns hold roll
    # wrap garbage); mask them out of both the stats and the stored output.
    col = jax.lax.broadcasted_iota(jnp.int32, (H, Wp, co), 1).reshape(rows, co)
    valid = jnp.logical_and(col >= 1, col <= W)
    acc = jnp.where(valid, acc, 0.0)

    ssum_ref[0] = jnp.sum(acc, axis=0, keepdims=True)
    ssq_ref[0] = jnp.sum(acc * acc, axis=0, keepdims=True)
    y_ref[0] = acc.reshape(H, Wp, co).astype(y_ref.dtype)


def _conv3x3_with_stats(xp, w_taps, H, W):
    """xp: (N, H+2, Wp, Cp) bf16 padded images; w_taps: (9, Cp, Co) bf16."""
    N, Hp2, Wp, Cp = xp.shape
    Co = w_taps.shape[-1]
    kernel = functools.partial(_conv3x3_kernel, H=H, W=W, Wp=Wp)
    bytes_accessed = (xp.size * 2 + w_taps.size * 2
                      + N * H * Wp * Co * 2 + 2 * N * Co * 4)
    return pl.pallas_call(
        kernel,
        out_shape=(jax.ShapeDtypeStruct((N, H, Wp, Co), MATMUL_DTYPE),
                   jax.ShapeDtypeStruct((N, 1, Co), jnp.float32),
                   jax.ShapeDtypeStruct((N, 1, Co), jnp.float32)),
        grid=(N,),
        in_specs=[pl.BlockSpec((1, Hp2, Wp, Cp), lambda n: (n, 0, 0, 0)),
                  pl.BlockSpec((9, Cp, Co), lambda n: (0, 0, 0))],
        out_specs=(pl.BlockSpec((1, H, Wp, Co), lambda n: (n, 0, 0, 0)),
                   pl.BlockSpec((1, 1, Co), lambda n: (n, 0, 0)),
                   pl.BlockSpec((1, 1, Co), lambda n: (n, 0, 0))),
        compiler_params=pltpu.CompilerParams(
            dimension_semantics=("parallel",),      # images independent
            vmem_limit_bytes=VMEM_LIMIT),
        cost_estimate=pl.CostEstimate(
            flops=2 * N * H * Wp * 9 * Cp * Co,
            transcendentals=0,
            bytes_accessed=int(bytes_accessed)),
    )(xp, w_taps)


# ----------------------------------------------------------------------------
# Pass 2a: BN + ReLU, emitted directly as conv2's zero-haloed bf16 padded input.
# ----------------------------------------------------------------------------
def _bn_relu_pad_kernel(y_ref, scale_ref, shift_ref, out_ref, *, H, W, Wp):
    co = y_ref.shape[-1]
    rows = H * Wp
    y = y_ref[0].reshape(rows, co).astype(jnp.float32)
    v = jnp.maximum(y * scale_ref[...] + shift_ref[...], 0.0)
    # Zero the halo columns so the result is a valid padded conv2 input.
    col = jax.lax.broadcasted_iota(jnp.int32, (H, Wp, co), 1).reshape(rows, co)
    v = jnp.where(jnp.logical_and(col >= 1, col <= W), v, 0.0)
    z = jnp.zeros((Wp, co), jnp.float32)
    full = jnp.concatenate([z, v, z], axis=0).astype(out_ref.dtype)
    out_ref[0] = full.reshape(H + 2, Wp, co)


def _bn_relu_pad(y, scale, shift, H, W):
    N, _, Wp, Co = y.shape
    kernel = functools.partial(_bn_relu_pad_kernel, H=H, W=W, Wp=Wp)
    bytes_accessed = y.size * 2 + N * (H + 2) * Wp * Co * 2 + 2 * Co * 4
    return pl.pallas_call(
        kernel,
        out_shape=jax.ShapeDtypeStruct((N, H + 2, Wp, Co), MATMUL_DTYPE),
        grid=(N,),
        in_specs=[pl.BlockSpec((1, H, Wp, Co), lambda n: (n, 0, 0, 0)),
                  pl.BlockSpec((1, Co), lambda n: (0, 0)),
                  pl.BlockSpec((1, Co), lambda n: (0, 0))],
        out_specs=pl.BlockSpec((1, H + 2, Wp, Co), lambda n: (n, 0, 0, 0)),
        compiler_params=pltpu.CompilerParams(
            dimension_semantics=("parallel",),
            vmem_limit_bytes=VMEM_LIMIT),
        cost_estimate=pl.CostEstimate(
            flops=4 * N * H * Wp * Co, transcendentals=0,
            bytes_accessed=int(bytes_accessed)),
    )(y, scale, shift)


# ----------------------------------------------------------------------------
# Pass 2b: BN + residual + ReLU -> final block output (f32).
# ----------------------------------------------------------------------------
def _bn_res_relu_kernel(y_ref, scale_ref, shift_ref, res_ref, out_ref, *, H, Wp):
    co = y_ref.shape[-1]
    rows = H * Wp
    y = y_ref[0].reshape(rows, co).astype(jnp.float32)
    r = res_ref[0, 1:H + 1, :, :].reshape(rows, co).astype(jnp.float32)
    v = jnp.maximum(y * scale_ref[...] + shift_ref[...] + r, 0.0)
    out_ref[0] = v.reshape(H, Wp, co)


def _bn_res_relu(y, scale, shift, residual_padded, H):
    N, _, Wp, Co = y.shape
    Cp = residual_padded.shape[-1]
    kernel = functools.partial(_bn_res_relu_kernel, H=H, Wp=Wp)
    bytes_accessed = (y.size * 2 + residual_padded.size * 2
                      + N * H * Wp * Co * 4 + 2 * Co * 4)
    return pl.pallas_call(
        kernel,
        out_shape=jax.ShapeDtypeStruct((N, H, Wp, Co), jnp.float32),
        grid=(N,),
        in_specs=[pl.BlockSpec((1, H, Wp, Co), lambda n: (n, 0, 0, 0)),
                  pl.BlockSpec((1, Co), lambda n: (0, 0)),
                  pl.BlockSpec((1, Co), lambda n: (0, 0)),
                  pl.BlockSpec((1, H + 2, Wp, Cp), lambda n: (n, 0, 0, 0))],
        out_specs=pl.BlockSpec((1, H, Wp, Co), lambda n: (n, 0, 0, 0)),
        compiler_params=pltpu.CompilerParams(
            dimension_semantics=("parallel",),
            vmem_limit_bytes=VMEM_LIMIT),
        cost_estimate=pl.CostEstimate(
            flops=5 * N * H * Wp * Co, transcendentals=0,
            bytes_accessed=int(bytes_accessed)),
    )(y, scale, shift, residual_padded)


def _bn_fold(ssum, ssq, gamma, beta, m_total):
    """Fold batch stats + affine params into per-channel f32 scale/shift (O(C))."""
    # TODO(synk): E[x^2]-E[x]^2 in f32 can cancel for very large N*H*W; switch to
    # shifted/Welford sums before scaling to big batches.
    mean = ssum.sum(axis=0) / m_total                                  # (1, Co)
    var = jnp.maximum(ssq.sum(axis=0) / m_total - mean * mean, 0.0)    # biased var
    scale = gamma * jax.lax.rsqrt(var + BN_EPS)
    shift = beta - mean * scale
    return scale, shift


# ----------------------------------------------------------------------------
# Wrapper (NCHW in / NCHW out), parameters, reference.
# ----------------------------------------------------------------------------
def basic_block_forward(x_nchw, params):
    """BasicBlock forward (stride=1, downsample=None). NCHW in, NCHW out."""
    x = jnp.transpose(x_nchw, (0, 2, 3, 1)).astype(jnp.float32)        # NHWC
    N, H, W, C = x.shape
    planes = params["w1_pt"].shape[0]
    Cp = _round_up(C, LANE)
    Co = params["w1"].shape[-1]
    # TODO(synk): stride > 1 / downsample path not implemented (module default is None).
    assert planes == C and Co == Cp, "default BasicBlock => inplanes == planes"
    Wp = _round_up(W + 2, SUBLANE)
    M = N * H * W

    # Single pad + bf16 cast; this buffer is also reused as the residual in pass 2b.
    xp1 = jnp.pad(x, ((0, 0), (1, 1), (1, Wp - W - 1), (0, Cp - C))).astype(MATMUL_DTYPE)

    # conv1 -> bn1 -> relu  (pass 2 writes conv2's padded bf16 input directly)
    y1c, s1, q1 = _conv3x3_with_stats(xp1, params["w1"], H, W)
    scale1, shift1 = _bn_fold(s1, q1, params["g1"], params["b1"], M)
    xp2 = _bn_relu_pad(y1c, scale1, shift1, H, W)

    # conv2 -> bn2 -> (+residual) -> relu
    y2c, s2, q2 = _conv3x3_with_stats(xp2, params["w2"], H, W)
    scale2, shift2 = _bn_fold(s2, q2, params["g2"], params["b2"], M)
    out = _bn_res_relu(y2c, scale2, shift2, xp1, H)                    # (N, H, Wp, Co) f32

    out = out[:, :, 1:W + 1, :planes]                                  # (N, H, W, C)
    return jnp.transpose(out, (0, 3, 1, 2))                            # back to NCHW


def init_params(key, inplanes, planes):
    """Deterministic init. Conv weights kept in PyTorch [O, I, 3, 3] for the reference."""
    k1, k2 = jax.random.split(key)
    w1_pt = jax.random.normal(k1, (planes, inplanes, 3, 3), jnp.float32) \
        * (1.0 / np.sqrt(inplanes * 9))
    w2_pt = jax.random.normal(k2, (planes, planes, 3, 3), jnp.float32) \
        * (1.0 / np.sqrt(planes * 9))

    def to_taps(w_pt):
        # [O, I, kh, kw] -> [kh*kw, I, O], zero-padded to lane-dense [9, Cp, Co], bf16
        o, i = w_pt.shape[0], w_pt.shape[1]
        taps = jnp.transpose(w_pt, (2, 3, 1, 0)).reshape(9, i, o)
        taps = jnp.pad(taps, ((0, 0),
                              (0, _round_up(i, LANE) - i),
                              (0, _round_up(o, LANE) - o)))
        return taps.astype(MATMUL_DTYPE)

    def affine(value, n):
        v = jnp.full((1, n), value, jnp.float32)
        return jnp.pad(v, ((0, 0), (0, _round_up(n, LANE) - n)))   # pad channels with 0

    return dict(
        w1=to_taps(w1_pt), w2=to_taps(w2_pt),
        g1=affine(1.0, planes), b1=affine(0.0, planes),
        g2=affine(1.0, planes), b2=affine(0.0, planes),
        w1_pt=w1_pt, w2_pt=w2_pt,
    )


def _ref_forward(x_nchw, params):
    """Pure-JAX f32 reference matching PyTorch BasicBlock.forward (training-mode BN)."""
    def conv(x, w_pt):
        return jax.lax.conv_general_dilated(
            x, w_pt, window_strides=(1, 1), padding=((1, 1), (1, 1)),
            dimension_numbers=("NCHW", "OIHW", "NCHW"),
            precision=jax.lax.Precision.HIGHEST)

    def bn(x, g, b):
        mean = x.mean(axis=(0, 2, 3), keepdims=True)
        var = ((x - mean) ** 2).mean(axis=(0, 2, 3), keepdims=True)
        g = g[:, :x.shape[1]].reshape(1, -1, 1, 1)
        b = b[:, :x.shape[1]].reshape(1, -1, 1, 1)
        return (x - mean) * jax.lax.rsqrt(var + BN_EPS) * g + b

    out = jax.nn.relu(bn(conv(x_nchw, params["w1_pt"]), params["g1"], params["b1"]))
    out = bn(conv(out, params["w2_pt"]), params["g2"], params["b2"])
    return jax.nn.relu(out + x_nchw)


if __name__ == "__main__":
    key = jax.random.PRNGKey(0)
    kx, kp = jax.random.split(key)

    N, C, H, W = 2, 4, 16, 16            # inplanes == planes == 4, stride = 1
    x = jax.random.normal(kx, (N, C, H, W), jnp.float32)
    params = init_params(kp, C, C)

    out = jax.jit(basic_block_forward)(x, params)
    out = jax.block_until_ready(out)

    ref = _ref_forward(x, params)
    # bf16 MXU inputs + bf16 inter-pass activations/residual vs. an all-f32
    # reference: documented tolerance (error grows with channel count).
    np.testing.assert_allclose(np.asarray(out), np.asarray(ref), rtol=3e-2, atol=3e-2)
    print("KERNEL_OK")
</pallas_src>

<mosaic_0001>
module attributes {stable_mosaic.version = 11 : i64} {
  func.func @_conv3x3_kernel(%arg0: i32, %arg1: memref<1x18x24x128xbf16, #tpu.memory_space<vmem>>, %arg2: memref<9x128x128xbf16, #tpu.memory_space<vmem>>, %arg3: memref<1x16x24x128xbf16, #tpu.memory_space<vmem>>, %arg4: memref<1x1x128xf32, #tpu.memory_space<vmem>>, %arg5: memref<1x1x128xf32, #tpu.memory_space<vmem>>) attributes {dimension_semantics = [#tpu.dimension_semantics<parallel>], iteration_bounds = array<i64: 2>, scalar_prefetch = 0 : i64, scratch_operands = 0 : i64, tpu.core_type = #tpu.core_type<tc>, window_params = [{transform_indices = @transform_0, window_bounds = array<i64: 1, 18, 24, 128>}, {pipeline_mode = #tpu.pipeline_mode<synchronous>, transform_indices = @transform_1, window_bounds = array<i64: 9, 128, 128>}, {transform_indices = @transform_2, window_bounds = array<i64: 1, 16, 24, 128>}, {transform_indices = @transform_3, window_bounds = array<i64: 1, 1, 128>}, {transform_indices = @transform_4, window_bounds = array<i64: 1, 1, 128>}]} {
    %c0 = arith.constant 0 : index
    %c0_0 = arith.constant 0 : index
    %c0_1 = arith.constant 0 : index
    %c0_2 = arith.constant 0 : index
    %0 = vector.load %arg1[%c0, %c0_0, %c0_1, %c0_2] : memref<1x18x24x128xbf16, #tpu.memory_space<vmem>>, vector<1x16x24x128xbf16>
    %1 = vector.shape_cast %0 : vector<1x16x24x128xbf16> to vector<16x24x128xbf16>
    %2 = vector.shape_cast %1 : vector<16x24x128xbf16> to vector<384x128xbf16>
    %c0_3 = arith.constant 0 : index
    %c0_4 = arith.constant 0 : index
    %c0_5 = arith.constant 0 : index
    %3 = vector.load %arg2[%c0_3, %c0_4, %c0_5] : memref<9x128x128xbf16, #tpu.memory_space<vmem>>, vector<1x128x128xbf16>
    %4 = vector.shape_cast %3 : vector<1x128x128xbf16> to vector<128x128xbf16>
    %cst = arith.constant dense<0.000000e+00> : vector<384x128xf32>
    %5 = tpu.matmul %2, %4, %cst {dimension_numbers = #tpu.dot_dimension_numbers<[1], [0], [0], [1], [0, 0, 1, 1], [], []>} : vector<384x128xbf16>, vector<128x128xbf16>, vector<384x128xf32> -> vector<384x128xf32>
    %c0_6 = arith.constant 0 : index
    %c1 = arith.constant 1 : index
    %c0_7 = arith.constant 0 : index
    %c0_8 = arith.constant 0 : index
    %6 = vector.load %arg1[%c0_6, %c1, %c0_7, %c0_8] : memref<1x18x24x128xbf16, #tpu.memory_space<vmem>>, vector<1x16x24x128xbf16>
    %7 = vector.shape_cast %6 : vector<1x16x24x128xbf16> to vector<16x24x128xbf16>
    %8 = vector.shape_cast %7 : vector<16x24x128xbf16> to vector<384x128xbf16>
    %c3 = arith.constant 3 : index
    %c0_9 = arith.constant 0 : index
    %c0_10 = arith.constant 0 : index
    %9 = vector.load %arg2[%c3, %c0_9, %c0_10] : memref<9x128x128xbf16, #tpu.memory_space<vmem>>, vector<1x128x128xbf16>
    %10 = vector.shape_cast %9 : vector<1x128x128xbf16> to vector<128x128xbf16>
    %cst_11 = arith.constant dense<0.000000e+00> : vector<384x128xf32>
    %11 = tpu.matmul %8, %10, %cst_11 {dimension_numbers = #tpu.dot_dimension_numbers<[1], [0], [0], [1], [0, 0, 1, 1], [], []>} : vector<384x128xbf16>, vector<128x128xbf16>, vector<384x128xf32> -> vector<384x128xf32>
    %12 = arith.addf %5, %11 : vector<384x128xf32>
    %c0_12 = arith.constant 0 : index
    %c2 = arith.constant 2 : index
    %c0_13 = arith.constant 0 : index
    %c0_14 = arith.constant 0 : index
    %13 = vector.load %arg1[%c0_12, %c2, %c0_13, %c0_14] : memref<1x18x24x128xbf16, #tpu.memory_space<vmem>>, vector<1x16x24x128xbf16>
    %14 = vector.shape_cast %13 : vector<1x16x24x128xbf16> to vector<16x24x128xbf16>
    %15 = vector.shape_cast %14 : vector<16x24x128xbf16> to vector<384x128xbf16>
    %c6 = arith.constant 6 : index
    %c0_15 = arith.constant 0 : index
    %c0_16 = arith.constant 0 : index
    %16 = vector.load %arg2[%c6, %c0_15, %c0_16] : memref<9x128x128xbf16, #tpu.memory_space<vmem>>, vector<1x128x128xbf16>
    %17 = vector.shape_cast %16 : vector<1x128x128xbf16> to vector<128x128xbf16>
    %cst_17 = arith.constant dense<0.000000e+00> : vector<384x128xf32>
    %18 = tpu.matmul %15, %17, %cst_17 {dimension_numbers = #tpu.dot_dimension_numbers<[1], [0], [0], [1], [0, 0, 1, 1], [], []>} : vector<384x128xbf16>, vector<128x128xbf16>, vector<384x128xf32> -> vector<384x128xf32>
    %19 = arith.addf %12, %18 : vector<384x128xf32>
    %c1_i32 = arith.constant 1 : i32
    %20 = tpu.dynamic_rotate %19 by %c1_i32 dim 0 : vector<384x128xf32>, i32 -> vector<384x128xf32>
    %c0_18 = arith.constant 0 : index
    %c0_19 = arith.constant 0 : index
    %c0_20 = arith.constant 0 : index
    %c0_21 = arith.constant 0 : index
    %21 = vector.load %arg1[%c0_18, %c0_19, %c0_20, %c0_21] : memref<1x18x24x128xbf16, #tpu.memory_space<vmem>>, vector<1x16x24x128xbf16>
    %22 = vector.shape_cast %21 : vector<1x16x24x128xbf16> to vector<16x24x128xbf16>
    %23 = vector.shape_cast %22 : vector<16x24x128xbf16> to vector<384x128xbf16>
    %c1_22 = arith.constant 1 : index
    %c0_23 = arith.constant 0 : index
    %c0_24 = arith.constant 0 : index
    %24 = vector.load %arg2[%c1_22, %c0_23, %c0_24] : memref<9x128x128xbf16, #tpu.memory_space<vmem>>, vector<1x128x128xbf16>
    %25 = vector.shape_cast %24 : vector<1x128x128xbf16> to vector<128x128xbf16>
    %cst_25 = arith.constant dense<0.000000e+00> : vector<384x128xf32>
    %26 = tpu.matmul %23, %25, %cst_25 {dimension_numbers = #tpu.dot_dimension_numbers<[1], [0], [0], [1], [0, 0, 1, 1], [], []>} : vector<384x128xbf16>, vector<128x128xbf16>, vector<384x128xf32> -> vector<384x128xf32>
    %c0_26 = arith.constant 0 : index
    %c1_27 = arith.constant 1 : index
    %c0_28 = arith.constant 0 : index
    %c0_29 = arith.constant 0 : index
    %27 = vector.load %arg1[%c0_26, %c1_27, %c0_28, %c0_29] : memref<1x18x24x128xbf16, #tpu.memory_space<vmem>>, vector<1x16x24x128xbf16>
    %28 = vector.shape_cast %27 : vector<1x16x24x128xbf16> to vector<16x24x128xbf16>
    %29 = vector.shape_cast %28 : vector<16x24x128xbf16> to vector<384x128xbf16>
    %c4 = arith.constant 4 : index
    %c0_30 = arith.constant 0 : index
    %c0_31 = arith.constant 0 : index
    %30 = vector.load %arg2[%c4, %c0_30, %c0_31] : memref<9x128x128xbf16, #tpu.memory_space<vmem>>, vector<1x128x128xbf16>
    %31 = vector.shape_cast %30 : vector<1x128x128xbf16> to vector<128x128xbf16>
    %cst_32 = arith.constant dense<0.000000e+00> : vector<384x128xf32>
    %32 = tpu.matmul %29, %31, %cst_32 {dimension_numbers = #tpu.dot_dimension_numbers<[1], [0], [0], [1], [0, 0, 1, 1], [], []>} : vector<384x128xbf16>, vector<128x128xbf16>, vector<384x128xf32> -> vector<384x128xf32>
    %33 = arith.addf %26, %32 : vector<384x128xf32>
    %c0_33 = arith.constant 0 : index
    %c2_34 = arith.constant 2 : index
    %c0_35 = arith.constant 0 : index
    %c0_36 = arith.constant 0 : index
    %34 = vector.load %arg1[%c0_33, %c2_34, %c0_35, %c0_36] : memref<1x18x24x128xbf16, #tpu.memory_space<vmem>>, vector<1x16x24x128xbf16>
    %35 = vector.shape_cast %34 : vector<1x16x24x128xbf16> to vector<16x24x128xbf16>
    %36 = vector.shape_cast %35 : vector<16x24x128xbf16> to vector<384x128xbf16>
    %c7 = arith.constant 7 : index
    %c0_37 = arith.constant 0 : index
    %c0_38 = arith.constant 0 : index
    %37 = vector.load %arg2[%c7, %c0_37, %c0_38] : memref<9x128x128xbf16, #tpu.memory_space<vmem>>, vector<1x128x128xbf16>
    %38 = vector.shape_cast %37 : vector<1x128x128xbf16> to vector<128x128xbf16>
    %cst_39 = arith.constant dense<0.000000e+00> : vector<384x128xf32>
    %39 = tpu.matmul %36, %38, %cst_39 {dimension_numbers = #tpu.dot_dimension_numbers<[1], [0], [0], [1], [0, 0, 1, 1], [], []>} : vector<384x128xbf16>, vector<128x128xbf16>, vector<384x128xf32> -> vector<384x128xf32>
    %40 = arith.addf %33, %39 : vector<384x128xf32>
    %41 = arith.addf %20, %40 : vector<384x128xf32>
    %c0_40 = arith.constant 0 : index
    %c0_41 = arith.constant 0 : index
    %c0_42 = arith.constant 0 : index
    %c0_43 = arith.constant 0 : index
    %42 = vector.load %arg1[%c0_40, %c0_41, %c0_42, %c0_43] : memref<1x18x24x128xbf16, #tpu.memory_space<vmem>>, vector<1x16x24x128xbf16>
    %43 = vector.shape_cast %42 : vector<1x16x24x128xbf16> to vector<16x24x128xbf16>
    %44 = vector.shape_cast %43 : vector<16x24x128xbf16> to vector<384x128xbf16>
    %c2_44 = arith.constant 2 : index
    %c0_45 = arith.constant 0 : index
    %c0_46 = arith.constant 0 : index
    %45 = vector.load %arg2[%c2_44, %c0_45, %c0_46] : memref<9x128x128xbf16, #tpu.memory_space<vmem>>, vector<1x128x128xbf16>
    %46 = vector.shape_cast %45 : vector<1x128x128xbf16> to vector<128x128xbf16>
    %cst_47 = arith.constant dense<0.000000e+00> : vector<384x128xf32>
    %47 = tpu.matmul %44, %46, %cst_47 {dimension_numbers = #tpu.dot_dimension_numbers<[1], [0], [0], [1], [0, 0, 1, 1], [], []>} : vector<384x128xbf16>, vector<128x128xbf16>, vector<384x128xf32> -> vector<384x128xf32>
    %c0_48 = arith.constant 0 : index
    %c1_49 = arith.constant 1 : index
    %c0_50 = arith.constant 0 : index
    %c0_51 = arith.constant 0 : index
    %48 = vector.load %arg1[%c0_48, %c1_49, %c0_50, %c0_51] : memref<1x18x24x128xbf16, #tpu.memory_space<vmem>>, vector<1x16x24x128xbf16>
    %49 = vector.shape_cast %48 : vector<1x16x24x128xbf16> to vector<16x24x128xbf16>
    %50 = vector.shape_cast %49 : vector<16x24x128xbf16> to vector<384x128xbf16>
    %c5 = arith.constant 5 : index
    %c0_52 = arith.constant 0 : index
    %c0_53 = arith.constant 0 : index
    %51 = vector.load %arg2[%c5, %c0_52, %c0_53] : memref<9x128x128xbf16, #tpu.memory_space<vmem>>, vector<1x128x128xbf16>
    %52 = vector.shape_cast %51 : vector<1x128x128xbf16> to vector<128x128xbf16>
    %cst_54 = arith.constant dense<0.000000e+00> : vector<384x128xf32>
    %53 = tpu.matmul %50, %52, %cst_54 {dimension_numbers = #tpu.dot_dimension_numbers<[1], [0], [0], [1], [0, 0, 1, 1], [], []>} : vector<384x128xbf16>, vector<128x128xbf16>, vector<384x128xf32> -> vector<384x128xf32>
    %54 = arith.addf %47, %53 : vector<384x128xf32>
    %c0_55 = arith.constant 0 : index
    %c2_56 = arith.constant 2 : index
    %c0_57 = arith.constant 0 : index
    %c0_58 = arith.constant 0 : index
    %55 = vector.load %arg1[%c0_55, %c2_56, %c0_57, %c0_58] : memref<1x18x24x128xbf16, #tpu.memory_space<vmem>>, vector<1x16x24x128xbf16>
    %56 = vector.shape_cast %55 : vector<1x16x24x128xbf16> to vector<16x24x128xbf16>
    %57 = vector.shape_cast %56 : vector<16x24x128xbf16> to vector<384x128xbf16>
    %c8 = arith.constant 8 : index
    %c0_59 = arith.constant 0 : index
    %c0_60 = arith.constant 0 : index
    %58 = vector.load %arg2[%c8, %c0_59, %c0_60] : memref<9x128x128xbf16, #tpu.memory_space<vmem>>, vector<1x128x128xbf16>
    %59 = vector.shape_cast %58 : vector<1x128x128xbf16> to vector<128x128xbf16>
    %cst_61 = arith.constant dense<0.000000e+00> : vector<384x128xf32>
    %60 = tpu.matmul %57, %59, %cst_61 {dimension_numbers = #tpu.dot_dimension_numbers<[1], [0], [0], [1], [0, 0, 1, 1], [], []>} : vector<384x128xbf16>, vector<128x128xbf16>, vector<384x128xf32> -> vector<384x128xf32>
    %61 = arith.addf %54, %60 : vector<384x128xf32>
    %c383_i32 = arith.constant 383 : i32
    %62 = tpu.dynamic_rotate %61 by %c383_i32 dim 0 : vector<384x128xf32>, i32 -> vector<384x128xf32>
    %63 = arith.addf %41, %62 : vector<384x128xf32>
    %64 = tpu.iota {dimensions = array<i32: 1>} : vector<16x24x128xi32>
    %65 = vector.shape_cast %64 : vector<16x24x128xi32> to vector<384x128xi32>
    %c1_i32_62 = arith.constant 1 : i32
    %66 = vector.broadcast %c1_i32_62 : i32 to vector<384x128xi32>
    %67 = arith.cmpi sge, %65, %66 : vector<384x128xi32>
    %c16_i32 = arith.constant 16 : i32
    %68 = vector.broadcast %c16_i32 : i32 to vector<384x128xi32>
    %69 = arith.cmpi sle, %65, %68 : vector<384x128xi32>
    %70 = arith.andi %67, %69 : vector<384x128xi1>
    %cst_63 = arith.constant 0.000000e+00 : f32
    %71 = vector.broadcast %cst_63 : f32 to vector<384x128xf32>
    %72 = arith.select %70, %63, %71 : vector<384x128xi1>, vector<384x128xf32>
    %cst_64 = arith.constant dense<0.000000e+00> : vector<128xf32>
    %73 = vector.multi_reduction <add>, %72, %cst_64 [0] : vector<384x128xf32> to vector<128xf32>
    %74 = vector.shape_cast %73 : vector<128xf32> to vector<1x128xf32>
    %c0_65 = arith.constant 0 : index
    %c0_66 = arith.constant 0 : index
    %c0_67 = arith.constant 0 : index
    %75 = vector.load %arg4[%c0_65, %c0_66, %c0_67] : memref<1x1x128xf32, #tpu.memory_space<vmem>>, vector<1x1x128xf32>
    %76 = vector.shape_cast %75 : vector<1x1x128xf32> to vector<1x128xf32>
    %77 = vector.shape_cast %74 : vector<1x128xf32> to vector<1x1x128xf32>
    tpu.vector_store %arg4[%c0_65, %c0_66, %c0_67], %77 {strides = array<i32>} : memref<1x1x128xf32, #tpu.memory_space<vmem>>, vector<1x1x128xf32>,
    %78 = arith.mulf %72, %72 : vector<384x128xf32>
    %cst_68 = arith.constant dense<0.000000e+00> : vector<128xf32>
    %79 = vector.multi_reduction <add>, %78, %cst_68 [0] : vector<384x128xf32> to vector<128xf32>
    %80 = vector.shape_cast %79 : vector<128xf32> to vector<1x128xf32>
    %c0_69 = arith.constant 0 : index
    %c0_70 = arith.constant 0 : index
    %c0_71 = arith.constant 0 : index
    %81 = vector.load %arg5[%c0_69, %c0_70, %c0_71] : memref<1x1x128xf32, #tpu.memory_space<vmem>>, vector<1x1x128xf32>
    %82 = vector.shape_cast %81 : vector<1x1x128xf32> to vector<1x128xf32>
    %83 = vector.shape_cast %80 : vector<1x128xf32> to vector<1x1x128xf32>
    tpu.vector_store %arg5[%c0_69, %c0_70, %c0_71], %83 {strides = array<i32>} : memref<1x1x128xf32, #tpu.memory_space<vmem>>, vector<1x1x128xf32>,
    %84 = vector.shape_cast %72 : vector<384x128xf32> to vector<16x24x128xf32>
    %85 = arith.truncf %84 : vector<16x24x128xf32> to vector<16x24x128xbf16>
    %c0_72 = arith.constant 0 : index
    %c0_73 = arith.constant 0 : index
    %c0_74 = arith.constant 0 : index
    %c0_75 = arith.constant 0 : index
    %86 = vector.load %arg3[%c0_72, %c0_73, %c0_74, %c0_75] : memref<1x16x24x128xbf16, #tpu.memory_space<vmem>>, vector<1x16x24x128xbf16>
    %87 = vector.shape_cast %86 : vector<1x16x24x128xbf16> to vector<16x24x128xbf16>
    %88 = vector.shape_cast %85 : vector<16x24x128xbf16> to vector<1x16x24x128xbf16>
    tpu.vector_store %arg3[%c0_72, %c0_73, %c0_74, %c0_75], %88 {strides = array<i32>} : memref<1x16x24x128xbf16, #tpu.memory_space<vmem>>, vector<1x16x24x128xbf16>,
    return
  }
  func.func @transform_0(%arg0: i32) -> (i32, i32, i32, i32) {
    %c0_i32 = arith.constant 0 : i32
    %c0_i32_0 = arith.constant 0 : i32
    %c0_i32_1 = arith.constant 0 : i32
    %c0_i32_2 = arith.constant 0 : i32
    return %arg0, %c0_i32, %c0_i32_0, %c0_i32_1 : i32, i32, i32, i32
  }
  func.func @transform_1(%arg0: i32) -> (i32, i32, i32) {
    %c0_i32 = arith.constant 0 : i32
    %c0_i32_0 = arith.constant 0 : i32
    %c0_i32_1 = arith.constant 0 : i32
    %c0_i32_2 = arith.constant 0 : i32
    return %c0_i32, %c0_i32_0, %c0_i32_1 : i32, i32, i32
  }
  func.func @transform_2(%arg0: i32) -> (i32, i32, i32, i32) {
    %c0_i32 = arith.constant 0 : i32
    %c0_i32_0 = arith.constant 0 : i32
    %c0_i32_1 = arith.constant 0 : i32
    %c0_i32_2 = arith.constant 0 : i32
    return %arg0, %c0_i32, %c0_i32_0, %c0_i32_1 : i32, i32, i32, i32
  }
  func.func @transform_3(%arg0: i32) -> (i32, i32, i32) {
    %c0_i32 = arith.constant 0 : i32
    %c0_i32_0 = arith.constant 0 : i32
    %c0_i32_1 = arith.constant 0 : i32
    return %arg0, %c0_i32, %c0_i32_0 : i32, i32, i32
  }
  func.func @transform_4(%arg0: i32) -> (i32, i32, i32) {
    %c0_i32 = arith.constant 0 : i32
    %c0_i32_0 = arith.constant 0 : i32
    %c0_i32_1 = arith.constant 0 : i32
    return %arg0, %c0_i32, %c0_i32_0 : i32, i32, i32
  }
}

module attributes {stable_mosaic.version = 11 : i64} {
  func.func @_bn_relu_pad_kernel(%arg0: i32, %arg1: memref<1x16x24x128xbf16, #tpu.memory_space<vmem>>, %arg2: memref<1x128xf32, #tpu.memory_space<vmem>>, %arg3: memref<1x128xf32, #tpu.memory_space<vmem>>, %arg4: memref<1x18x24x128xbf16, #tpu.memory_space<vmem>>) attributes {dimension_semantics = [#tpu.dimension_semantics<parallel>], iteration_bounds = array<i64: 2>, scalar_prefetch = 0 : i64, scratch_operands = 0 : i64, tpu.core_type = #tpu.core_type<tc>, window_params = [{transform_indices = @transform_0, window_bounds = array<i64: 1, 16, 24, 128>}, {pipeline_mode = #tpu.pipeline_mode<synchronous>, transform_indices = @transform_1, window_bounds = array<i64: 1, 128>}, {pipeline_mode = #tpu.pipeline_mode<synchronous>, transform_indices = @transform_2, window_bounds = array<i64: 1, 128>}, {transform_indices = @transform_3, window_bounds = array<i64: 1, 18, 24, 128>}]} {
    %c0 = arith.constant 0 : index
    %c0_0 = arith.constant 0 : index
    %c0_1 = arith.constant 0 : index
    %c0_2 = arith.constant 0 : index
    %0 = vector.load %arg1[%c0, %c0_0, %c0_1, %c0_2] : memref<1x16x24x128xbf16, #tpu.memory_space<vmem>>, vector<1x16x24x128xbf16>
    %1 = vector.shape_cast %0 : vector<1x16x24x128xbf16> to vector<16x24x128xbf16>
    %2 = vector.shape_cast %1 : vector<16x24x128xbf16> to vector<384x128xbf16>
    %3 = arith.extf %2 : vector<384x128xbf16> to vector<384x128xf32>
    %c0_3 = arith.constant 0 : index
    %c0_4 = arith.constant 0 : index
    %4 = vector.load %arg2[%c0_3, %c0_4] : memref<1x128xf32, #tpu.memory_space<vmem>>, vector<1x128xf32>
    %5 = vector.broadcast %4 : vector<1x128xf32> to vector<384x128xf32>
    %6 = arith.mulf %3, %5 : vector<384x128xf32>
    %c0_5 = arith.constant 0 : index
    %c0_6 = arith.constant 0 : index
    %7 = vector.load %arg3[%c0_5, %c0_6] : memref<1x128xf32, #tpu.memory_space<vmem>>, vector<1x128xf32>
    %8 = vector.broadcast %7 : vector<1x128xf32> to vector<384x128xf32>
    %9 = arith.addf %6, %8 : vector<384x128xf32>
    %cst = arith.constant 0.000000e+00 : f32
    %10 = vector.broadcast %cst : f32 to vector<384x128xf32>
    %11 = arith.maximumf %9, %10 : vector<384x128xf32>
    %12 = tpu.iota {dimensions = array<i32: 1>} : vector<16x24x128xi32>
    %13 = vector.shape_cast %12 : vector<16x24x128xi32> to vector<384x128xi32>
    %c1_i32 = arith.constant 1 : i32
    %14 = vector.broadcast %c1_i32 : i32 to vector<384x128xi32>
    %15 = arith.cmpi sge, %13, %14 : vector<384x128xi32>
    %c16_i32 = arith.constant 16 : i32
    %16 = vector.broadcast %c16_i32 : i32 to vector<384x128xi32>
    %17 = arith.cmpi sle, %13, %16 : vector<384x128xi32>
    %18 = arith.andi %15, %17 : vector<384x128xi1>
    %cst_7 = arith.constant 0.000000e+00 : f32
    %19 = vector.broadcast %cst_7 : f32 to vector<384x128xf32>
    %20 = arith.select %18, %11, %19 : vector<384x128xi1>, vector<384x128xf32>
    %cst_8 = arith.constant 0.000000e+00 : f32
    %21 = vector.broadcast %cst_8 : f32 to vector<24x128xf32>
    %22 = tpu.concatenate %21, %20, %21 in 0 : vector<24x128xf32>, vector<384x128xf32>, vector<24x128xf32> -> vector<432x128xf32>
    %23 = arith.truncf %22 : vector<432x128xf32> to vector<432x128xbf16>
    %24 = vector.shape_cast %23 : vector<432x128xbf16> to vector<18x24x128xbf16>
    %c0_9 = arith.constant 0 : index
    %c0_10 = arith.constant 0 : index
    %c0_11 = arith.constant 0 : index
    %c0_12 = arith.constant 0 : index
    %25 = vector.load %arg4[%c0_9, %c0_10, %c0_11, %c0_12] : memref<1x18x24x128xbf16, #tpu.memory_space<vmem>>, vector<1x18x24x128xbf16>
    %26 = vector.shape_cast %25 : vector<1x18x24x128xbf16> to vector<18x24x128xbf16>
    %27 = vector.shape_cast %24 : vector<18x24x128xbf16> to vector<1x18x24x128xbf16>
    tpu.vector_store %arg4[%c0_9, %c0_10, %c0_11, %c0_12], %27 {strides = array<i32>} : memref<1x18x24x128xbf16, #tpu.memory_space<vmem>>, vector<1x18x24x128xbf16>,
    return
  }
  func.func @transform_0(%arg0: i32) -> (i32, i32, i32, i32) {
    %c0_i32 = arith.constant 0 : i32
    %c0_i32_0 = arith.constant 0 : i32
    %c0_i32_1 = arith.constant 0 : i32
    %c0_i32_2 = arith.constant 0 : i32
    return %arg0, %c0_i32, %c0_i32_0, %c0_i32_1 : i32, i32, i32, i32
  }
  func.func @transform_1(%arg0: i32) -> (i32, i32) {
    %c0_i32 = arith.constant 0 : i32
    %c0_i32_0 = arith.constant 0 : i32
    %c0_i32_1 = arith.constant 0 : i32
    return %c0_i32, %c0_i32_0 : i32, i32
  }
  func.func @transform_2(%arg0: i32) -> (i32, i32) {
    %c0_i32 = arith.constant 0 : i32
    %c0_i32_0 = arith.constant 0 : i32
    %c0_i32_1 = arith.constant 0 : i32
    return %c0_i32, %c0_i32_0 : i32, i32
  }
  func.func @transform_3(%arg0: i32) -> (i32, i32, i32, i32) {
    %c0_i32 = arith.constant 0 : i32
    %c0_i32_0 = arith.constant 0 : i32
    %c0_i32_1 = arith.constant 0 : i32
    %c0_i32_2 = arith.constant 0 : i32
    return %arg0, %c0_i32, %c0_i32_0, %c0_i32_1 : i32, i32, i32, i32
  }
}

module attributes {stable_mosaic.version = 11 : i64} {
  func.func @_bn_res_relu_kernel(%arg0: i32, %arg1: memref<1x16x24x128xbf16, #tpu.memory_space<vmem>>, %arg2: memref<1x128xf32, #tpu.memory_space<vmem>>, %arg3: memref<1x128xf32, #tpu.memory_space<vmem>>, %arg4: memref<1x18x24x128xbf16, #tpu.memory_space<vmem>>, %arg5: memref<1x16x24x128xf32, #tpu.memory_space<vmem>>) attributes {dimension_semantics = [#tpu.dimension_semantics<parallel>], iteration_bounds = array<i64: 2>, scalar_prefetch = 0 : i64, scratch_operands = 0 : i64, tpu.core_type = #tpu.core_type<tc>, window_params = [{transform_indices = @transform_0, window_bounds = array<i64: 1, 16, 24, 128>}, {pipeline_mode = #tpu.pipeline_mode<synchronous>, transform_indices = @transform_1, window_bounds = array<i64: 1, 128>}, {pipeline_mode = #tpu.pipeline_mode<synchronous>, transform_indices = @transform_2, window_bounds = array<i64: 1, 128>}, {transform_indices = @transform_3, window_bounds = array<i64: 1, 18, 24, 128>}, {transform_indices = @transform_4, window_bounds = array<i64: 1, 16, 24, 128>}]} {
    %c0 = arith.constant 0 : index
    %c0_0 = arith.constant 0 : index
    %c0_1 = arith.constant 0 : index
    %c0_2 = arith.constant 0 : index
    %0 = vector.load %arg1[%c0, %c0_0, %c0_1, %c0_2] : memref<1x16x24x128xbf16, #tpu.memory_space<vmem>>, vector<1x16x24x128xbf16>
    %1 = vector.shape_cast %0 : vector<1x16x24x128xbf16> to vector<16x24x128xbf16>
    %2 = vector.shape_cast %1 : vector<16x24x128xbf16> to vector<384x128xbf16>
    %3 = arith.extf %2 : vector<384x128xbf16> to vector<384x128xf32>
    %c0_3 = arith.constant 0 : index
    %c1 = arith.constant 1 : index
    %c0_4 = arith.constant 0 : index
    %c0_5 = arith.constant 0 : index
    %4 = vector.load %arg4[%c0_3, %c1, %c0_4, %c0_5] : memref<1x18x24x128xbf16, #tpu.memory_space<vmem>>, vector<1x16x24x128xbf16>
    %5 = vector.shape_cast %4 : vector<1x16x24x128xbf16> to vector<16x24x128xbf16>
    %6 = vector.shape_cast %5 : vector<16x24x128xbf16> to vector<384x128xbf16>
    %7 = arith.extf %6 : vector<384x128xbf16> to vector<384x128xf32>
    %c0_6 = arith.constant 0 : index
    %c0_7 = arith.constant 0 : index
    %8 = vector.load %arg2[%c0_6, %c0_7] : memref<1x128xf32, #tpu.memory_space<vmem>>, vector<1x128xf32>
    %9 = vector.broadcast %8 : vector<1x128xf32> to vector<384x128xf32>
    %10 = arith.mulf %3, %9 : vector<384x128xf32>
    %c0_8 = arith.constant 0 : index
    %c0_9 = arith.constant 0 : index
    %11 = vector.load %arg3[%c0_8, %c0_9] : memref<1x128xf32, #tpu.memory_space<vmem>>, vector<1x128xf32>
    %12 = vector.broadcast %11 : vector<1x128xf32> to vector<384x128xf32>
    %13 = arith.addf %10, %12 : vector<384x128xf32>
    %14 = arith.addf %13, %7 : vector<384x128xf32>
    %cst = arith.constant 0.000000e+00 : f32
    %15 = vector.broadcast %cst : f32 to vector<384x128xf32>
    %16 = arith.maximumf %14, %15 : vector<384x128xf32>
    %17 = vector.shape_cast %16 : vector<384x128xf32> to vector<16x24x128xf32>
    %c0_10 = arith.constant 0 : index
    %c0_11 = arith.constant 0 : index
    %c0_12 = arith.constant 0 : index
    %c0_13 = arith.constant 0 : index
    %18 = vector.load %arg5[%c0_10, %c0_11, %c0_12, %c0_13] : memref<1x16x24x128xf32, #tpu.memory_space<vmem>>, vector<1x16x24x128xf32>
    %19 = vector.shape_cast %18 : vector<1x16x24x128xf32> to vector<16x24x128xf32>
    %20 = vector.shape_cast %17 : vector<16x24x128xf32> to vector<1x16x24x128xf32>
    tpu.vector_store %arg5[%c0_10, %c0_11, %c0_12, %c0_13], %20 {strides = array<i32>} : memref<1x16x24x128xf32, #tpu.memory_space<vmem>>, vector<1x16x24x128xf32>,
    return
  }
  func.func @transform_0(%arg0: i32) -> (i32, i32, i32, i32) {
    %c0_i32 = arith.constant 0 : i32
    %c0_i32_0 = arith.constant 0 : i32
    %c0_i32_1 = arith.constant 0 : i32
    %c0_i32_2 = arith.constant 0 : i32
    return %arg0, %c0_i32, %c0_i32_0, %c0_i32_1 : i32, i32, i32, i32
  }
  func.func @transform_1(%arg0: i32) -> (i32, i32) {
    %c0_i32 = arith.constant 0 : i32
    %c0_i32_0 = arith.constant 0 : i32
    %c0_i32_1 = arith.constant 0 : i32
    return %c0_i32, %c0_i32_0 : i32, i32
  }
  func.func @transform_2(%arg0: i32) -> (i32, i32) {
    %c0_i32 = arith.constant 0 : i32
    %c0_i32_0 = arith.constant 0 : i32
    %c0_i32_1 = arith.constant 0 : i32
    return %c0_i32, %c0_i32_0 : i32, i32
  }
  func.func @transform_3(%arg0: i32) -> (i32, i32, i32, i32) {
    %c0_i32 = arith.constant 0 : i32
    %c0_i32_0 = arith.constant 0 : i32
    %c0_i32_1 = arith.constant 0 : i32
    %c0_i32_2 = arith.constant 0 : i32
    return %arg0, %c0_i32, %c0_i32_0, %c0_i32_1 : i32, i32, i32, i32
  }
  func.func @transform_4(%arg0: i32) -> (i32, i32, i32, i32) {
    %c0_i32 = arith.constant 0 : i32
    %c0_i32_0 = arith.constant 0 : i32
    %c0_i32_1 = arith.constant 0 : i32
    %c0_i32_2 = arith.constant 0 : i32
    return %arg0, %c0_i32, %c0_i32_0, %c0_i32_1 : i32, i32, i32, i32
  }
}

</mosaic_0001>

<llo_original>
// kernel: basic_block_forward.7
$region0: #{basic_block_forward.7}
  #allocation0 [shape = 'u32[]', space=smem, size = 0x4, offset = 0x4, fixed_abs, tag = 'smem constant byte address 0x4 - core index']
  #allocation1 [shape = 'u32[144,128]{1,0:T(1,128)}', space=vmem, size = 0x12000, scoped, tag = 'internal scratch']
  %s0 = inlined_call_operand.vmem [shape: bf16[2,16,24,128], index: 0, kind: input, shape index: {}]
  %s1 = inlined_call_operand.vmem [shape: f32[1,128], index: 1, kind: input, shape index: {}]
  %s2 = inlined_call_operand.vmem [shape: f32[1,128], index: 2, kind: input, shape index: {}]
  %s3 = inlined_call_operand.vmem [shape: bf16[2,18,24,128], index: 3, kind: input, shape index: {}]
  %s4 = inlined_call_operand.vmem [shape: f32[2,16,24,128], index: 4, kind: output, shape index: {}]
  %s5 = sld [smem:[#allocation0]]
  $region49: #{basic_block_forward.7} parent=0
    _
  %s7 = ssub.s32 1, %s5
  %s8 = scalar_select 0, %s7, %s5
  loop: start=0, step=1, limit=4
  $region2: #{basic_block_forward.7} parent=0 // loop_pre_header
    _
  $region3: #{basic_block_forward.7} parent=0 // loop_header
    %s10 = sphi 0, %s14
    %p11 = scmp.ge.s32.totalorder %s10, 4
    %s20 = sphi 0, %s22
    %s23 = sphi 0, %s20
    %s24 = sphi 0, %s23
    %s40 = sphi 0, %s24
    %s44 = sphi 0, %s44
    %s46 = sphi 0, %s44
    %s47 = sphi 0, %s46
    %s61 = sphi 0, %s47
    %s65 = sphi 0, %s65
    %s67 = sphi 0, %s65
    %s68 = sphi 0, %s67
    %s82 = sphi 0, %s68
    %s88 = sphi 0, %s90
    %s91 = sphi 0, %s88
    %s92 = sphi 0, %s91
    %s108 = sphi 0, %s92
    %s114 = sphi 0, %s116
    %s117 = sphi 0, %s114
    %s118 = sphi 0, %s117
    %s134 = sphi 0, %s118
  $region4: #{basic_block_forward.7} parent=0 // loop_header_branch
    %13 = sbr.rel (%p11) target = $region8
  $region5: #{basic_block_forward.7} parent=0 // loop_body
    %s15 = ssub.s32 %s10, 1
    %s16 = ssub.s32 %s10, 2
    %s17 = sadd.s32 %s10, 1
    %s18 = ssub.s32 %s10, %s17
    %p19 = scmp.eq.s32.totalorder %s18, 0
    %s21 = sadd.s32 %s20, 1
    %s22 = scalar_select %p19, %s20, %s21
    %p25 = pneg %p19
    %p26 = scmp.eq.s32.totalorder %s10, 1
    %p27 = por %p25, %p26
    %p28 = scmp.ne.s32.totalorder %s20, %s23
    %p29 = scmp.eq.s32.totalorder %s10, 0
    %p30 = por %p28, %p29
    %p31 = scmp.ne.s32.totalorder %s20, %s23
    %p32 = scmp.eq.s32.totalorder %s15, 1
    %p33 = por %p31, %p32
    %p34 = scmp.ne.s32.totalorder %s23, %s24
    %p35 = scmp.eq.s32.totalorder %s15, 0
    %p36 = por %p34, %p35
    %p37 = scmp.ne.s32.totalorder %s23, %s24
    %p38 = scmp.eq.s32.totalorder %s16, 1
    %p39 = por %p37, %p38
    %p41 = scmp.ne.s32.totalorder %s24, %s40
    %p42 = scmp.eq.s32.totalorder %s16, 0
    %p43 = por %p41, %p42
    %s45 = sadd.s32 %s44, 1
    %p48 = scmp.eq.s32.totalorder %s10, 1
    %p49 = scmp.ne.s32.totalorder %s44, %s46
    %p50 = scmp.eq.s32.totalorder %s10, 0
    %p51 = por %p49, %p50
    %p52 = scmp.ne.s32.totalorder %s44, %s46
    %p53 = scmp.eq.s32.totalorder %s15, 1
    %p54 = por %p52, %p53
    %p55 = scmp.ne.s32.totalorder %s46, %s47
    %p56 = scmp.eq.s32.totalorder %s15, 0
    %p57 = por %p55, %p56
    %p58 = scmp.ne.s32.totalorder %s46, %s47
    %p59 = scmp.eq.s32.totalorder %s16, 1
    %p60 = por %p58, %p59
    %p62 = scmp.ne.s32.totalorder %s47, %s61
    %p63 = scmp.eq.s32.totalorder %s16, 0
    %p64 = por %p62, %p63
    %s66 = sadd.s32 %s65, 1
    %p69 = scmp.eq.s32.totalorder %s10, 1
    %p70 = scmp.ne.s32.totalorder %s65, %s67
    %p71 = scmp.eq.s32.totalorder %s10, 0
    %p72 = por %p70, %p71
    %p73 = scmp.ne.s32.totalorder %s65, %s67
    %p74 = scmp.eq.s32.totalorder %s15, 1
    %p75 = por %p73, %p74
    %p76 = scmp.ne.s32.totalorder %s67, %s68
    %p77 = scmp.eq.s32.totalorder %s15, 0
    %p78 = por %p76, %p77
    %p79 = scmp.ne.s32.totalorder %s67, %s68
    %p80 = scmp.eq.s32.totalorder %s16, 1
    %p81 = por %p79, %p80
    %p83 = scmp.ne.s32.totalorder %s68, %s82
    %p84 = scmp.eq.s32.totalorder %s16, 0
    %p85 = por %p83, %p84
    %s86 = ssub.s32 %s10, %s17
    %p87 = scmp.eq.s32.totalorder %s86, 0
    %s89 = sadd.s32 %s88, 1
    %s90 = scalar_select %p87, %s88, %s89
    %p93 = pneg %p87
    %p94 = scmp.eq.s32.totalorder %s10, 1
    %p95 = por %p93, %p94
    %p96 = scmp.ne.s32.totalorder %s88, %s91
    %p97 = scmp.eq.s32.totalorder %s10, 0
    %p98 = por %p96, %p97
    %p99 = scmp.ne.s32.totalorder %s88, %s91
    %p100 = scmp.eq.s32.totalorder %s15, 1
    %p101 = por %p99, %p100
    %p102 = scmp.ne.s32.totalorder %s91, %s92
    %p103 = scmp.eq.s32.totalorder %s15, 0
    %p104 = por %p102, %p103
    %p105 = scmp.ne.s32.totalorder %s91, %s92
    %p106 = scmp.eq.s32.totalorder %s16, 1
    %p107 = por %p105, %p106
    %p109 = scmp.ne.s32.totalorder %s92, %s108
    %p110 = scmp.eq.s32.totalorder %s16, 0
    %p111 = por %p109, %p110
    %s112 = ssub.s32 %s10, %s17
    %p113 = scmp.eq.s32.totalorder %s112, 0
    %s115 = sadd.s32 %s114, 1
    %s116 = scalar_select %p113, %s114, %s115
    %p119 = pneg %p113
    %p120 = scmp.eq.s32.totalorder %s10, 1
    %p121 = por %p119, %p120
    %p122 = scmp.ne.s32.totalorder %s114, %s117
    %p123 = scmp.eq.s32.totalorder %s10, 0
    %p124 = por %p122, %p123
    %p125 = scmp.ne.s32.totalorder %s114, %s117
    %p126 = scmp.eq.s32.totalorder %s15, 1
    %p127 = por %p125, %p126
    %p128 = scmp.ne.s32.totalorder %s117, %s118
    %p129 = scmp.eq.s32.totalorder %s15, 0
    %p130 = por %p128, %p129
    %p131 = scmp.ne.s32.totalorder %s117, %s118
    %p132 = scmp.eq.s32.totalorder %s16, 1
    %p133 = por %p131, %p132
    %p135 = scmp.ne.s32.totalorder %s118, %s134
    %p136 = scmp.eq.s32.totalorder %s16, 0
    %p137 = por %p135, %p136
    %p138 = scmp.le.s32.totalorder 1, %s10
    %p139 = scmp.lt.s32.totalorder %s10, 3
    %p140 = pnand %p138, %p139
    %p141 = pneg %p140
    // Predicated region
    $region9: #{basic_block_forward.7} parent=5 // pred_check
      _
    $region10: #{basic_block_forward.7} parent=5 // pred_check_branch
      %143 = sbr.rel (%p140) target = $region12
    $region11: #{basic_block_forward.7} parent=5 // pred_region
      %s144 = ssub.s32 %s10, 1
      // Predicated region
      $region13: #{basic_block_forward.7} parent=11 // pred_check
        %p145 = pneg %p57
      $region14: #{basic_block_forward.7} parent=11 // pred_check_branch
        %147 = sbr.rel (%p145) target = $region16
      $region15: #{basic_block_forward.7} parent=11 // pred_region
        _
      $region16: #{basic_block_forward.7} parent=11 // pred_fallthru
        _
      // Predicated region
      $region17: #{basic_block_forward.7} parent=11 // pred_check
        %p148 = pneg %p78
      $region18: #{basic_block_forward.7} parent=11 // pred_check_branch
        %150 = sbr.rel (%p148) target = $region20
      $region19: #{basic_block_forward.7} parent=11 // pred_region
        _
      $region20: #{basic_block_forward.7} parent=11 // pred_fallthru
        _
    $region12: #{basic_block_forward.7} parent=5 // pred_fallthru
      _
    %p151 = scmp.lt.s32.totalorder %s10, 2
    // Predicated region
    $region21: #{basic_block_forward.7} parent=5 // pred_check
      %p152 = pneg %p151
    $region22: #{basic_block_forward.7} parent=5 // pred_check_branch
      %154 = sbr.rel (%p152) target = $region24
    $region23: #{basic_block_forward.7} parent=5 // pred_region
      // Predicated region
      $region25: #{basic_block_forward.7} parent=23 // pred_check
        %p155 = pneg %p30
      $region26: #{basic_block_forward.7} parent=23 // pred_check_branch
        %157 = sbr.rel (%p155) target = $region28
      $region27: #{basic_block_forward.7} parent=23 // pred_region
        %p158 = scmp.lt.s32.totalorder %s10, 1
        %s159 = scalar_select %p158, %s10, 1
        %s160 = smul.addr %s159, 48
        %s161 = smul.addr %s160, 4
        %s162 = scalar_lea.vmem %s0, %s161
      $region28: #{basic_block_forward.7} parent=23 // pred_fallthru
        _
      // Predicated region
      $region29: #{basic_block_forward.7} parent=23 // pred_check
        %p163 = pneg %p98
      $region30: #{basic_block_forward.7} parent=23 // pred_check_branch
        %165 = sbr.rel (%p163) target = $region32
      $region31: #{basic_block_forward.7} parent=23 // pred_region
        %p166 = scmp.lt.s32.totalorder %s10, 1
        %s167 = scalar_select %p166, %s10, 1
        %s168 = smul.addr %s167, 54
        %s169 = smul.addr %s168, 4
        %s170 = scalar_lea.vmem %s3, %s169
      $region32: #{basic_block_forward.7} parent=23 // pred_fallthru
        _
    $region24: #{basic_block_forward.7} parent=5 // pred_fallthru
      _
    %p171 = scmp.le.s32.totalorder 1, %s10
    %p172 = scmp.lt.s32.totalorder %s10, 3
    %p173 = pnand %p171, %p172
    %p174 = pneg %p173
    // Predicated region
    $region33: #{basic_block_forward.7} parent=5 // pred_check
      _
    $region34: #{basic_block_forward.7} parent=5 // pred_check_branch
      %176 = sbr.rel (%p173) target = $region36
    $region35: #{basic_block_forward.7} parent=5 // pred_region
      %s177 = ssub.s32 %s10, 1
      %p178 = scmp.lt.s32.totalorder %s15, 1
      %s179 = scalar_select %p178, %s15, 1
      %s180 = smul.addr %s179, 48
      %s181 = smul.addr %s180, 4
      %s182 = scalar_lea.vmem %s0, %s181
      %p183 = pneg %p36
      %p184 = pneg %p33
      %p185 = pneg %p57
      %p186 = pneg %p54
      %p187 = pneg %p78
      %p188 = pneg %p75
      %p189 = scmp.lt.s32.totalorder %s15, 1
      %s190 = scalar_select %p189, %s15, 1
      %s191 = smul.addr %s190, 54
      %s192 = smul.addr %s191, 4
      %s193 = scalar_lea.vmem %s3, %s192
      %p194 = pneg %p104
      %p195 = pneg %p101
      %p196 = pneg %p130
      %p197 = pneg %p127
      %p198 = scmp.lt.s32.totalorder %s15, 1
      %s199 = scalar_select %p198, %s15, 1
      %s200 = smul.addr %s199, 48
      %s201 = smul.addr %s200, 8
      %s202 = scalar_lea.vmem %s4, %s201
      %p203 = scmp.lt.s32.totalorder %s15, 1
      %s204 = scalar_select %p203, %s15, 1
      %s205 = smul.addr %s204, 48
      %s206 = smul.addr %s205, 4
      %s207 = scalar_lea.vmem %s0, %s206
      %p208 = scmp.lt.s32.totalorder %s15, 1
      %s209 = scalar_select %p208, %s15, 1
      %s210 = smul.addr %s209, 54
      %s211 = smul.addr %s210, 4
      %s212 = scalar_lea.vmem %s3, %s211
      %p213 = scmp.lt.s32.totalorder %s15, 1
      %s214 = scalar_select %p213, %s15, 1
      %s215 = smul.addr %s214, 48
      %s216 = smul.addr %s215, 8
      %s217 = scalar_lea.vmem %s4, %s216
      %v218 = vld [vmem:[%s207] sm:$0xf]
      %v219 = vld [vmem:[%s207 + $0x4] sm:$0xf]
      %v220 = vld [vmem:[%s207 + $0x8] sm:$0xf]
      %v221 = vld [vmem:[%s207 + $0xc] sm:$0xf]
      %v222 = vld [vmem:[%s207 + $0x10] sm:$0xf]
      %v223 = vld [vmem:[%s207 + $0x14] sm:$0xf]
      %v224 = vld [vmem:[%s207 + $0x18] sm:$0xf]
      %v225 = vld [vmem:[%s207 + $0x1c] sm:$0xf]
      %v226 = vld [vmem:[%s207 + $0x20] sm:$0xf]
      %v227 = vld [vmem:[%s207 + $0x24] sm:$0xf]
      %v228 = vld [vmem:[%s207 + $0x28] sm:$0xf]
      %v229 = vld [vmem:[%s207 + $0x2c] sm:$0xf]
      %v230 = vld [vmem:[%s207 + $0x30] sm:$0xf]
      %v231 = vld [vmem:[%s207 + $0x34] sm:$0xf]
      %v232 = vld [vmem:[%s207 + $0x38] sm:$0xf]
      %v233 = vld [vmem:[%s207 + $0x3c] sm:$0xf]
      %v234 = vld [vmem:[%s207 + $0x40] sm:$0xf]
      %v235 = vld [vmem:[%s207 + $0x44] sm:$0xf]
      %v236 = vld [vmem:[%s207 + $0x48] sm:$0xf]
      %v237 = vld [vmem:[%s207 + $0x4c] sm:$0xf]
      %v238 = vld [vmem:[%s207 + $0x50] sm:$0xf]
      %v239 = vld [vmem:[%s207 + $0x54] sm:$0xf]
      %v240 = vld [vmem:[%s207 + $0x58] sm:$0xf]
      %v241 = vld [vmem:[%s207 + $0x5c] sm:$0xf]
      %v242 = vld [vmem:[%s207 + $0x60] sm:$0xf]
      %v243 = vld [vmem:[%s207 + $0x64] sm:$0xf]
      %v244 = vld [vmem:[%s207 + $0x68] sm:$0xf]
      %v245 = vld [vmem:[%s207 + $0x6c] sm:$0xf]
      %v246 = vld [vmem:[%s207 + $0x70] sm:$0xf]
      %v247 = vld [vmem:[%s207 + $0x74] sm:$0xf]
      %v248 = vld [vmem:[%s207 + $0x78] sm:$0xf]
      %v249 = vld [vmem:[%s207 + $0x7c] sm:$0xf]
      %v250 = vld [vmem:[%s207 + $0x80] sm:$0xf]
      %v251 = vld [vmem:[%s207 + $0x84] sm:$0xf]
      %v252 = vld [vmem:[%s207 + $0x88] sm:$0xf]
      %v253 = vld [vmem:[%s207 + $0x8c] sm:$0xf]
      %v254 = vld [vmem:[%s207 + $0x90] sm:$0xf]
      %v255 = vld [vmem:[%s207 + $0x94] sm:$0xf]
      %v256 = vld [vmem:[%s207 + $0x98] sm:$0xf]
      %v257 = vld [vmem:[%s207 + $0x9c] sm:$0xf]
      %v258 = vld [vmem:[%s207 + $0xa0] sm:$0xf]
      %v259 = vld [vmem:[%s207 + $0xa4] sm:$0xf]
      %v260 = vld [vmem:[%s207 + $0xa8] sm:$0xf]
      %v261 = vld [vmem:[%s207 + $0xac] sm:$0xf]
      %v262 = vld [vmem:[%s207 + $0xb0] sm:$0xf]
      %v263 = vld [vmem:[%s207 + $0xb4] sm:$0xf]
      %v264 = vld [vmem:[%s207 + $0xb8] sm:$0xf]
      %v265 = vld [vmem:[%s207 + $0xbc] sm:$0xf]
      %v266 = vunpack.c.l.bf16 %v218
      %v267 = vunpack.c.l.bf16 %v219
      %v268 = vunpack.c.l.bf16 %v220
      %v269 = vunpack.c.l.bf16 %v221
      %v270 = vunpack.c.l.bf16 %v222
      %v271 = vunpack.c.l.bf16 %v223
      %v272 = vunpack.c.l.bf16 %v224
      %v273 = vunpack.c.l.bf16 %v225
      %v274 = vunpack.c.l.bf16 %v226
      %v275 = vunpack.c.l.bf16 %v227
      %v276 = vunpack.c.l.bf16 %v228
      %v277 = vunpack.c.l.bf16 %v229
      %v278 = vunpack.c.l.bf16 %v230
      %v279 = vunpack.c.l.bf16 %v231
      %v280 = vunpack.c.l.bf16 %v232
      %v281 = vunpack.c.l.bf16 %v233
      %v282 = vunpack.c.l.bf16 %v234
      %v283 = vunpack.c.l.bf16 %v235
      %v284 = vunpack.c.l.bf16 %v236
      %v285 = vunpack.c.l.bf16 %v237
      %v286 = vunpack.c.l.bf16 %v238
      %v287 = vunpack.c.l.bf16 %v239
      %v288 = vunpack.c.l.bf16 %v240
      %v289 = vunpack.c.l.bf16 %v241
      %v290 = vunpack.c.l.bf16 %v242
      %v291 = vunpack.c.l.bf16 %v243
      %v292 = vunpack.c.l.bf16 %v244
      %v293 = vunpack.c.l.bf16 %v245
      %v294 = vunpack.c.l.bf16 %v246
      %v295 = vunpack.c.l.bf16 %v247
      %v296 = vunpack.c.l.bf16 %v248
      %v297 = vunpack.c.l.bf16 %v249
      %v298 = vunpack.c.l.bf16 %v250
      %v299 = vunpack.c.l.bf16 %v251
      %v300 = vunpack.c.l.bf16 %v252
      %v301 = vunpack.c.l.bf16 %v253
      %v302 = vunpack.c.l.bf16 %v254
      %v303 = vunpack.c.l.bf16 %v255
      %v304 = vunpack.c.l.bf16 %v256
      %v305 = vunpack.c.l.bf16 %v257
      %v306 = vunpack.c.l.bf16 %v258
      %v307 = vunpack.c.l.bf16 %v259
      %v308 = vunpack.c.l.bf16 %v260
      %v309 = vunpack.c.l.bf16 %v261
      %v310 = vunpack.c.l.bf16 %v262
      %v311 = vunpack.c.l.bf16 %v263
      %v312 = vunpack.c.l.bf16 %v264
      %v313 = vunpack.c.l.bf16 %v265
      %s314 = scalar_lea.vmem %s212, 12
      %v315 = vld [vmem:[%s314] sm:$0xf]
      %v316 = vld [vmem:[%s314 + $0x4] sm:$0xf]
      %v317 = vld [vmem:[%s314 + $0x8] sm:$0xf]
      %v318 = vld [vmem:[%s314 + $0xc] sm:$0xf]
      %v319 = vld [vmem:[%s314 + $0x10] sm:$0xf]
      %v320 = vld [vmem:[%s314 + $0x14] sm:$0xf]
      %v321 = vld [vmem:[%s314 + $0x18] sm:$0xf]
      %v322 = vld [vmem:[%s314 + $0x1c] sm:$0xf]
      %v323 = vld [vmem:[%s314 + $0x20] sm:$0xf]
      %v324 = vld [vmem:[%s314 + $0x24] sm:$0xf]
      %v325 = vld [vmem:[%s314 + $0x28] sm:$0xf]
      %v326 = vld [vmem:[%s314 + $0x2c] sm:$0xf]
      %v327 = vld [vmem:[%s314 + $0x30] sm:$0xf]
      %v328 = vld [vmem:[%s314 + $0x34] sm:$0xf]
      %v329 = vld [vmem:[%s314 + $0x38] sm:$0xf]
      %v330 = vld [vmem:[%s314 + $0x3c] sm:$0xf]
      %v331 = vld [vmem:[%s314 + $0x40] sm:$0xf]
      %v332 = vld [vmem:[%s314 + $0x44] sm:$0xf]
      %v333 = vld [vmem:[%s314 + $0x48] sm:$0xf]
      %v334 = vld [vmem:[%s314 + $0x4c] sm:$0xf]
      %v335 = vld [vmem:[%s314 + $0x50] sm:$0xf]
      %v336 = vld [vmem:[%s314 + $0x54] sm:$0xf]
      %v337 = vld [vmem:[%s314 + $0x58] sm:$0xf]
      %v338 = vld [vmem:[%s314 + $0x5c] sm:$0xf]
      %v339 = vld [vmem:[%s314 + $0x60] sm:$0xf]
      %v340 = vld [vmem:[%s314 + $0x64] sm:$0xf]
      %v341 = vld [vmem:[%s314 + $0x68] sm:$0xf]
      %v342 = vld [vmem:[%s314 + $0x6c] sm:$0xf]
      %v343 = vld [vmem:[%s314 + $0x70] sm:$0xf]
      %v344 = vld [vmem:[%s314 + $0x74] sm:$0xf]
      %v345 = vld [vmem:[%s314 + $0x78] sm:$0xf]
      %v346 = vld [vmem:[%s314 + $0x7c] sm:$0xf]
      %v347 = vld [vmem:[%s314 + $0x80] sm:$0xf]
      %v348 = vld [vmem:[%s314 + $0x84] sm:$0xf]
      %v349 = vld [vmem:[%s314 + $0x88] sm:$0xf]
      %v350 = vld [vmem:[%s314 + $0x8c] sm:$0xf]
      %v351 = vld [vmem:[%s314 + $0x90] sm:$0xf]
      %v352 = vld [vmem:[%s314 + $0x94] sm:$0xf]
      %v353 = vld [vmem:[%s314 + $0x98] sm:$0xf]
      %v354 = vld [vmem:[%s314 + $0x9c] sm:$0xf]
      %v355 = vld [vmem:[%s314 + $0xa0] sm:$0xf]
      %v356 = vld [vmem:[%s314 + $0xa4] sm:$0xf]
      %v357 = vld [vmem:[%s314 + $0xa8] sm:$0xf]
      %v358 = vld [vmem:[%s314 + $0xac] sm:$0xf]
      %v359 = vld [vmem:[%s314 + $0xb0] sm:$0xf]
      %v360 = vld [vmem:[%s314 + $0xb4] sm:$0xf]
      %v361 = vld [vmem:[%s314 + $0xb8] sm:$0xf]
      %v362 = vld [vmem:[%s314 + $0xbc] sm:$0xf]
      %v363 = vunpack.c.l.bf16 %v315
      %v364 = vunpack.c.l.bf16 %v316
      %v365 = vunpack.c.l.bf16 %v317
      %v366 = vunpack.c.l.bf16 %v318
      %v367 = vunpack.c.l.bf16 %v319
      %v368 = vunpack.c.l.bf16 %v320
      %v369 = vunpack.c.l.bf16 %v321
      %v370 = vunpack.c.l.bf16 %v322
      %v371 = vunpack.c.l.bf16 %v323
      %v372 = vunpack.c.l.bf16 %v324
      %v373 = vunpack.c.l.bf16 %v325
      %v374 = vunpack.c.l.bf16 %v326
      %v375 = vunpack.c.l.bf16 %v327
      %v376 = vunpack.c.l.bf16 %v328
      %v377 = vunpack.c.l.bf16 %v329
      %v378 = vunpack.c.l.bf16 %v330
      %v379 = vunpack.c.l.bf16 %v331
      %v380 = vunpack.c.l.bf16 %v332
      %v381 = vunpack.c.l.bf16 %v333
      %v382 = vunpack.c.l.bf16 %v334
      %v383 = vunpack.c.l.bf16 %v335
      %v384 = vunpack.c.l.bf16 %v336
      %v385 = vunpack.c.l.bf16 %v337
      %v386 = vunpack.c.l.bf16 %v338
      %v387 = vunpack.c.l.bf16 %v339
      %v388 = vunpack.c.l.bf16 %v340
      %v389 = vunpack.c.l.bf16 %v341
      %v390 = vunpack.c.l.bf16 %v342
      %v391 = vunpack.c.l.bf16 %v343
      %v392 = vunpack.c.l.bf16 %v344
      %v393 = vunpack.c.l.bf16 %v345
      %v394 = vunpack.c.l.bf16 %v346
      %v395 = vunpack.c.l.bf16 %v347
      %v396 = vunpack.c.l.bf16 %v348
      %v397 = vunpack.c.l.bf16 %v349
      %v398 = vunpack.c.l.bf16 %v350
      %v399 = vunpack.c.l.bf16 %v351
      %v400 = vunpack.c.l.bf16 %v352
      %v401 = vunpack.c.l.bf16 %v353
      %v402 = vunpack.c.l.bf16 %v354
      %v403 = vunpack.c.l.bf16 %v355
      %v404 = vunpack.c.l.bf16 %v356
      %v405 = vunpack.c.l.bf16 %v357
      %v406 = vunpack.c.l.bf16 %v358
      %v407 = vunpack.c.l.bf16 %v359
      %v408 = vunpack.c.l.bf16 %v360
      %v409 = vunpack.c.l.bf16 %v361
      %v410 = vunpack.c.l.bf16 %v362
      %v411 = vld [vmem:[%s1] sm:$0x1]
      %v413 = vlaneseq
      %v414 = vshrl.u32 %v413, 7
      %v415 = vsub.s32 0, %v414
      %v416 = vrot.slane %v411, %v415
      %v418 = vmul.f32 %v266, %v416
      %v419 = vmul.f32 %v267, %v416
      %v420 = vmul.f32 %v268, %v416
      %v421 = vmul.f32 %v269, %v416
      %v422 = vmul.f32 %v270, %v416
      %v423 = vmul.f32 %v271, %v416
      %v424 = vmul.f32 %v272, %v416
      %v425 = vmul.f32 %v273, %v416
      %v426 = vmul.f32 %v274, %v416
      %v427 = vmul.f32 %v275, %v416
      %v428 = vmul.f32 %v276, %v416
      %v429 = vmul.f32 %v277, %v416
      %v430 = vmul.f32 %v278, %v416
      %v431 = vmul.f32 %v279, %v416
      %v432 = vmul.f32 %v280, %v416
      %v433 = vmul.f32 %v281, %v416
      %v434 = vmul.f32 %v282, %v416
      %v435 = vmul.f32 %v283, %v416
      %v436 = vmul.f32 %v284, %v416
      %v437 = vmul.f32 %v285, %v416
      %v438 = vmul.f32 %v286, %v416
      %v439 = vmul.f32 %v287, %v416
      %v440 = vmul.f32 %v288, %v416
      %v441 = vmul.f32 %v289, %v416
      %v442 = vmul.f32 %v290, %v416
      %v443 = vmul.f32 %v291, %v416
      %v444 = vmul.f32 %v292, %v416
      %v445 = vmul.f32 %v293, %v416
      %v446 = vmul.f32 %v294, %v416
      %v447 = vmul.f32 %v295, %v416
      %v448 = vmul.f32 %v296, %v416
      %v449 = vmul.f32 %v297, %v416
      %v450 = vmul.f32 %v298, %v416
      %v451 = vmul.f32 %v299, %v416
      %v452 = vmul.f32 %v300, %v416
      %v453 = vmul.f32 %v301, %v416
      %v454 = vmul.f32 %v302, %v416
      %v455 = vmul.f32 %v303, %v416
      %v456 = vmul.f32 %v304, %v416
      %v457 = vmul.f32 %v305, %v416
      %v458 = vmul.f32 %v306, %v416
      %v459 = vmul.f32 %v307, %v416
      %v460 = vmul.f32 %v308, %v416
      %v461 = vmul.f32 %v309, %v416
      %v462 = vmul.f32 %v310, %v416
      %v463 = vmul.f32 %v311, %v416
      %v464 = vmul.f32 %v312, %v416
      %v465 = vmul.f32 %v313, %v416
      %v466 = vld [vmem:[%s2] sm:$0x1]
      %v468 = vlaneseq
      %v469 = vshrl.u32 %v468, 7
      %v470 = vsub.s32 0, %v469
      %v471 = vrot.slane %v466, %v470
      %v473 = vadd.f32 %v418, %v471
      %v474 = vadd.f32 %v419, %v471
      %v475 = vadd.f32 %v420, %v471
      %v476 = vadd.f32 %v421, %v471
      %v477 = vadd.f32 %v422, %v471
      %v478 = vadd.f32 %v423, %v471
      %v479 = vadd.f32 %v424, %v471
      %v480 = vadd.f32 %v425, %v471
      %v481 = vadd.f32 %v426, %v471
      %v482 = vadd.f32 %v427, %v471
      %v483 = vadd.f32 %v428, %v471
      %v484 = vadd.f32 %v429, %v471
      %v485 = vadd.f32 %v430, %v471
      %v486 = vadd.f32 %v431, %v471
      %v487 = vadd.f32 %v432, %v471
      %v488 = vadd.f32 %v433, %v471
      %v489 = vadd.f32 %v434, %v471
      %v490 = vadd.f32 %v435, %v471
      %v491 = vadd.f32 %v436, %v471
      %v492 = vadd.f32 %v437, %v471
      %v493 = vadd.f32 %v438, %v471
      %v494 = vadd.f32 %v439, %v471
      %v495 = vadd.f32 %v440, %v471
      %v496 = vadd.f32 %v441, %v471
      %v497 = vadd.f32 %v442, %v471
      %v498 = vadd.f32 %v443, %v471
      %v499 = vadd.f32 %v444, %v471
      %v500 = vadd.f32 %v445, %v471
      %v501 = vadd.f32 %v446, %v471
      %v502 = vadd.f32 %v447, %v471
      %v503 = vadd.f32 %v448, %v471
      %v504 = vadd.f32 %v449, %v471
      %v505 = vadd.f32 %v450, %v471
      %v506 = vadd.f32 %v451, %v471
      %v507 = vadd.f32 %v452, %v471
      %v508 = vadd.f32 %v453, %v471
      %v509 = vadd.f32 %v454, %v471
      %v510 = vadd.f32 %v455, %v471
      %v511 = vadd.f32 %v456, %v471
      %v512 = vadd.f32 %v457, %v471
      %v513 = vadd.f32 %v458, %v471
      %v514 = vadd.f32 %v459, %v471
      %v515 = vadd.f32 %v460, %v471
      %v516 = vadd.f32 %v461, %v471
      %v517 = vadd.f32 %v462, %v471
      %v518 = vadd.f32 %v463, %v471
      %v519 = vadd.f32 %v464, %v471
      %v520 = vadd.f32 %v465, %v471
      %v521 = vadd.f32 %v473, %v363
      %v522 = vadd.f32 %v474, %v364
      %v523 = vadd.f32 %v475, %v365
      %v524 = vadd.f32 %v476, %v366
      %v525 = vadd.f32 %v477, %v367
      %v526 = vadd.f32 %v478, %v368
      %v527 = vadd.f32 %v479, %v369
      %v528 = vadd.f32 %v480, %v370
      %v529 = vadd.f32 %v481, %v371
      %v530 = vadd.f32 %v482, %v372
      %v531 = vadd.f32 %v483, %v373
      %v532 = vadd.f32 %v484, %v374
      %v533 = vadd.f32 %v485, %v375
      %v534 = vadd.f32 %v486, %v376
      %v535 = vadd.f32 %v487, %v377
      %v536 = vadd.f32 %v488, %v378
      %v537 = vadd.f32 %v489, %v379
      %v538 = vadd.f32 %v490, %v380
      %v539 = vadd.f32 %v491, %v381
      %v540 = vadd.f32 %v492, %v382
      %v541 = vadd.f32 %v493, %v383
      %v542 = vadd.f32 %v494, %v384
      %v543 = vadd.f32 %v495, %v385
      %v544 = vadd.f32 %v496, %v386
      %v545 = vadd.f32 %v497, %v387
      %v546 = vadd.f32 %v498, %v388
      %v547 = vadd.f32 %v499, %v389
      %v548 = vadd.f32 %v500, %v390
      %v549 = vadd.f32 %v501, %v391
      %v550 = vadd.f32 %v502, %v392
      %v551 = vadd.f32 %v503, %v393
      %v552 = vadd.f32 %v504, %v394
      %v553 = vadd.f32 %v505, %v395
      %v554 = vadd.f32 %v506, %v396
      %v555 = vadd.f32 %v507, %v397
      %v556 = vadd.f32 %v508, %v398
      %v557 = vadd.f32 %v509, %v399
      %v558 = vadd.f32 %v510, %v400
      %v559 = vadd.f32 %v511, %v401
      %v560 = vadd.f32 %v512, %v402
      %v561 = vadd.f32 %v513, %v403
      %v562 = vadd.f32 %v514, %v404
      %v563 = vadd.f32 %v515, %v405
      %v564 = vadd.f32 %v516, %v406
      %v565 = vadd.f32 %v517, %v407
      %v566 = vadd.f32 %v518, %v408
      %v567 = vadd.f32 %v519, %v409
      %v568 = vadd.f32 %v520, %v410
      %v569 = vmax.f32 %v521, 0.0
      %v570 = vmax.f32 %v522, 0.0
      %v571 = vmax.f32 %v523, 0.0
      %v572 = vmax.f32 %v524, 0.0
      %v573 = vmax.f32 %v525, 0.0
      %v574 = vmax.f32 %v526, 0.0
      %v575 = vmax.f32 %v527, 0.0
      %v576 = vmax.f32 %v528, 0.0
      %v577 = vmax.f32 %v529, 0.0
      %v578 = vmax.f32 %v530, 0.0
      %v579 = vmax.f32 %v531, 0.0
      %v580 = vmax.f32 %v532, 0.0
      %v581 = vmax.f32 %v533, 0.0
      %v582 = vmax.f32 %v534, 0.0
      %v583 = vmax.f32 %v535, 0.0
      %v584 = vmax.f32 %v536, 0.0
      %v585 = vmax.f32 %v537, 0.0
      %v586 = vmax.f32 %v538, 0.0
      %v587 = vmax.f32 %v539, 0.0
      %v588 = vmax.f32 %v540, 0.0
      %v589 = vmax.f32 %v541, 0.0
      %v590 = vmax.f32 %v542, 0.0
      %v591 = vmax.f32 %v543, 0.0
      %v592 = vmax.f32 %v544, 0.0
      %v593 = vmax.f32 %v545, 0.0
      %v594 = vmax.f32 %v546, 0.0
      %v595 = vmax.f32 %v547, 0.0
      %v596 = vmax.f32 %v548, 0.0
      %v597 = vmax.f32 %v549, 0.0
      %v598 = vmax.f32 %v550, 0.0
      %v599 = vmax.f32 %v551, 0.0
      %v600 = vmax.f32 %v552, 0.0
      %v601 = vmax.f32 %v553, 0.0
      %v602 = vmax.f32 %v554, 0.0
      %v603 = vmax.f32 %v555, 0.0
      %v604 = vmax.f32 %v556, 0.0
      %v605 = vmax.f32 %v557, 0.0
      %v606 = vmax.f32 %v558, 0.0
      %v607 = vmax.f32 %v559, 0.0
      %v608 = vmax.f32 %v560, 0.0
      %v609 = vmax.f32 %v561, 0.0
      %v610 = vmax.f32 %v562, 0.0
      %v611 = vmax.f32 %v563, 0.0
      %v612 = vmax.f32 %v564, 0.0
      %v613 = vmax.f32 %v565, 0.0
      %v614 = vmax.f32 %v566, 0.0
      %v615 = vmax.f32 %v567, 0.0
      %v616 = vmax.f32 %v568, 0.0
      %617 = vst [vmem:[%s217] sm:$0xff] %v569
      %618 = vst [vmem:[%s217 + $0x8] sm:$0xff] %v570
      %619 = vst [vmem:[%s217 + $0x10] sm:$0xff] %v571
      %620 = vst [vmem:[%s217 + $0x18] sm:$0xff] %v572
      %621 = vst [vmem:[%s217 + $0x20] sm:$0xff] %v573
      %622 = vst [vmem:[%s217 + $0x28] sm:$0xff] %v574
      %623 = vst [vmem:[%s217 + $0x30] sm:$0xff] %v575
      %624 = vst [vmem:[%s217 + $0x38] sm:$0xff] %v576
      %625 = vst [vmem:[%s217 + $0x40] sm:$0xff] %v577
      %626 = vst [vmem:[%s217 + $0x48] sm:$0xff] %v578
      %627 = vst [vmem:[%s217 + $0x50] sm:$0xff] %v579
      %628 = vst [vmem:[%s217 + $0x58] sm:$0xff] %v580
      %629 = vst [vmem:[%s217 + $0x60] sm:$0xff] %v581
      %630 = vst [vmem:[%s217 + $0x68] sm:$0xff] %v582
      %631 = vst [vmem:[%s217 + $0x70] sm:$0xff] %v583
      %632 = vst [vmem:[%s217 + $0x78] sm:$0xff] %v584
      %633 = vst [vmem:[%s217 + $0x80] sm:$0xff] %v585
      %634 = vst [vmem:[%s217 + $0x88] sm:$0xff] %v586
      %635 = vst [vmem:[%s217 + $0x90] sm:$0xff] %v587
      %636 = vst [vmem:[%s217 + $0x98] sm:$0xff] %v588
      %637 = vst [vmem:[%s217 + $0xa0] sm:$0xff] %v589
      %638 = vst [vmem:[%s217 + $0xa8] sm:$0xff] %v590
      %639 = vst [vmem:[%s217 + $0xb0] sm:$0xff] %v591
      %640 = vst [vmem:[%s217 + $0xb8] sm:$0xff] %v592
      %641 = vst [vmem:[%s217 + $0xc0] sm:$0xff] %v593
      %642 = vst [vmem:[%s217 + $0xc8] sm:$0xff] %v594
      %643 = vst [vmem:[%s217 + $0xd0] sm:$0xff] %v595
      %644 = vst [vmem:[%s217 + $0xd8] sm:$0xff] %v596
      %645 = vst [vmem:[%s217 + $0xe0] sm:$0xff] %v597
      %646 = vst [vmem:[%s217 + $0xe8] sm:$0xff] %v598
      %647 = vst [vmem:[%s217 + $0xf0] sm:$0xff] %v599
      %648 = vst [vmem:[%s217 + $0xf8] sm:$0xff] %v600
      %649 = vst [vmem:[%s217 + $0x100] sm:$0xff] %v601
      %650 = vst [vmem:[%s217 + $0x108] sm:$0xff] %v602
      %651 = vst [vmem:[%s217 + $0x110] sm:$0xff] %v603
      %652 = vst [vmem:[%s217 + $0x118] sm:$0xff] %v604
      %653 = vst [vmem:[%s217 + $0x120] sm:$0xff] %v605
      %654 = vst [vmem:[%s217 + $0x128] sm:$0xff] %v606
      %655 = vst [vmem:[%s217 + $0x130] sm:$0xff] %v607
      %656 = vst [vmem:[%s217 + $0x138] sm:$0xff] %v608
      %657 = vst [vmem:[%s217 + $0x140] sm:$0xff] %v609
      %658 = vst [vmem:[%s217 + $0x148] sm:$0xff] %v610
      %659 = vst [vmem:[%s217 + $0x150] sm:$0xff] %v611
      %660 = vst [vmem:[%s217 + $0x158] sm:$0xff] %v612
      %661 = vst [vmem:[%s217 + $0x160] sm:$0xff] %v613
      %662 = vst [vmem:[%s217 + $0x168] sm:$0xff] %v614
      %663 = vst [vmem:[%s217 + $0x170] sm:$0xff] %v615
      %664 = vst [vmem:[%s217 + $0x178] sm:$0xff] %v616
      %p665 = scmp.lt.s32.totalorder %s15, 1
      %s666 = scalar_select %p665, %s15, 1
      %s667 = smul.addr %s666, 48
      %s668 = smul.addr %s667, 8
      %s669 = scalar_lea.vmem %s4, %s668
      // Predicated region
      $region37: #{basic_block_forward.7} parent=35 // pred_check
        %p670 = pneg %p127
      $region38: #{basic_block_forward.7} parent=35 // pred_check_branch
        %672 = sbr.rel (%p670) target = $region40
      $region39: #{basic_block_forward.7} parent=35 // pred_region
        _
      $region40: #{basic_block_forward.7} parent=35 // pred_fallthru
        _
    $region36: #{basic_block_forward.7} parent=5 // pred_fallthru
      _
    %p673 = scmp.le.s32.totalorder 2, %s10
    // Predicated region
    $region41: #{basic_block_forward.7} parent=5 // pred_check
      %p674 = pneg %p673
    $region42: #{basic_block_forward.7} parent=5 // pred_check_branch
      %676 = sbr.rel (%p674) target = $region44
    $region43: #{basic_block_forward.7} parent=5 // pred_region
      %s677 = ssub.s32 %s10, 2
      // Predicated region
      $region45: #{basic_block_forward.7} parent=43 // pred_check
        %p678 = pneg %p133
      $region46: #{basic_block_forward.7} parent=43 // pred_check_branch
        %680 = sbr.rel (%p678) target = $region48
      $region47: #{basic_block_forward.7} parent=43 // pred_region
        %p681 = scmp.lt.s32.totalorder %s16, 1
        %s682 = scalar_select %p681, %s16, 1
        %s683 = smul.addr %s682, 48
        %s684 = smul.addr %s683, 8
        %s685 = scalar_lea.vmem %s4, %s684
      $region48: #{basic_block_forward.7} parent=43 // pred_fallthru
        _
    $region44: #{basic_block_forward.7} parent=5 // pred_fallthru
      _
  $region6: #{basic_block_forward.7} parent=0 // loop_footer
    %s14 = sadd.s32 1, %s10
  $region7: #{basic_block_forward.7} parent=0 // loop_footer_branch
    %9 = sbr.rel target = $region3
  $region8: #{basic_block_forward.7} parent=0 // loop_exit
    _

// kernel: basic_block_forward.5
$region0: #{basic_block_forward.5}
  #allocation0 [shape = 'u32[]', space=smem, size = 0x4, offset = 0x4, fixed_abs, tag = 'smem constant byte address 0x4 - core index']
  #allocation1 [shape = 'u32[144,128]{1,0:T(1,128)}', space=vmem, size = 0x12000, scoped, tag = 'internal scratch']
  %s0 = inlined_call_operand.vmem [shape: bf16[2,16,24,128], index: 0, kind: input, shape index: {}]
  %s1 = inlined_call_operand.vmem [shape: f32[1,128], index: 1, kind: input, shape index: {}]
  %s2 = inlined_call_operand.vmem [shape: f32[1,128], index: 2, kind: input, shape index: {}]
  %s3 = inlined_call_operand.vmem [shape: bf16[2,18,24,128], index: 3, kind: output, shape index: {}]
  %s4 = sld [smem:[#allocation0]]
  $region45: #{basic_block_forward.5} parent=0
    _
  %s6 = ssub.s32 1, %s4
  %s7 = scalar_select 0, %s6, %s4
  loop: start=0, step=1, limit=4
  $region2: #{basic_block_forward.5} parent=0 // loop_pre_header
    _
  $region3: #{basic_block_forward.5} parent=0 // loop_header
    %s9 = sphi 0, %s13
    %p10 = scmp.ge.s32.totalorder %s9, 4
    %s19 = sphi 0, %s21
    %s22 = sphi 0, %s19
    %s23 = sphi 0, %s22
    %s39 = sphi 0, %s23
    %s43 = sphi 0, %s43
    %s45 = sphi 0, %s43
    %s46 = sphi 0, %s45
    %s60 = sphi 0, %s46
    %s64 = sphi 0, %s64
    %s66 = sphi 0, %s64
    %s67 = sphi 0, %s66
    %s81 = sphi 0, %s67
    %s87 = sphi 0, %s89
    %s90 = sphi 0, %s87
    %s91 = sphi 0, %s90
    %s107 = sphi 0, %s91
  $region4: #{basic_block_forward.5} parent=0 // loop_header_branch
    %12 = sbr.rel (%p10) target = $region8
  $region5: #{basic_block_forward.5} parent=0 // loop_body
    %s14 = ssub.s32 %s9, 1
    %s15 = ssub.s32 %s9, 2
    %s16 = sadd.s32 %s9, 1
    %s17 = ssub.s32 %s9, %s16
    %p18 = scmp.eq.s32.totalorder %s17, 0
    %s20 = sadd.s32 %s19, 1
    %s21 = scalar_select %p18, %s19, %s20
    %p24 = pneg %p18
    %p25 = scmp.eq.s32.totalorder %s9, 1
    %p26 = por %p24, %p25
    %p27 = scmp.ne.s32.totalorder %s19, %s22
    %p28 = scmp.eq.s32.totalorder %s9, 0
    %p29 = por %p27, %p28
    %p30 = scmp.ne.s32.totalorder %s19, %s22
    %p31 = scmp.eq.s32.totalorder %s14, 1
    %p32 = por %p30, %p31
    %p33 = scmp.ne.s32.totalorder %s22, %s23
    %p34 = scmp.eq.s32.totalorder %s14, 0
    %p35 = por %p33, %p34
    %p36 = scmp.ne.s32.totalorder %s22, %s23
    %p37 = scmp.eq.s32.totalorder %s15, 1
    %p38 = por %p36, %p37
    %p40 = scmp.ne.s32.totalorder %s23, %s39
    %p41 = scmp.eq.s32.totalorder %s15, 0
    %p42 = por %p40, %p41
    %s44 = sadd.s32 %s43, 1
    %p47 = scmp.eq.s32.totalorder %s9, 1
    %p48 = scmp.ne.s32.totalorder %s43, %s45
    %p49 = scmp.eq.s32.totalorder %s9, 0
    %p50 = por %p48, %p49
    %p51 = scmp.ne.s32.totalorder %s43, %s45
    %p52 = scmp.eq.s32.totalorder %s14, 1
    %p53 = por %p51, %p52
    %p54 = scmp.ne.s32.totalorder %s45, %s46
    %p55 = scmp.eq.s32.totalorder %s14, 0
    %p56 = por %p54, %p55
    %p57 = scmp.ne.s32.totalorder %s45, %s46
    %p58 = scmp.eq.s32.totalorder %s15, 1
    %p59 = por %p57, %p58
    %p61 = scmp.ne.s32.totalorder %s46, %s60
    %p62 = scmp.eq.s32.totalorder %s15, 0
    %p63 = por %p61, %p62
    %s65 = sadd.s32 %s64, 1
    %p68 = scmp.eq.s32.totalorder %s9, 1
    %p69 = scmp.ne.s32.totalorder %s64, %s66
    %p70 = scmp.eq.s32.totalorder %s9, 0
    %p71 = por %p69, %p70
    %p72 = scmp.ne.s32.totalorder %s64, %s66
    %p73 = scmp.eq.s32.totalorder %s14, 1
    %p74 = por %p72, %p73
    %p75 = scmp.ne.s32.totalorder %s66, %s67
    %p76 = scmp.eq.s32.totalorder %s14, 0
    %p77 = por %p75, %p76
    %p78 = scmp.ne.s32.totalorder %s66, %s67
    %p79 = scmp.eq.s32.totalorder %s15, 1
    %p80 = por %p78, %p79
    %p82 = scmp.ne.s32.totalorder %s67, %s81
    %p83 = scmp.eq.s32.totalorder %s15, 0
    %p84 = por %p82, %p83
    %s85 = ssub.s32 %s9, %s16
    %p86 = scmp.eq.s32.totalorder %s85, 0
    %s88 = sadd.s32 %s87, 1
    %s89 = scalar_select %p86, %s87, %s88
    %p92 = pneg %p86
    %p93 = scmp.eq.s32.totalorder %s9, 1
    %p94 = por %p92, %p93
    %p95 = scmp.ne.s32.totalorder %s87, %s90
    %p96 = scmp.eq.s32.totalorder %s9, 0
    %p97 = por %p95, %p96
    %p98 = scmp.ne.s32.totalorder %s87, %s90
    %p99 = scmp.eq.s32.totalorder %s14, 1
    %p100 = por %p98, %p99
    %p101 = scmp.ne.s32.totalorder %s90, %s91
    %p102 = scmp.eq.s32.totalorder %s14, 0
    %p103 = por %p101, %p102
    %p104 = scmp.ne.s32.totalorder %s90, %s91
    %p105 = scmp.eq.s32.totalorder %s15, 1
    %p106 = por %p104, %p105
    %p108 = scmp.ne.s32.totalorder %s91, %s107
    %p109 = scmp.eq.s32.totalorder %s15, 0
    %p110 = por %p108, %p109
    %p111 = scmp.le.s32.totalorder 1, %s9
    %p112 = scmp.lt.s32.totalorder %s9, 3
    %p113 = pnand %p111, %p112
    %p114 = pneg %p113
    // Predicated region
    $region9: #{basic_block_forward.5} parent=5 // pred_check
      _
    $region10: #{basic_block_forward.5} parent=5 // pred_check_branch
      %116 = sbr.rel (%p113) target = $region12
    $region11: #{basic_block_forward.5} parent=5 // pred_region
      %s117 = ssub.s32 %s9, 1
      // Predicated region
      $region13: #{basic_block_forward.5} parent=11 // pred_check
        %p118 = pneg %p56
      $region14: #{basic_block_forward.5} parent=11 // pred_check_branch
        %120 = sbr.rel (%p118) target = $region16
      $region15: #{basic_block_forward.5} parent=11 // pred_region
        _
      $region16: #{basic_block_forward.5} parent=11 // pred_fallthru
        _
      // Predicated region
      $region17: #{basic_block_forward.5} parent=11 // pred_check
        %p121 = pneg %p77
      $region18: #{basic_block_forward.5} parent=11 // pred_check_branch
        %123 = sbr.rel (%p121) target = $region20
      $region19: #{basic_block_forward.5} parent=11 // pred_region
        _
      $region20: #{basic_block_forward.5} parent=11 // pred_fallthru
        _
    $region12: #{basic_block_forward.5} parent=5 // pred_fallthru
      _
    %p124 = scmp.lt.s32.totalorder %s9, 2
    // Predicated region
    $region21: #{basic_block_forward.5} parent=5 // pred_check
      %p125 = pneg %p124
    $region22: #{basic_block_forward.5} parent=5 // pred_check_branch
      %127 = sbr.rel (%p125) target = $region24
    $region23: #{basic_block_forward.5} parent=5 // pred_region
      // Predicated region
      $region25: #{basic_block_forward.5} parent=23 // pred_check
        %p128 = pneg %p29
      $region26: #{basic_block_forward.5} parent=23 // pred_check_branch
        %130 = sbr.rel (%p128) target = $region28
      $region27: #{basic_block_forward.5} parent=23 // pred_region
        %p131 = scmp.lt.s32.totalorder %s9, 1
        %s132 = scalar_select %p131, %s9, 1
        %s133 = smul.addr %s132, 48
        %s134 = smul.addr %s133, 4
        %s135 = scalar_lea.vmem %s0, %s134
      $region28: #{basic_block_forward.5} parent=23 // pred_fallthru
        _
    $region24: #{basic_block_forward.5} parent=5 // pred_fallthru
      _
    %p136 = scmp.le.s32.totalorder 1, %s9
    %p137 = scmp.lt.s32.totalorder %s9, 3
    %p138 = pnand %p136, %p137
    %p139 = pneg %p138
    // Predicated region
    $region29: #{basic_block_forward.5} parent=5 // pred_check
      _
    $region30: #{basic_block_forward.5} parent=5 // pred_check_branch
      %141 = sbr.rel (%p138) target = $region32
    $region31: #{basic_block_forward.5} parent=5 // pred_region
      %s142 = ssub.s32 %s9, 1
      %p143 = scmp.lt.s32.totalorder %s14, 1
      %s144 = scalar_select %p143, %s14, 1
      %s145 = smul.addr %s144, 48
      %s146 = smul.addr %s145, 4
      %s147 = scalar_lea.vmem %s0, %s146
      %p148 = pneg %p35
      %p149 = pneg %p32
      %p150 = pneg %p56
      %p151 = pneg %p53
      %p152 = pneg %p77
      %p153 = pneg %p74
      %p154 = pneg %p103
      %p155 = pneg %p100
      %p156 = scmp.lt.s32.totalorder %s14, 1
      %s157 = scalar_select %p156, %s14, 1
      %s158 = smul.addr %s157, 54
      %s159 = smul.addr %s158, 4
      %s160 = scalar_lea.vmem %s3, %s159
      %p161 = scmp.lt.s32.totalorder %s14, 1
      %s162 = scalar_select %p161, %s14, 1
      %s163 = smul.addr %s162, 48
      %s164 = smul.addr %s163, 4
      %s165 = scalar_lea.vmem %s0, %s164
      %p166 = scmp.lt.s32.totalorder %s14, 1
      %s167 = scalar_select %p166, %s14, 1
      %s168 = smul.addr %s167, 54
      %s169 = smul.addr %s168, 4
      %s170 = scalar_lea.vmem %s3, %s169
      %v171 = vld [vmem:[%s165] sm:$0xf]
      %v172 = vld [vmem:[%s165 + $0x4] sm:$0xf]
      %v173 = vld [vmem:[%s165 + $0x8] sm:$0xf]
      %v174 = vld [vmem:[%s165 + $0xc] sm:$0xf]
      %v175 = vld [vmem:[%s165 + $0x10] sm:$0xf]
      %v176 = vld [vmem:[%s165 + $0x14] sm:$0xf]
      %v177 = vld [vmem:[%s165 + $0x18] sm:$0xf]
      %v178 = vld [vmem:[%s165 + $0x1c] sm:$0xf]
      %v179 = vld [vmem:[%s165 + $0x20] sm:$0xf]
      %v180 = vld [vmem:[%s165 + $0x24] sm:$0xf]
      %v181 = vld [vmem:[%s165 + $0x28] sm:$0xf]
      %v182 = vld [vmem:[%s165 + $0x2c] sm:$0xf]
      %v183 = vld [vmem:[%s165 + $0x30] sm:$0xf]
      %v184 = vld [vmem:[%s165 + $0x34] sm:$0xf]
      %v185 = vld [vmem:[%s165 + $0x38] sm:$0xf]
      %v186 = vld [vmem:[%s165 + $0x3c] sm:$0xf]
      %v187 = vld [vmem:[%s165 + $0x40] sm:$0xf]
      %v188 = vld [vmem:[%s165 + $0x44] sm:$0xf]
      %v189 = vld [vmem:[%s165 + $0x48] sm:$0xf]
      %v190 = vld [vmem:[%s165 + $0x4c] sm:$0xf]
      %v191 = vld [vmem:[%s165 + $0x50] sm:$0xf]
      %v192 = vld [vmem:[%s165 + $0x54] sm:$0xf]
      %v193 = vld [vmem:[%s165 + $0x58] sm:$0xf]
      %v194 = vld [vmem:[%s165 + $0x5c] sm:$0xf]
      %v195 = vld [vmem:[%s165 + $0x60] sm:$0xf]
      %v196 = vld [vmem:[%s165 + $0x64] sm:$0xf]
      %v197 = vld [vmem:[%s165 + $0x68] sm:$0xf]
      %v198 = vld [vmem:[%s165 + $0x6c] sm:$0xf]
      %v199 = vld [vmem:[%s165 + $0x70] sm:$0xf]
      %v200 = vld [vmem:[%s165 + $0x74] sm:$0xf]
      %v201 = vld [vmem:[%s165 + $0x78] sm:$0xf]
      %v202 = vld [vmem:[%s165 + $0x7c] sm:$0xf]
      %v203 = vld [vmem:[%s165 + $0x80] sm:$0xf]
      %v204 = vld [vmem:[%s165 + $0x84] sm:$0xf]
      %v205 = vld [vmem:[%s165 + $0x88] sm:$0xf]
      %v206 = vld [vmem:[%s165 + $0x8c] sm:$0xf]
      %v207 = vld [vmem:[%s165 + $0x90] sm:$0xf]
      %v208 = vld [vmem:[%s165 + $0x94] sm:$0xf]
      %v209 = vld [vmem:[%s165 + $0x98] sm:$0xf]
      %v210 = vld [vmem:[%s165 + $0x9c] sm:$0xf]
      %v211 = vld [vmem:[%s165 + $0xa0] sm:$0xf]
      %v212 = vld [vmem:[%s165 + $0xa4] sm:$0xf]
      %v213 = vld [vmem:[%s165 + $0xa8] sm:$0xf]
      %v214 = vld [vmem:[%s165 + $0xac] sm:$0xf]
      %v215 = vld [vmem:[%s165 + $0xb0] sm:$0xf]
      %v216 = vld [vmem:[%s165 + $0xb4] sm:$0xf]
      %v217 = vld [vmem:[%s165 + $0xb8] sm:$0xf]
      %v218 = vld [vmem:[%s165 + $0xbc] sm:$0xf]
      %v219 = vunpack.c.l.bf16 %v171
      %v220 = vunpack.c.l.bf16 %v172
      %v221 = vunpack.c.l.bf16 %v173
      %v222 = vunpack.c.l.bf16 %v174
      %v223 = vunpack.c.l.bf16 %v175
      %v224 = vunpack.c.l.bf16 %v176
      %v225 = vunpack.c.l.bf16 %v177
      %v226 = vunpack.c.l.bf16 %v178
      %v227 = vunpack.c.l.bf16 %v179
      %v228 = vunpack.c.l.bf16 %v180
      %v229 = vunpack.c.l.bf16 %v181
      %v230 = vunpack.c.l.bf16 %v182
      %v231 = vunpack.c.l.bf16 %v183
      %v232 = vunpack.c.l.bf16 %v184
      %v233 = vunpack.c.l.bf16 %v185
      %v234 = vunpack.c.l.bf16 %v186
      %v235 = vunpack.c.l.bf16 %v187
      %v236 = vunpack.c.l.bf16 %v188
      %v237 = vunpack.c.l.bf16 %v189
      %v238 = vunpack.c.l.bf16 %v190
      %v239 = vunpack.c.l.bf16 %v191
      %v240 = vunpack.c.l.bf16 %v192
      %v241 = vunpack.c.l.bf16 %v193
      %v242 = vunpack.c.l.bf16 %v194
      %v243 = vunpack.c.l.bf16 %v195
      %v244 = vunpack.c.l.bf16 %v196
      %v245 = vunpack.c.l.bf16 %v197
      %v246 = vunpack.c.l.bf16 %v198
      %v247 = vunpack.c.l.bf16 %v199
      %v248 = vunpack.c.l.bf16 %v200
      %v249 = vunpack.c.l.bf16 %v201
      %v250 = vunpack.c.l.bf16 %v202
      %v251 = vunpack.c.l.bf16 %v203
      %v252 = vunpack.c.l.bf16 %v204
      %v253 = vunpack.c.l.bf16 %v205
      %v254 = vunpack.c.l.bf16 %v206
      %v255 = vunpack.c.l.bf16 %v207
      %v256 = vunpack.c.l.bf16 %v208
      %v257 = vunpack.c.l.bf16 %v209
      %v258 = vunpack.c.l.bf16 %v210
      %v259 = vunpack.c.l.bf16 %v211
      %v260 = vunpack.c.l.bf16 %v212
      %v261 = vunpack.c.l.bf16 %v213
      %v262 = vunpack.c.l.bf16 %v214
      %v263 = vunpack.c.l.bf16 %v215
      %v264 = vunpack.c.l.bf16 %v216
      %v265 = vunpack.c.l.bf16 %v217
      %v266 = vunpack.c.l.bf16 %v218
      %v267 = vld [vmem:[%s1] sm:$0x1]
      %v269 = vlaneseq
      %v270 = vshrl.u32 %v269, 7
      %v271 = vsub.s32 0, %v270
      %v272 = vrot.slane %v267, %v271
      %v274 = vmul.f32 %v219, %v272
      %v275 = vmul.f32 %v220, %v272
      %v276 = vmul.f32 %v221, %v272
      %v277 = vmul.f32 %v222, %v272
      %v278 = vmul.f32 %v223, %v272
      %v279 = vmul.f32 %v224, %v272
      %v280 = vmul.f32 %v225, %v272
      %v281 = vmul.f32 %v226, %v272
      %v282 = vmul.f32 %v227, %v272
      %v283 = vmul.f32 %v228, %v272
      %v284 = vmul.f32 %v229, %v272
      %v285 = vmul.f32 %v230, %v272
      %v286 = vmul.f32 %v231, %v272
      %v287 = vmul.f32 %v232, %v272
      %v288 = vmul.f32 %v233, %v272
      %v289 = vmul.f32 %v234, %v272
      %v290 = vmul.f32 %v235, %v272
      %v291 = vmul.f32 %v236, %v272
      %v292 = vmul.f32 %v237, %v272
      %v293 = vmul.f32 %v238, %v272
      %v294 = vmul.f32 %v239, %v272
      %v295 = vmul.f32 %v240, %v272
      %v296 = vmul.f32 %v241, %v272
      %v297 = vmul.f32 %v242, %v272
      %v298 = vmul.f32 %v243, %v272
      %v299 = vmul.f32 %v244, %v272
      %v300 = vmul.f32 %v245, %v272
      %v301 = vmul.f32 %v246, %v272
      %v302 = vmul.f32 %v247, %v272
      %v303 = vmul.f32 %v248, %v272
      %v304 = vmul.f32 %v249, %v272
      %v305 = vmul.f32 %v250, %v272
      %v306 = vmul.f32 %v251, %v272
      %v307 = vmul.f32 %v252, %v272
      %v308 = vmul.f32 %v253, %v272
      %v309 = vmul.f32 %v254, %v272
      %v310 = vmul.f32 %v255, %v272
      %v311 = vmul.f32 %v256, %v272
      %v312 = vmul.f32 %v257, %v272
      %v313 = vmul.f32 %v258, %v272
      %v314 = vmul.f32 %v259, %v272
      %v315 = vmul.f32 %v260, %v272
      %v316 = vmul.f32 %v261, %v272
      %v317 = vmul.f32 %v262, %v272
      %v318 = vmul.f32 %v263, %v272
      %v319 = vmul.f32 %v264, %v272
      %v320 = vmul.f32 %v265, %v272
      %v321 = vmul.f32 %v266, %v272
      %v322 = vld [vmem:[%s2] sm:$0x1]
      %v324 = vlaneseq
      %v325 = vshrl.u32 %v324, 7
      %v326 = vsub.s32 0, %v325
      %v327 = vrot.slane %v322, %v326
      %v329 = vadd.f32 %v274, %v327
      %v330 = vadd.f32 %v275, %v327
      %v331 = vadd.f32 %v276, %v327
      %v332 = vadd.f32 %v277, %v327
      %v333 = vadd.f32 %v278, %v327
      %v334 = vadd.f32 %v279, %v327
      %v335 = vadd.f32 %v280, %v327
      %v336 = vadd.f32 %v281, %v327
      %v337 = vadd.f32 %v282, %v327
      %v338 = vadd.f32 %v283, %v327
      %v339 = vadd.f32 %v284, %v327
      %v340 = vadd.f32 %v285, %v327
      %v341 = vadd.f32 %v286, %v327
      %v342 = vadd.f32 %v287, %v327
      %v343 = vadd.f32 %v288, %v327
      %v344 = vadd.f32 %v289, %v327
      %v345 = vadd.f32 %v290, %v327
      %v346 = vadd.f32 %v291, %v327
      %v347 = vadd.f32 %v292, %v327
      %v348 = vadd.f32 %v293, %v327
      %v349 = vadd.f32 %v294, %v327
      %v350 = vadd.f32 %v295, %v327
      %v351 = vadd.f32 %v296, %v327
      %v352 = vadd.f32 %v297, %v327
      %v353 = vadd.f32 %v298, %v327
      %v354 = vadd.f32 %v299, %v327
      %v355 = vadd.f32 %v300, %v327
      %v356 = vadd.f32 %v301, %v327
      %v357 = vadd.f32 %v302, %v327
      %v358 = vadd.f32 %v303, %v327
      %v359 = vadd.f32 %v304, %v327
      %v360 = vadd.f32 %v305, %v327
      %v361 = vadd.f32 %v306, %v327
      %v362 = vadd.f32 %v307, %v327
      %v363 = vadd.f32 %v308, %v327
      %v364 = vadd.f32 %v309, %v327
      %v365 = vadd.f32 %v310, %v327
      %v366 = vadd.f32 %v311, %v327
      %v367 = vadd.f32 %v312, %v327
      %v368 = vadd.f32 %v313, %v327
      %v369 = vadd.f32 %v314, %v327
      %v370 = vadd.f32 %v315, %v327
      %v371 = vadd.f32 %v316, %v327
      %v372 = vadd.f32 %v317, %v327
      %v373 = vadd.f32 %v318, %v327
      %v374 = vadd.f32 %v319, %v327
      %v375 = vadd.f32 %v320, %v327
      %v376 = vadd.f32 %v321, %v327
      %v377 = vmax.f32 %v329, 0.0
      %v378 = vmax.f32 %v330, 0.0
      %v379 = vmax.f32 %v331, 0.0
      %v380 = vmax.f32 %v332, 0.0
      %v381 = vmax.f32 %v333, 0.0
      %v382 = vmax.f32 %v334, 0.0
      %v383 = vmax.f32 %v335, 0.0
      %v384 = vmax.f32 %v336, 0.0
      %v385 = vmax.f32 %v337, 0.0
      %v386 = vmax.f32 %v338, 0.0
      %v387 = vmax.f32 %v339, 0.0
      %v388 = vmax.f32 %v340, 0.0
      %v389 = vmax.f32 %v341, 0.0
      %v390 = vmax.f32 %v342, 0.0
      %v391 = vmax.f32 %v343, 0.0
      %v392 = vmax.f32 %v344, 0.0
      %v393 = vmax.f32 %v345, 0.0
      %v394 = vmax.f32 %v346, 0.0
      %v395 = vmax.f32 %v347, 0.0
      %v396 = vmax.f32 %v348, 0.0
      %v397 = vmax.f32 %v349, 0.0
      %v398 = vmax.f32 %v350, 0.0
      %v399 = vmax.f32 %v351, 0.0
      %v400 = vmax.f32 %v352, 0.0
      %v401 = vmax.f32 %v353, 0.0
      %v402 = vmax.f32 %v354, 0.0
      %v403 = vmax.f32 %v355, 0.0
      %v404 = vmax.f32 %v356, 0.0
      %v405 = vmax.f32 %v357, 0.0
      %v406 = vmax.f32 %v358, 0.0
      %v407 = vmax.f32 %v359, 0.0
      %v408 = vmax.f32 %v360, 0.0
      %v409 = vmax.f32 %v361, 0.0
      %v410 = vmax.f32 %v362, 0.0
      %v411 = vmax.f32 %v363, 0.0
      %v412 = vmax.f32 %v364, 0.0
      %v413 = vmax.f32 %v365, 0.0
      %v414 = vmax.f32 %v366, 0.0
      %v415 = vmax.f32 %v367, 0.0
      %v416 = vmax.f32 %v368, 0.0
      %v417 = vmax.f32 %v369, 0.0
      %v418 = vmax.f32 %v370, 0.0
      %v419 = vmax.f32 %v371, 0.0
      %v420 = vmax.f32 %v372, 0.0
      %v421 = vmax.f32 %v373, 0.0
      %v422 = vmax.f32 %v374, 0.0
      %v423 = vmax.f32 %v375, 0.0
      %v424 = vmax.f32 %v376, 0.0
      %v425 = vlaneseq
      %v426 = vshrl.u32 %v425, 7
      %v427 = vadd.s32 %v426, 8
      %v428 = vadd.s32 %v426, 16
      %vm429 = vcmp.ge.s32.totalorder %v426, 1
      %vm430 = vcmp.ge.s32.totalorder %v427, 1
      %vm431 = vcmp.ge.s32.totalorder %v428, 1
      %vm432 = vcmp.le.s32.totalorder %v426, 16
      %vm433 = vcmp.le.s32.totalorder %v427, 16
      %vm434 = vcmp.le.s32.totalorder %v428, 16
      %vm435 = vmand %vm429, %vm432
      %vm436 = vmand %vm430, %vm433
      %vm437 = vmand %vm431, %vm434
      %v438 = vsel %vm435, %v377, 0.0
      %v439 = vsel %vm436, %v378, 0.0
      %v440 = vsel %vm437, %v379, 0.0
      %v441 = vsel %vm435, %v380, 0.0
      %v442 = vsel %vm436, %v381, 0.0
      %v443 = vsel %vm437, %v382, 0.0
      %v444 = vsel %vm435, %v383, 0.0
      %v445 = vsel %vm436, %v384, 0.0
      %v446 = vsel %vm437, %v385, 0.0
      %v447 = vsel %vm435, %v386, 0.0
      %v448 = vsel %vm436, %v387, 0.0
      %v449 = vsel %vm437, %v388, 0.0
      %v450 = vsel %vm435, %v389, 0.0
      %v451 = vsel %vm436, %v390, 0.0
      %v452 = vsel %vm437, %v391, 0.0
      %v453 = vsel %vm435, %v392, 0.0
      %v454 = vsel %vm436, %v393, 0.0
      %v455 = vsel %vm437, %v394, 0.0
      %v456 = vsel %vm435, %v395, 0.0
      %v457 = vsel %vm436, %v396, 0.0
      %v458 = vsel %vm437, %v397, 0.0
      %v459 = vsel %vm435, %v398, 0.0
      %v460 = vsel %vm436, %v399, 0.0
      %v461 = vsel %vm437, %v400, 0.0
      %v462 = vsel %vm435, %v401, 0.0
      %v463 = vsel %vm436, %v402, 0.0
      %v464 = vsel %vm437, %v403, 0.0
      %v465 = vsel %vm435, %v404, 0.0
      %v466 = vsel %vm436, %v405, 0.0
      %v467 = vsel %vm437, %v406, 0.0
      %v468 = vsel %vm435, %v407, 0.0
      %v469 = vsel %vm436, %v408, 0.0
      %v470 = vsel %vm437, %v409, 0.0
      %v471 = vsel %vm435, %v410, 0.0
      %v472 = vsel %vm436, %v411, 0.0
      %v473 = vsel %vm437, %v412, 0.0
      %v474 = vsel %vm435, %v413, 0.0
      %v475 = vsel %vm436, %v414, 0.0
      %v476 = vsel %vm437, %v415, 0.0
      %v477 = vsel %vm435, %v416, 0.0
      %v478 = vsel %vm436, %v417, 0.0
      %v479 = vsel %vm437, %v418, 0.0
      %v480 = vsel %vm435, %v419, 0.0
      %v481 = vsel %vm436, %v420, 0.0
      %v482 = vsel %vm437, %v421, 0.0
      %v483 = vsel %vm435, %v422, 0.0
      %v484 = vsel %vm436, %v423, 0.0
      %v485 = vsel %vm437, %v424, 0.0
      %v486 = vpack.c.bf16 0.0, 0.0
      %v487 = vpack.c.bf16 %v438, 0.0
      %v488 = vpack.c.bf16 %v440, %v439
      %v489 = vpack.c.bf16 %v442, %v441
      %v490 = vpack.c.bf16 %v444, %v443
      %v491 = vpack.c.bf16 %v446, %v445
      %v492 = vpack.c.bf16 %v448, %v447
      %v493 = vpack.c.bf16 %v450, %v449
      %v494 = vpack.c.bf16 %v452, %v451
      %v495 = vpack.c.bf16 %v454, %v453
      %v496 = vpack.c.bf16 %v456, %v455
      %v497 = vpack.c.bf16 %v458, %v457
      %v498 = vpack.c.bf16 %v460, %v459
      %v499 = vpack.c.bf16 %v462, %v461
      %v500 = vpack.c.bf16 %v464, %v463
      %v501 = vpack.c.bf16 %v466, %v465
      %v502 = vpack.c.bf16 %v468, %v467
      %v503 = vpack.c.bf16 %v470, %v469
      %v504 = vpack.c.bf16 %v472, %v471
      %v505 = vpack.c.bf16 %v474, %v473
      %v506 = vpack.c.bf16 %v476, %v475
      %v507 = vpack.c.bf16 %v478, %v477
      %v508 = vpack.c.bf16 %v480, %v479
      %v509 = vpack.c.bf16 %v482, %v481
      %v510 = vpack.c.bf16 %v484, %v483
      %v511 = vpack.c.bf16 0.0, %v485
      %v538 = vunpack.c.l.b16 %v486
      %v539 = vunpack.c.h.b16 %v486
      %v540 = vunpack.c.l.b16 %v487
      %v541 = vunpack.c.h.b16 %v487
      %v542 = vunpack.c.l.b16 %v488
      %v543 = vunpack.c.h.b16 %v488
      %v544 = vunpack.c.l.b16 %v489
      %v545 = vunpack.c.h.b16 %v489
      %v546 = vunpack.c.l.b16 %v490
      %v547 = vunpack.c.h.b16 %v490
      %v548 = vunpack.c.l.b16 %v491
      %v549 = vunpack.c.h.b16 %v491
      %v550 = vunpack.c.l.b16 %v492
      %v551 = vunpack.c.h.b16 %v492
      %v552 = vunpack.c.l.b16 %v493
      %v553 = vunpack.c.h.b16 %v493
      %v554 = vunpack.c.l.b16 %v494
      %v555 = vunpack.c.h.b16 %v494
      %v556 = vunpack.c.l.b16 %v495
      %v557 = vunpack.c.h.b16 %v495
      %v558 = vunpack.c.l.b16 %v496
      %v559 = vunpack.c.h.b16 %v496
      %v560 = vunpack.c.l.b16 %v497
      %v561 = vunpack.c.h.b16 %v497
      %v562 = vunpack.c.l.b16 %v498
      %v563 = vunpack.c.h.b16 %v498
      %v564 = vunpack.c.l.b16 %v499
      %v565 = vunpack.c.h.b16 %v499
      %v566 = vunpack.c.l.b16 %v500
      %v567 = vunpack.c.h.b16 %v500
      %v568 = vunpack.c.l.b16 %v501
      %v569 = vunpack.c.h.b16 %v501
      %v570 = vunpack.c.l.b16 %v502
      %v571 = vunpack.c.h.b16 %v502
      %v572 = vunpack.c.l.b16 %v503
      %v573 = vunpack.c.h.b16 %v503
      %v574 = vunpack.c.l.b16 %v504
      %v575 = vunpack.c.h.b16 %v504
      %v576 = vunpack.c.l.b16 %v505
      %v577 = vunpack.c.h.b16 %v505
      %v578 = vunpack.c.l.b16 %v506
      %v579 = vunpack.c.h.b16 %v506
      %v580 = vunpack.c.l.b16 %v507
      %v581 = vunpack.c.h.b16 %v507
      %v582 = vunpack.c.l.b16 %v508
      %v583 = vunpack.c.h.b16 %v508
      %v584 = vunpack.c.l.b16 %v509
      %v585 = vunpack.c.h.b16 %v509
      %v586 = vunpack.c.l.b16 %v510
      %v587 = vunpack.c.h.b16 %v510
      %v588 = vunpack.c.l.b16 %v511
      %v589 = vunpack.c.h.b16 %v511
      %v590 = vpack.c.b16 %v538, %v538
      %v591 = vpack.c.b16 %v539, %v539
      %v592 = vpack.c.b16 %v540, %v540
      %v593 = vpack.c.b16 %v541, %v541
      %v594 = vpack.c.b16 %v542, %v542
      %v595 = vpack.c.b16 %v543, %v543
      %v596 = vpack.c.b16 %v544, %v544
      %v597 = vpack.c.b16 %v545, %v545
      %v598 = vpack.c.b16 %v546, %v546
      %v599 = vpack.c.b16 %v547, %v547
      %v600 = vpack.c.b16 %v548, %v548
      %v601 = vpack.c.b16 %v549, %v549
      %v602 = vpack.c.b16 %v550, %v550
      %v603 = vpack.c.b16 %v551, %v551
      %v604 = vpack.c.b16 %v552, %v552
      %v605 = vpack.c.b16 %v553, %v553
      %v606 = vpack.c.b16 %v554, %v554
      %v607 = vpack.c.b16 %v555, %v555
      %v608 = vpack.c.b16 %v556, %v556
      %v609 = vpack.c.b16 %v557, %v557
      %v610 = vpack.c.b16 %v558, %v558
      %v611 = vpack.c.b16 %v559, %v559
      %v612 = vpack.c.b16 %v560, %v560
      %v613 = vpack.c.b16 %v561, %v561
      %v614 = vpack.c.b16 %v562, %v562
      %v615 = vpack.c.b16 %v563, %v563
      %v616 = vpack.c.b16 %v564, %v564
      %v617 = vpack.c.b16 %v565, %v565
      %v618 = vpack.c.b16 %v566, %v566
      %v619 = vpack.c.b16 %v567, %v567
      %v620 = vpack.c.b16 %v568, %v568
      %v621 = vpack.c.b16 %v569, %v569
      %v622 = vpack.c.b16 %v570, %v570
      %v623 = vpack.c.b16 %v571, %v571
      %v624 = vpack.c.b16 %v572, %v572
      %v625 = vpack.c.b16 %v573, %v573
      %v626 = vpack.c.b16 %v574, %v574
      %v627 = vpack.c.b16 %v575, %v575
      %v628 = vpack.c.b16 %v576, %v576
      %v629 = vpack.c.b16 %v577, %v577
      %v630 = vpack.c.b16 %v578, %v578
      %v631 = vpack.c.b16 %v579, %v579
      %v632 = vpack.c.b16 %v580, %v580
      %v633 = vpack.c.b16 %v581, %v581
      %v634 = vpack.c.b16 %v582, %v582
      %v635 = vpack.c.b16 %v583, %v583
      %v636 = vpack.c.b16 %v584, %v584
      %v637 = vpack.c.b16 %v585, %v585
      %v638 = vpack.c.b16 %v586, %v586
      %v639 = vpack.c.b16 %v587, %v587
      %v640 = vpack.c.b16 %v588, %v588
      %v641 = vpack.c.b16 %v589, %v589
      %694 = vst [vmem:[%s170] sm:$0xf] %v590
      %695 = vst [vmem:[%s170 + $0x4] sm:$0xf] %v591
      %696 = vst [vmem:[%s170 + $0x8] sm:$0xf] %v592
      %697 = vst [vmem:[%s170 + $0xc] sm:$0xf] %v593
      %698 = vst [vmem:[%s170 + $0x10] sm:$0xf] %v594
      %699 = vst [vmem:[%s170 + $0x14] sm:$0xf] %v595
      %700 = vst [vmem:[%s170 + $0x18] sm:$0xf] %v596
      %701 = vst [vmem:[%s170 + $0x1c] sm:$0xf] %v597
      %702 = vst [vmem:[%s170 + $0x20] sm:$0xf] %v598
      %703 = vst [vmem:[%s170 + $0x24] sm:$0xf] %v599
      %704 = vst [vmem:[%s170 + $0x28] sm:$0xf] %v600
      %705 = vst [vmem:[%s170 + $0x2c] sm:$0xf] %v601
      %706 = vst [vmem:[%s170 + $0x30] sm:$0xf] %v602
      %707 = vst [vmem:[%s170 + $0x34] sm:$0xf] %v603
      %708 = vst [vmem:[%s170 + $0x38] sm:$0xf] %v604
      %709 = vst [vmem:[%s170 + $0x3c] sm:$0xf] %v605
      %710 = vst [vmem:[%s170 + $0x40] sm:$0xf] %v606
      %711 = vst [vmem:[%s170 + $0x44] sm:$0xf] %v607
      %712 = vst [vmem:[%s170 + $0x48] sm:$0xf] %v608
      %713 = vst [vmem:[%s170 + $0x4c] sm:$0xf] %v609
      %714 = vst [vmem:[%s170 + $0x50] sm:$0xf] %v610
      %715 = vst [vmem:[%s170 + $0x54] sm:$0xf] %v611
      %716 = vst [vmem:[%s170 + $0x58] sm:$0xf] %v612
      %717 = vst [vmem:[%s170 + $0x5c] sm:$0xf] %v613
      %718 = vst [vmem:[%s170 + $0x60] sm:$0xf] %v614
      %719 = vst [vmem:[%s170 + $0x64] sm:$0xf] %v615
      %720 = vst [vmem:[%s170 + $0x68] sm:$0xf] %v616
      %721 = vst [vmem:[%s170 + $0x6c] sm:$0xf] %v617
      %722 = vst [vmem:[%s170 + $0x70] sm:$0xf] %v618
      %723 = vst [vmem:[%s170 + $0x74] sm:$0xf] %v619
      %724 = vst [vmem:[%s170 + $0x78] sm:$0xf] %v620
      %725 = vst [vmem:[%s170 + $0x7c] sm:$0xf] %v621
      %726 = vst [vmem:[%s170 + $0x80] sm:$0xf] %v622
      %727 = vst [vmem:[%s170 + $0x84] sm:$0xf] %v623
      %728 = vst [vmem:[%s170 + $0x88] sm:$0xf] %v624
      %729 = vst [vmem:[%s170 + $0x8c] sm:$0xf] %v625
      %730 = vst [vmem:[%s170 + $0x90] sm:$0xf] %v626
      %731 = vst [vmem:[%s170 + $0x94] sm:$0xf] %v627
      %732 = vst [vmem:[%s170 + $0x98] sm:$0xf] %v628
      %733 = vst [vmem:[%s170 + $0x9c] sm:$0xf] %v629
      %734 = vst [vmem:[%s170 + $0xa0] sm:$0xf] %v630
      %735 = vst [vmem:[%s170 + $0xa4] sm:$0xf] %v631
      %736 = vst [vmem:[%s170 + $0xa8] sm:$0xf] %v632
      %737 = vst [vmem:[%s170 + $0xac] sm:$0xf] %v633
      %738 = vst [vmem:[%s170 + $0xb0] sm:$0xf] %v634
      %739 = vst [vmem:[%s170 + $0xb4] sm:$0xf] %v635
      %740 = vst [vmem:[%s170 + $0xb8] sm:$0xf] %v636
      %741 = vst [vmem:[%s170 + $0xbc] sm:$0xf] %v637
      %742 = vst [vmem:[%s170 + $0xc0] sm:$0xf] %v638
      %743 = vst [vmem:[%s170 + $0xc4] sm:$0xf] %v639
      %744 = vst [vmem:[%s170 + $0xc8] sm:$0xf] %v640
      %745 = vst [vmem:[%s170 + $0xcc] sm:$0xf] %v641
      %746 = vst [vmem:[%s170 + $0xd0] sm:$0xf] %v590
      %747 = vst [vmem:[%s170 + $0xd4] sm:$0xf] %v591
      %p748 = scmp.lt.s32.totalorder %s14, 1
      %s749 = scalar_select %p748, %s14, 1
      %s750 = smul.addr %s749, 54
      %s751 = smul.addr %s750, 4
      %s752 = scalar_lea.vmem %s3, %s751
      // Predicated region
      $region33: #{basic_block_forward.5} parent=31 // pred_check
        %p753 = pneg %p100
      $region34: #{basic_block_forward.5} parent=31 // pred_check_branch
        %755 = sbr.rel (%p753) target = $region36
      $region35: #{basic_block_forward.5} parent=31 // pred_region
        _
      $region36: #{basic_block_forward.5} parent=31 // pred_fallthru
        _
    $region32: #{basic_block_forward.5} parent=5 // pred_fallthru
      _
    %p756 = scmp.le.s32.totalorder 2, %s9
    // Predicated region
    $region37: #{basic_block_forward.5} parent=5 // pred_check
      %p757 = pneg %p756
    $region38: #{basic_block_forward.5} parent=5 // pred_check_branch
      %759 = sbr.rel (%p757) target = $region40
    $region39: #{basic_block_forward.5} parent=5 // pred_region
      %s760 = ssub.s32 %s9, 2
      // Predicated region
      $region41: #{basic_block_forward.5} parent=39 // pred_check
        %p761 = pneg %p106
      $region42: #{basic_block_forward.5} parent=39 // pred_check_branch
        %763 = sbr.rel (%p761) target = $region44
      $region43: #{basic_block_forward.5} parent=39 // pred_region
        %p764 = scmp.lt.s32.totalorder %s15, 1
        %s765 = scalar_select %p764, %s15, 1
        %s766 = smul.addr %s765, 54
        %s767 = smul.addr %s766, 4
        %s768 = scalar_lea.vmem %s3, %s767
      $region44: #{basic_block_forward.5} parent=39 // pred_fallthru
        _
    $region40: #{basic_block_forward.5} parent=5 // pred_fallthru
      _
  $region6: #{basic_block_forward.5} parent=0 // loop_footer
    %s13 = sadd.s32 1, %s9
  $region7: #{basic_block_forward.5} parent=0 // loop_footer_branch
    %8 = sbr.rel target = $region3
  $region8: #{basic_block_forward.5} parent=0 // loop_exit
    _

// kernel: basic_block_forward.4
$region0: #{basic_block_forward.4}
  #allocation0 [shape = 'u32[]', space=smem, size = 0x4, offset = 0x4, fixed_abs, tag = 'smem constant byte address 0x4 - core index']
  #allocation1 [shape = 'u32[144,128]{1,0:T(1,128)}', space=vmem, size = 0x12000, scoped, tag = 'internal scratch']
  %s0 = inlined_call_operand.vmem [shape: bf16[2,18,24,128], index: 0, kind: input, shape index: {}]
  %s1 = inlined_call_operand.vmem [shape: bf16[9,128,128], index: 1, kind: input, shape index: {}]
  %s2 = inlined_call_operand.vmem [shape: bf16[2,16,24,128], index: 2, kind: output, shape index: {0}]
  %s3 = inlined_call_operand.vmem [shape: f32[2,1,128], index: 3, kind: output, shape index: {1}]
  %s4 = inlined_call_operand.vmem [shape: f32[2,1,128], index: 4, kind: output, shape index: {2}]
  %5 = xla_tuple %s2, %s3, %s4
  %s6 = sld [smem:[#allocation0]]
  $region57: #{basic_block_forward.4} parent=0
    _
  %s8 = ssub.s32 1, %s6
  %s9 = scalar_select 0, %s8, %s6
  loop: start=0, step=1, limit=4
  $region2: #{basic_block_forward.4} parent=0 // loop_pre_header
    _
  $region3: #{basic_block_forward.4} parent=0 // loop_header
    %s11 = sphi 0, %s15
    %p12 = scmp.ge.s32.totalorder %s11, 4
    %s21 = sphi 0, %s23
    %s24 = sphi 0, %s21
    %s25 = sphi 0, %s24
    %s41 = sphi 0, %s25
    %s45 = sphi 0, %s45
    %s47 = sphi 0, %s45
    %s48 = sphi 0, %s47
    %s62 = sphi 0, %s48
    %s68 = sphi 0, %s70
    %s71 = sphi 0, %s68
    %s72 = sphi 0, %s71
    %s88 = sphi 0, %s72
    %s94 = sphi 0, %s96
    %s97 = sphi 0, %s94
    %s98 = sphi 0, %s97
    %s114 = sphi 0, %s98
    %s120 = sphi 0, %s122
    %s123 = sphi 0, %s120
    %s124 = sphi 0, %s123
    %s140 = sphi 0, %s124
  $region4: #{basic_block_forward.4} parent=0 // loop_header_branch
    %14 = sbr.rel (%p12) target = $region8
  $region5: #{basic_block_forward.4} parent=0 // loop_body
    %s16 = ssub.s32 %s11, 1
    %s17 = ssub.s32 %s11, 2
    %s18 = sadd.s32 %s11, 1
    %s19 = ssub.s32 %s11, %s18
    %p20 = scmp.eq.s32.totalorder %s19, 0
    %s22 = sadd.s32 %s21, 1
    %s23 = scalar_select %p20, %s21, %s22
    %p26 = pneg %p20
    %p27 = scmp.eq.s32.totalorder %s11, 1
    %p28 = por %p26, %p27
    %p29 = scmp.ne.s32.totalorder %s21, %s24
    %p30 = scmp.eq.s32.totalorder %s11, 0
    %p31 = por %p29, %p30
    %p32 = scmp.ne.s32.totalorder %s21, %s24
    %p33 = scmp.eq.s32.totalorder %s16, 1
    %p34 = por %p32, %p33
    %p35 = scmp.ne.s32.totalorder %s24, %s25
    %p36 = scmp.eq.s32.totalorder %s16, 0
    %p37 = por %p35, %p36
    %p38 = scmp.ne.s32.totalorder %s24, %s25
    %p39 = scmp.eq.s32.totalorder %s17, 1
    %p40 = por %p38, %p39
    %p42 = scmp.ne.s32.totalorder %s25, %s41
    %p43 = scmp.eq.s32.totalorder %s17, 0
    %p44 = por %p42, %p43
    %s46 = sadd.s32 %s45, 1
    %p49 = scmp.eq.s32.totalorder %s11, 1
    %p50 = scmp.ne.s32.totalorder %s45, %s47
    %p51 = scmp.eq.s32.totalorder %s11, 0
    %p52 = por %p50, %p51
    %p53 = scmp.ne.s32.totalorder %s45, %s47
    %p54 = scmp.eq.s32.totalorder %s16, 1
    %p55 = por %p53, %p54
    %p56 = scmp.ne.s32.totalorder %s47, %s48
    %p57 = scmp.eq.s32.totalorder %s16, 0
    %p58 = por %p56, %p57
    %p59 = scmp.ne.s32.totalorder %s47, %s48
    %p60 = scmp.eq.s32.totalorder %s17, 1
    %p61 = por %p59, %p60
    %p63 = scmp.ne.s32.totalorder %s48, %s62
    %p64 = scmp.eq.s32.totalorder %s17, 0
    %p65 = por %p63, %p64
    %s66 = ssub.s32 %s11, %s18
    %p67 = scmp.eq.s32.totalorder %s66, 0
    %s69 = sadd.s32 %s68, 1
    %s70 = scalar_select %p67, %s68, %s69
    %p73 = pneg %p67
    %p74 = scmp.eq.s32.totalorder %s11, 1
    %p75 = por %p73, %p74
    %p76 = scmp.ne.s32.totalorder %s68, %s71
    %p77 = scmp.eq.s32.totalorder %s11, 0
    %p78 = por %p76, %p77
    %p79 = scmp.ne.s32.totalorder %s68, %s71
    %p80 = scmp.eq.s32.totalorder %s16, 1
    %p81 = por %p79, %p80
    %p82 = scmp.ne.s32.totalorder %s71, %s72
    %p83 = scmp.eq.s32.totalorder %s16, 0
    %p84 = por %p82, %p83
    %p85 = scmp.ne.s32.totalorder %s71, %s72
    %p86 = scmp.eq.s32.totalorder %s17, 1
    %p87 = por %p85, %p86
    %p89 = scmp.ne.s32.totalorder %s72, %s88
    %p90 = scmp.eq.s32.totalorder %s17, 0
    %p91 = por %p89, %p90
    %s92 = ssub.s32 %s11, %s18
    %p93 = scmp.eq.s32.totalorder %s92, 0
    %s95 = sadd.s32 %s94, 1
    %s96 = scalar_select %p93, %s94, %s95
    %p99 = pneg %p93
    %p100 = scmp.eq.s32.totalorder %s11, 1
    %p101 = por %p99, %p100
    %p102 = scmp.ne.s32.totalorder %s94, %s97
    %p103 = scmp.eq.s32.totalorder %s11, 0
    %p104 = por %p102, %p103
    %p105 = scmp.ne.s32.totalorder %s94, %s97
    %p106 = scmp.eq.s32.totalorder %s16, 1
    %p107 = por %p105, %p106
    %p108 = scmp.ne.s32.totalorder %s97, %s98
    %p109 = scmp.eq.s32.totalorder %s16, 0
    %p110 = por %p108, %p109
    %p111 = scmp.ne.s32.totalorder %s97, %s98
    %p112 = scmp.eq.s32.totalorder %s17, 1
    %p113 = por %p111, %p112
    %p115 = scmp.ne.s32.totalorder %s98, %s114
    %p116 = scmp.eq.s32.totalorder %s17, 0
    %p117 = por %p115, %p116
    %s118 = ssub.s32 %s11, %s18
    %p119 = scmp.eq.s32.totalorder %s118, 0
    %s121 = sadd.s32 %s120, 1
    %s122 = scalar_select %p119, %s120, %s121
    %p125 = pneg %p119
    %p126 = scmp.eq.s32.totalorder %s11, 1
    %p127 = por %p125, %p126
    %p128 = scmp.ne.s32.totalorder %s120, %s123
    %p129 = scmp.eq.s32.totalorder %s11, 0
    %p130 = por %p128, %p129
    %p131 = scmp.ne.s32.totalorder %s120, %s123
    %p132 = scmp.eq.s32.totalorder %s16, 1
    %p133 = por %p131, %p132
    %p134 = scmp.ne.s32.totalorder %s123, %s124
    %p135 = scmp.eq.s32.totalorder %s16, 0
    %p136 = por %p134, %p135
    %p137 = scmp.ne.s32.totalorder %s123, %s124
    %p138 = scmp.eq.s32.totalorder %s17, 1
    %p139 = por %p137, %p138
    %p141 = scmp.ne.s32.totalorder %s124, %s140
    %p142 = scmp.eq.s32.totalorder %s17, 0
    %p143 = por %p141, %p142
    %p144 = scmp.le.s32.totalorder 1, %s11
    %p145 = scmp.lt.s32.totalorder %s11, 3
    %p146 = pnand %p144, %p145
    %p147 = pneg %p146
    // Predicated region
    $region9: #{basic_block_forward.4} parent=5 // pred_check
      _
    $region10: #{basic_block_forward.4} parent=5 // pred_check_branch
      %149 = sbr.rel (%p146) target = $region12
    $region11: #{basic_block_forward.4} parent=5 // pred_region
      %s150 = ssub.s32 %s11, 1
      // Predicated region
      $region13: #{basic_block_forward.4} parent=11 // pred_check
        %p151 = pneg %p58
      $region14: #{basic_block_forward.4} parent=11 // pred_check_branch
        %153 = sbr.rel (%p151) target = $region16
      $region15: #{basic_block_forward.4} parent=11 // pred_region
        _
      $region16: #{basic_block_forward.4} parent=11 // pred_fallthru
        _
    $region12: #{basic_block_forward.4} parent=5 // pred_fallthru
      _
    %p154 = scmp.lt.s32.totalorder %s11, 2
    // Predicated region
    $region17: #{basic_block_forward.4} parent=5 // pred_check
      %p155 = pneg %p154
    $region18: #{basic_block_forward.4} parent=5 // pred_check_branch
      %157 = sbr.rel (%p155) target = $region20
    $region19: #{basic_block_forward.4} parent=5 // pred_region
      // Predicated region
      $region21: #{basic_block_forward.4} parent=19 // pred_check
        %p158 = pneg %p31
      $region22: #{basic_block_forward.4} parent=19 // pred_check_branch
        %160 = sbr.rel (%p158) target = $region24
      $region23: #{basic_block_forward.4} parent=19 // pred_region
        %p161 = scmp.lt.s32.totalorder %s11, 1
        %s162 = scalar_select %p161, %s11, 1
        %s163 = smul.addr %s162, 54
        %s164 = smul.addr %s163, 4
        %s165 = scalar_lea.vmem %s0, %s164
      $region24: #{basic_block_forward.4} parent=19 // pred_fallthru
        _
    $region20: #{basic_block_forward.4} parent=5 // pred_fallthru
      _
    %p166 = scmp.le.s32.totalorder 1, %s11
    %p167 = scmp.lt.s32.totalorder %s11, 3
    %p168 = pnand %p166, %p167
    %p169 = pneg %p168
    // Predicated region
    $region25: #{basic_block_forward.4} parent=5 // pred_check
      _
    $region26: #{basic_block_forward.4} parent=5 // pred_check_branch
      %171 = sbr.rel (%p168) target = $region28
    $region27: #{basic_block_forward.4} parent=5 // pred_region
      %s172 = ssub.s32 %s11, 1
      %p173 = scmp.lt.s32.totalorder %s16, 1
      %s174 = scalar_select %p173, %s16, 1
      %s175 = smul.addr %s174, 54
      %s176 = smul.addr %s175, 4
      %s177 = scalar_lea.vmem %s0, %s176
      %p178 = pneg %p37
      %p179 = pneg %p34
      %p180 = pneg %p58
      %p181 = pneg %p55
      %p182 = pneg %p84
      %p183 = pneg %p81
      %p184 = scmp.lt.s32.totalorder %s16, 1
      %s185 = scalar_select %p184, %s16, 1
      %s186 = smul.addr %s185, 48
      %s187 = smul.addr %s186, 4
      %s188 = scalar_lea.vmem %s2, %s187
      %p189 = pneg %p110
      %p190 = pneg %p107
      %p191 = scmp.lt.s32.totalorder %s16, 1
      %s192 = scalar_select %p191, %s16, 1
      %s193 = scalar_lea.vmem %s3, %s192
      %p194 = pneg %p136
      %p195 = pneg %p133
      %p196 = scmp.lt.s32.totalorder %s16, 1
      %s197 = scalar_select %p196, %s16, 1
      %s198 = scalar_lea.vmem %s4, %s197
      %p199 = scmp.lt.s32.totalorder %s16, 1
      %s200 = scalar_select %p199, %s16, 1
      %s201 = smul.addr %s200, 54
      %s202 = smul.addr %s201, 4
      %s203 = scalar_lea.vmem %s0, %s202
      %p204 = scmp.lt.s32.totalorder %s16, 1
      %s205 = scalar_select %p204, %s16, 1
      %s206 = smul.addr %s205, 48
      %s207 = smul.addr %s206, 4
      %s208 = scalar_lea.vmem %s2, %s207
      %p209 = scmp.lt.s32.totalorder %s16, 1
      %s210 = scalar_select %p209, %s16, 1
      %s211 = scalar_lea.vmem %s3, %s210
      %p212 = scmp.lt.s32.totalorder %s16, 1
      %s213 = scalar_select %p212, %s16, 1
      %s214 = scalar_lea.vmem %s4, %s213
      %v216 = vld [vmem:[%s203] sm:$0xf]
      %v217 = vld [vmem:[%s203 + $0x4] sm:$0xf]
      %v218 = vld [vmem:[%s203 + $0x8] sm:$0xf]
      %v219 = vld [vmem:[%s203 + $0xc] sm:$0xf]
      %v220 = vld [vmem:[%s203 + $0x10] sm:$0xf]
      %v221 = vld [vmem:[%s203 + $0x14] sm:$0xf]
      %v222 = vld [vmem:[%s203 + $0x18] sm:$0xf]
      %v223 = vld [vmem:[%s203 + $0x1c] sm:$0xf]
      %v224 = vld [vmem:[%s203 + $0x20] sm:$0xf]
      %v225 = vld [vmem:[%s203 + $0x24] sm:$0xf]
      %v226 = vld [vmem:[%s203 + $0x28] sm:$0xf]
      %v227 = vld [vmem:[%s203 + $0x2c] sm:$0xf]
      %v228 = vld [vmem:[%s203 + $0x30] sm:$0xf]
      %v229 = vld [vmem:[%s203 + $0x34] sm:$0xf]
      %v230 = vld [vmem:[%s203 + $0x38] sm:$0xf]
      %v231 = vld [vmem:[%s203 + $0x3c] sm:$0xf]
      %v232 = vld [vmem:[%s203 + $0x40] sm:$0xf]
      %v233 = vld [vmem:[%s203 + $0x44] sm:$0xf]
      %v234 = vld [vmem:[%s203 + $0x48] sm:$0xf]
      %v235 = vld [vmem:[%s203 + $0x4c] sm:$0xf]
      %v236 = vld [vmem:[%s203 + $0x50] sm:$0xf]
      %v237 = vld [vmem:[%s203 + $0x54] sm:$0xf]
      %v238 = vld [vmem:[%s203 + $0x58] sm:$0xf]
      %v239 = vld [vmem:[%s203 + $0x5c] sm:$0xf]
      %v240 = vld [vmem:[%s203 + $0x60] sm:$0xf]
      %v241 = vld [vmem:[%s203 + $0x64] sm:$0xf]
      %v242 = vld [vmem:[%s203 + $0x68] sm:$0xf]
      %v243 = vld [vmem:[%s203 + $0x6c] sm:$0xf]
      %v244 = vld [vmem:[%s203 + $0x70] sm:$0xf]
      %v245 = vld [vmem:[%s203 + $0x74] sm:$0xf]
      %v246 = vld [vmem:[%s203 + $0x78] sm:$0xf]
      %v247 = vld [vmem:[%s203 + $0x7c] sm:$0xf]
      %v248 = vld [vmem:[%s203 + $0x80] sm:$0xf]
      %v249 = vld [vmem:[%s203 + $0x84] sm:$0xf]
      %v250 = vld [vmem:[%s203 + $0x88] sm:$0xf]
      %v251 = vld [vmem:[%s203 + $0x8c] sm:$0xf]
      %v252 = vld [vmem:[%s203 + $0x90] sm:$0xf]
      %v253 = vld [vmem:[%s203 + $0x94] sm:$0xf]
      %v254 = vld [vmem:[%s203 + $0x98] sm:$0xf]
      %v255 = vld [vmem:[%s203 + $0x9c] sm:$0xf]
      %v256 = vld [vmem:[%s203 + $0xa0] sm:$0xf]
      %v257 = vld [vmem:[%s203 + $0xa4] sm:$0xf]
      %v258 = vld [vmem:[%s203 + $0xa8] sm:$0xf]
      %v259 = vld [vmem:[%s203 + $0xac] sm:$0xf]
      %v260 = vld [vmem:[%s203 + $0xb0] sm:$0xf]
      %v261 = vld [vmem:[%s203 + $0xb4] sm:$0xf]
      %v262 = vld [vmem:[%s203 + $0xb8] sm:$0xf]
      %v263 = vld [vmem:[%s203 + $0xbc] sm:$0xf]
      %v264 = vld [vmem:[%s1] sm:$0xf]
      %v265 = vld [vmem:[%s1 + $0x4] sm:$0xf]
      %v266 = vld [vmem:[%s1 + $0x8] sm:$0xf]
      %v267 = vld [vmem:[%s1 + $0xc] sm:$0xf]
      %v268 = vld [vmem:[%s1 + $0x10] sm:$0xf]
      %v269 = vld [vmem:[%s1 + $0x14] sm:$0xf]
      %v270 = vld [vmem:[%s1 + $0x18] sm:$0xf]
      %v271 = vld [vmem:[%s1 + $0x1c] sm:$0xf]
      %v272 = vld [vmem:[%s1 + $0x20] sm:$0xf]
      %v273 = vld [vmem:[%s1 + $0x24] sm:$0xf]
      %v274 = vld [vmem:[%s1 + $0x28] sm:$0xf]
      %v275 = vld [vmem:[%s1 + $0x2c] sm:$0xf]
      %v276 = vld [vmem:[%s1 + $0x30] sm:$0xf]
      %v277 = vld [vmem:[%s1 + $0x34] sm:$0xf]
      %v278 = vld [vmem:[%s1 + $0x38] sm:$0xf]
      %v279 = vld [vmem:[%s1 + $0x3c] sm:$0xf]
      %s280 = scalar_lea.vmem %s203, 12
      %v281 = vld [vmem:[%s280] sm:$0xf]
      %v282 = vld [vmem:[%s280 + $0x4] sm:$0xf]
      %v283 = vld [vmem:[%s280 + $0x8] sm:$0xf]
      %v284 = vld [vmem:[%s280 + $0xc] sm:$0xf]
      %v285 = vld [vmem:[%s280 + $0x10] sm:$0xf]
      %v286 = vld [vmem:[%s280 + $0x14] sm:$0xf]
      %v287 = vld [vmem:[%s280 + $0x18] sm:$0xf]
      %v288 = vld [vmem:[%s280 + $0x1c] sm:$0xf]
      %v289 = vld [vmem:[%s280 + $0x20] sm:$0xf]
      %v290 = vld [vmem:[%s280 + $0x24] sm:$0xf]
      %v291 = vld [vmem:[%s280 + $0x28] sm:$0xf]
      %v292 = vld [vmem:[%s280 + $0x2c] sm:$0xf]
      %v293 = vld [vmem:[%s280 + $0x30] sm:$0xf]
      %v294 = vld [vmem:[%s280 + $0x34] sm:$0xf]
      %v295 = vld [vmem:[%s280 + $0x38] sm:$0xf]
      %v296 = vld [vmem:[%s280 + $0x3c] sm:$0xf]
      %v297 = vld [vmem:[%s280 + $0x40] sm:$0xf]
      %v298 = vld [vmem:[%s280 + $0x44] sm:$0xf]
      %v299 = vld [vmem:[%s280 + $0x48] sm:$0xf]
      %v300 = vld [vmem:[%s280 + $0x4c] sm:$0xf]
      %v301 = vld [vmem:[%s280 + $0x50] sm:$0xf]
      %v302 = vld [vmem:[%s280 + $0x54] sm:$0xf]
      %v303 = vld [vmem:[%s280 + $0x58] sm:$0xf]
      %v304 = vld [vmem:[%s280 + $0x5c] sm:$0xf]
      %v305 = vld [vmem:[%s280 + $0x60] sm:$0xf]
      %v306 = vld [vmem:[%s280 + $0x64] sm:$0xf]
      %v307 = vld [vmem:[%s280 + $0x68] sm:$0xf]
      %v308 = vld [vmem:[%s280 + $0x6c] sm:$0xf]
      %v309 = vld [vmem:[%s280 + $0x70] sm:$0xf]
      %v310 = vld [vmem:[%s280 + $0x74] sm:$0xf]
      %v311 = vld [vmem:[%s280 + $0x78] sm:$0xf]
      %v312 = vld [vmem:[%s280 + $0x7c] sm:$0xf]
      %v313 = vld [vmem:[%s280 + $0x80] sm:$0xf]
      %v314 = vld [vmem:[%s280 + $0x84] sm:$0xf]
      %v315 = vld [vmem:[%s280 + $0x88] sm:$0xf]
      %v316 = vld [vmem:[%s280 + $0x8c] sm:$0xf]
      %v317 = vld [vmem:[%s280 + $0x90] sm:$0xf]
      %v318 = vld [vmem:[%s280 + $0x94] sm:$0xf]
      %v319 = vld [vmem:[%s280 + $0x98] sm:$0xf]
      %v320 = vld [vmem:[%s280 + $0x9c] sm:$0xf]
      %v321 = vld [vmem:[%s280 + $0xa0] sm:$0xf]
      %v322 = vld [vmem:[%s280 + $0xa4] sm:$0xf]
      %v323 = vld [vmem:[%s280 + $0xa8] sm:$0xf]
      %v324 = vld [vmem:[%s280 + $0xac] sm:$0xf]
      %v325 = vld [vmem:[%s280 + $0xb0] sm:$0xf]
      %v326 = vld [vmem:[%s280 + $0xb4] sm:$0xf]
      %v327 = vld [vmem:[%s280 + $0xb8] sm:$0xf]
      %v328 = vld [vmem:[%s280 + $0xbc] sm:$0xf]
      %s329 = scalar_lea.vmem %s1, 192
      %v330 = vld [vmem:[%s329] sm:$0xf]
      %v331 = vld [vmem:[%s329 + $0x4] sm:$0xf]
      %v332 = vld [vmem:[%s329 + $0x8] sm:$0xf]
      %v333 = vld [vmem:[%s329 + $0xc] sm:$0xf]
      %v334 = vld [vmem:[%s329 + $0x10] sm:$0xf]
      %v335 = vld [vmem:[%s329 + $0x14] sm:$0xf]
      %v336 = vld [vmem:[%s329 + $0x18] sm:$0xf]
      %v337 = vld [vmem:[%s329 + $0x1c] sm:$0xf]
      %v338 = vld [vmem:[%s329 + $0x20] sm:$0xf]
      %v339 = vld [vmem:[%s329 + $0x24] sm:$0xf]
      %v340 = vld [vmem:[%s329 + $0x28] sm:$0xf]
      %v341 = vld [vmem:[%s329 + $0x2c] sm:$0xf]
      %v342 = vld [vmem:[%s329 + $0x30] sm:$0xf]
      %v343 = vld [vmem:[%s329 + $0x34] sm:$0xf]
      %v344 = vld [vmem:[%s329 + $0x38] sm:$0xf]
      %v345 = vld [vmem:[%s329 + $0x3c] sm:$0xf]
      %v394 = vunpack.c.l.b16 %v281
      %v395 = vunpack.c.l.b16 %v282
      %v396 = vunpack.c.l.b16 %v283
      %v397 = vunpack.c.l.b16 %v284
      %v398 = vunpack.c.l.b16 %v285
      %v399 = vunpack.c.l.b16 %v286
      %v400 = vunpack.c.l.b16 %v287
      %v401 = vunpack.c.l.b16 %v288
      %v402 = vunpack.c.l.b16 %v289
      %v403 = vunpack.c.l.b16 %v290
      %v404 = vunpack.c.l.b16 %v291
      %v405 = vunpack.c.l.b16 %v292
      %v406 = vunpack.c.l.b16 %v293
      %v407 = vunpack.c.l.b16 %v294
      %v408 = vunpack.c.l.b16 %v295
      %v409 = vunpack.c.l.b16 %v296
      %v410 = vunpack.c.l.b16 %v297
      %v411 = vunpack.c.l.b16 %v298
      %v412 = vunpack.c.l.b16 %v299
      %v413 = vunpack.c.l.b16 %v300
      %v414 = vunpack.c.l.b16 %v301
      %v415 = vunpack.c.l.b16 %v302
      %v416 = vunpack.c.l.b16 %v303
      %v417 = vunpack.c.l.b16 %v304
      %v418 = vunpack.c.l.b16 %v305
      %v419 = vunpack.c.l.b16 %v306
      %v420 = vunpack.c.l.b16 %v307
      %v421 = vunpack.c.l.b16 %v308
      %v422 = vunpack.c.l.b16 %v309
      %v423 = vunpack.c.l.b16 %v310
      %v424 = vunpack.c.l.b16 %v311
      %v425 = vunpack.c.l.b16 %v312
      %v426 = vunpack.c.l.b16 %v313
      %v427 = vunpack.c.l.b16 %v314
      %v428 = vunpack.c.l.b16 %v315
      %v429 = vunpack.c.l.b16 %v316
      %v430 = vunpack.c.l.b16 %v317
      %v431 = vunpack.c.l.b16 %v318
      %v432 = vunpack.c.l.b16 %v319
      %v433 = vunpack.c.l.b16 %v320
      %v434 = vunpack.c.l.b16 %v321
      %v435 = vunpack.c.l.b16 %v322
      %v436 = vunpack.c.l.b16 %v323
      %v437 = vunpack.c.l.b16 %v324
      %v438 = vunpack.c.l.b16 %v325
      %v439 = vunpack.c.l.b16 %v326
      %v440 = vunpack.c.l.b16 %v327
      %v441 = vunpack.c.l.b16 %v328
      %v442 = vpack.c.b16 %v395, %v394
      %v443 = vpack.c.b16 %v397, %v396
      %v444 = vpack.c.b16 %v399, %v398
      %v445 = vpack.c.b16 %v401, %v400
      %v446 = vpack.c.b16 %v403, %v402
      %v447 = vpack.c.b16 %v405, %v404
      %v448 = vpack.c.b16 %v407, %v406
      %v449 = vpack.c.b16 %v409, %v408
      %v450 = vpack.c.b16 %v411, %v410
      %v451 = vpack.c.b16 %v413, %v412
      %v452 = vpack.c.b16 %v415, %v414
      %v453 = vpack.c.b16 %v417, %v416
      %v454 = vpack.c.b16 %v419, %v418
      %v455 = vpack.c.b16 %v421, %v420
      %v456 = vpack.c.b16 %v423, %v422
      %v457 = vpack.c.b16 %v425, %v424
      %v458 = vpack.c.b16 %v427, %v426
      %v459 = vpack.c.b16 %v429, %v428
      %v460 = vpack.c.b16 %v431, %v430
      %v461 = vpack.c.b16 %v433, %v432
      %v462 = vpack.c.b16 %v435, %v434
      %v463 = vpack.c.b16 %v437, %v436
      %v464 = vpack.c.b16 %v439, %v438
      %v465 = vpack.c.b16 %v441, %v440
      %v506 = vunpack.c.l.b16 %v330
      %v507 = vunpack.c.l.b16 %v331
      %v508 = vunpack.c.l.b16 %v332
      %v509 = vunpack.c.l.b16 %v333
      %v510 = vunpack.c.l.b16 %v334
      %v511 = vunpack.c.l.b16 %v335
      %v512 = vunpack.c.l.b16 %v336
      %v513 = vunpack.c.l.b16 %v337
      %v514 = vunpack.c.l.b16 %v338
      %v515 = vunpack.c.l.b16 %v339
      %v516 = vunpack.c.l.b16 %v340
      %v517 = vunpack.c.l.b16 %v341
      %v518 = vunpack.c.l.b16 %v342
      %v519 = vunpack.c.l.b16 %v343
      %v520 = vunpack.c.l.b16 %v344
      %v521 = vunpack.c.l.b16 %v345
      %v522 = vpack.c.b16 %v507, %v506
      %v523 = vpack.c.b16 %v509, %v508
      %v524 = vpack.c.b16 %v511, %v510
      %v525 = vpack.c.b16 %v513, %v512
      %v526 = vpack.c.b16 %v515, %v514
      %v527 = vpack.c.b16 %v517, %v516
      %v528 = vpack.c.b16 %v519, %v518
      %v529 = vpack.c.b16 %v521, %v520
      %538 = vmatprep.subr.bf16.mxu0 0
      %539 = vmatpush1.bf16.msra.mxu0 %v529
      %540 = vmatprep.subr.bf16.mxu0 0
      %541 = vmatpush1.bf16.msra.mxu0 %v528
      %542 = vmatprep.subr.bf16.mxu0 0
      %543 = vmatpush1.bf16.msra.mxu0 %v527
      %544 = vmatprep.subr.bf16.mxu0 0
      %545 = vmatpush1.bf16.msra.mxu0 %v526
      %546 = vmatprep.subr.bf16.mxu0 0
      %547 = vmatpush1.bf16.msra.mxu0 %v525
      %548 = vmatprep.subr.bf16.mxu0 0
      %549 = vmatpush1.bf16.msra.mxu0 %v524
      %550 = vmatprep.subr.bf16.mxu0 0
      %551 = vmatpush1.bf16.msra.mxu0 %v523
      %552 = vmatprep.subr.bf16.mxu0 0
      %553 = vmatpush1.bf16.msra.mxu0 %v522
      %554 = vmatprep.subr.bf16.mxu0 0
      %555 = vmatpush2.bf16.msra.mxu0 0
      %556 = vmatprep.subr.bf16.mxu0 0
      %557 = vmatpush2.bf16.msra.mxu0 0
      %558 = vmatprep.subr.bf16.mxu0 0
      %559 = vmatpush2.bf16.msra.mxu0 0
      %560 = vmatprep.subr.bf16.mxu0 0
      %561 = vmatpush2.bf16.msra.mxu0 0
      %562 = vmatprep.subr.bf16.mxu0 0
      %563 = vmatpush2.bf16.msra.mxu0 0
      %564 = vmatprep.subr.bf16.mxu0 0
      %565 = vmatpush2.bf16.msra.mxu0 0
      %566 = vmatprep.subr.bf16.mxu0 0
      %567 = vmatpush2.bf16.msra.mxu0 0
      %568 = vmatprep.subr.bf16.mxu0 0
      %569 = vmatpush2.bf16.msra.mxu0 0
      %570 = vmatprep.mubr.bf16.mxu0 0
      %571 = vmatmul.mubr.bf16.gmra.mxu0 %v442
      %v572 = vpop.f32.mrf.mxu0
      %v573 = vadd.f32 0.0, %v572
      %v574 = vpop.f32.mrf.mxu0
      %v575 = vpop.f32.mrf.mxu0
      %v576 = vadd.f32 0.0, %v575
      %v577 = vpop.f32.mrf.mxu0
      %578 = vmatprep.mubr.bf16.mxu0 0
      %579 = vmatmul.mubr.bf16.gmra.mxu0 %v443
      %v580 = vpop.f32.mrf.mxu0
      %v581 = vadd.f32 0.0, %v580
      %v582 = vpop.f32.mrf.mxu0
      %v583 = vpop.f32.mrf.mxu0
      %v584 = vadd.f32 0.0, %v583
      %v585 = vpop.f32.mrf.mxu0
      %586 = vmatprep.mubr.bf16.mxu0 0
      %587 = vmatmul.mubr.bf16.gmra.mxu0 %v444
      %v588 = vpop.f32.mrf.mxu0
      %v589 = vadd.f32 0.0, %v588
      %v590 = vpop.f32.mrf.mxu0
      %v591 = vpop.f32.mrf.mxu0
      %v592 = vadd.f32 0.0, %v591
      %v593 = vpop.f32.mrf.mxu0
      %594 = vmatprep.mubr.bf16.mxu0 0
      %595 = vmatmul.mubr.bf16.gmra.mxu0 %v445
      %v596 = vpop.f32.mrf.mxu0
      %v597 = vadd.f32 0.0, %v596
      %v598 = vpop.f32.mrf.mxu0
      %v599 = vpop.f32.mrf.mxu0
      %v600 = vadd.f32 0.0, %v599
      %v601 = vpop.f32.mrf.mxu0
      %602 = vmatprep.mubr.bf16.mxu0 0
      %603 = vmatmul.mubr.bf16.gmra.mxu0 %v446
      %v604 = vpop.f32.mrf.mxu0
      %v605 = vadd.f32 0.0, %v604
      %v606 = vpop.f32.mrf.mxu0
      %v607 = vpop.f32.mrf.mxu0
      %v608 = vadd.f32 0.0, %v607
      %v609 = vpop.f32.mrf.mxu0
      %610 = vmatprep.mubr.bf16.mxu0 0
      %611 = vmatmul.mubr.bf16.gmra.mxu0 %v447
      %v612 = vpop.f32.mrf.mxu0
      %v613 = vadd.f32 0.0, %v612
      %v614 = vpop.f32.mrf.mxu0
      %v615 = vpop.f32.mrf.mxu0
      %v616 = vadd.f32 0.0, %v615
      %v617 = vpop.f32.mrf.mxu0
      %618 = vmatprep.mubr.bf16.mxu0 0
      %619 = vmatmul.mubr.bf16.gmra.mxu0 %v448
      %v620 = vpop.f32.mrf.mxu0
      %v621 = vadd.f32 0.0, %v620
      %v622 = vpop.f32.mrf.mxu0
      %v623 = vpop.f32.mrf.mxu0
      %v624 = vadd.f32 0.0, %v623
      %v625 = vpop.f32.mrf.mxu0
      %626 = vmatprep.mubr.bf16.mxu0 0
      %627 = vmatmul.mubr.bf16.gmra.mxu0 %v449
      %v628 = vpop.f32.mrf.mxu0
      %v629 = vadd.f32 0.0, %v628
      %v630 = vpop.f32.mrf.mxu0
      %v631 = vpop.f32.mrf.mxu0
      %v632 = vadd.f32 0.0, %v631
      %v633 = vpop.f32.mrf.mxu0
      %634 = vmatprep.mubr.bf16.mxu0 0
      %635 = vmatmul.mubr.bf16.gmra.mxu0 %v450
      %v636 = vpop.f32.mrf.mxu0
      %v637 = vadd.f32 0.0, %v636
      %v638 = vpop.f32.mrf.mxu0
      %v639 = vpop.f32.mrf.mxu0
      %v640 = vadd.f32 0.0, %v639
      %v641 = vpop.f32.mrf.mxu0
      %642 = vmatprep.mubr.bf16.mxu0 0
      %643 = vmatmul.mubr.bf16.gmra.mxu0 %v451
      %v644 = vpop.f32.mrf.mxu0
      %v645 = vadd.f32 0.0, %v644
      %v646 = vpop.f32.mrf.mxu0
      %v647 = vpop.f32.mrf.mxu0
      %v648 = vadd.f32 0.0, %v647
      %v649 = vpop.f32.mrf.mxu0
      %650 = vmatprep.mubr.bf16.mxu0 0
      %651 = vmatmul.mubr.bf16.gmra.mxu0 %v452
      %v652 = vpop.f32.mrf.mxu0
      %v653 = vadd.f32 0.0, %v652
      %v654 = vpop.f32.mrf.mxu0
      %v655 = vpop.f32.mrf.mxu0
      %v656 = vadd.f32 0.0, %v655
      %v657 = vpop.f32.mrf.mxu0
      %658 = vmatprep.mubr.bf16.mxu0 0
      %659 = vmatmul.mubr.bf16.gmra.mxu0 %v453
      %v660 = vpop.f32.mrf.mxu0
      %v661 = vadd.f32 0.0, %v660
      %v662 = vpop.f32.mrf.mxu0
      %v663 = vpop.f32.mrf.mxu0
      %v664 = vadd.f32 0.0, %v663
      %v665 = vpop.f32.mrf.mxu0
      %666 = vmatprep.mubr.bf16.mxu0 0
      %667 = vmatmul.mubr.bf16.gmra.mxu0 %v454
      %v668 = vpop.f32.mrf.mxu0
      %v669 = vadd.f32 0.0, %v668
      %v670 = vpop.f32.mrf.mxu0
      %v671 = vpop.f32.mrf.mxu0
      %v672 = vadd.f32 0.0, %v671
      %v673 = vpop.f32.mrf.mxu0
      %674 = vmatprep.mubr.bf16.mxu0 0
      %675 = vmatmul.mubr.bf16.gmra.mxu0 %v455
      %v676 = vpop.f32.mrf.mxu0
      %v677 = vadd.f32 0.0, %v676
      %v678 = vpop.f32.mrf.mxu0
      %v679 = vpop.f32.mrf.mxu0
      %v680 = vadd.f32 0.0, %v679
      %v681 = vpop.f32.mrf.mxu0
      %682 = vmatprep.mubr.bf16.mxu0 0
      %683 = vmatmul.mubr.bf16.gmra.mxu0 %v456
      %v684 = vpop.f32.mrf.mxu0
      %v685 = vadd.f32 0.0, %v684
      %v686 = vpop.f32.mrf.mxu0
      %v687 = vpop.f32.mrf.mxu0
      %v688 = vadd.f32 0.0, %v687
      %v689 = vpop.f32.mrf.mxu0
      %690 = vmatprep.mubr.bf16.mxu0 0
      %691 = vmatmul.mubr.bf16.gmra.mxu0 %v457
      %v692 = vpop.f32.mrf.mxu0
      %v693 = vadd.f32 0.0, %v692
      %v694 = vpop.f32.mrf.mxu0
      %v695 = vpop.f32.mrf.mxu0
      %v696 = vadd.f32 0.0, %v695
      %v697 = vpop.f32.mrf.mxu0
      %698 = vmatprep.mubr.bf16.mxu0 0
      %699 = vmatmul.mubr.bf16.gmra.mxu0 %v458
      %v700 = vpop.f32.mrf.mxu0
      %v701 = vadd.f32 0.0, %v700
      %v702 = vpop.f32.mrf.mxu0
      %v703 = vpop.f32.mrf.mxu0
      %v704 = vadd.f32 0.0, %v703
      %v705 = vpop.f32.mrf.mxu0
      %706 = vmatprep.mubr.bf16.mxu0 0
      %707 = vmatmul.mubr.bf16.gmra.mxu0 %v459
      %v708 = vpop.f32.mrf.mxu0
      %v709 = vadd.f32 0.0, %v708
      %v710 = vpop.f32.mrf.mxu0
      %v711 = vpop.f32.mrf.mxu0
      %v712 = vadd.f32 0.0, %v711
      %v713 = vpop.f32.mrf.mxu0
      %714 = vmatprep.mubr.bf16.mxu0 0
      %715 = vmatmul.mubr.bf16.gmra.mxu0 %v460
      %v716 = vpop.f32.mrf.mxu0
      %v717 = vadd.f32 0.0, %v716
      %v718 = vpop.f32.mrf.mxu0
      %v719 = vpop.f32.mrf.mxu0
      %v720 = vadd.f32 0.0, %v719
      %v721 = vpop.f32.mrf.mxu0
      %722 = vmatprep.mubr.bf16.mxu0 0
      %723 = vmatmul.mubr.bf16.gmra.mxu0 %v461
      %v724 = vpop.f32.mrf.mxu0
      %v725 = vadd.f32 0.0, %v724
      %v726 = vpop.f32.mrf.mxu0
      %v727 = vpop.f32.mrf.mxu0
      %v728 = vadd.f32 0.0, %v727
      %v729 = vpop.f32.mrf.mxu0
      %730 = vmatprep.mubr.bf16.mxu0 0
      %731 = vmatmul.mubr.bf16.gmra.mxu0 %v462
      %v732 = vpop.f32.mrf.mxu0
      %v733 = vadd.f32 0.0, %v732
      %v734 = vpop.f32.mrf.mxu0
      %v735 = vpop.f32.mrf.mxu0
      %v736 = vadd.f32 0.0, %v735
      %v737 = vpop.f32.mrf.mxu0
      %738 = vmatprep.mubr.bf16.mxu0 0
      %739 = vmatmul.mubr.bf16.gmra.mxu0 %v463
      %v740 = vpop.f32.mrf.mxu0
      %v741 = vadd.f32 0.0, %v740
      %v742 = vpop.f32.mrf.mxu0
      %v743 = vpop.f32.mrf.mxu0
      %v744 = vadd.f32 0.0, %v743
      %v745 = vpop.f32.mrf.mxu0
      %746 = vmatprep.mubr.bf16.mxu0 0
      %747 = vmatmul.mubr.bf16.gmra.mxu0 %v464
      %v748 = vpop.f32.mrf.mxu0
      %v749 = vadd.f32 0.0, %v748
      %v750 = vpop.f32.mrf.mxu0
      %v751 = vpop.f32.mrf.mxu0
      %v752 = vadd.f32 0.0, %v751
      %v753 = vpop.f32.mrf.mxu0
      %754 = vmatprep.mubr.bf16.mxu0 0
      %755 = vmatmul.mubr.bf16.gmra.mxu0 %v465
      %v756 = vpop.f32.mrf.mxu0
      %v757 = vadd.f32 0.0, %v756
      %v758 = vpop.f32.mrf.mxu0
      %v759 = vpop.f32.mrf.mxu0
      %v760 = vadd.f32 0.0, %v759
      %v761 = vpop.f32.mrf.mxu0
      %762 = vdwg.mxu0
      %v811 = vunpack.c.l.b16 %v216
      %v812 = vunpack.c.l.b16 %v217
      %v813 = vunpack.c.l.b16 %v218
      %v814 = vunpack.c.l.b16 %v219
      %v815 = vunpack.c.l.b16 %v220
      %v816 = vunpack.c.l.b16 %v221
      %v817 = vunpack.c.l.b16 %v222
      %v818 = vunpack.c.l.b16 %v223
      %v819 = vunpack.c.l.b16 %v224
      %v820 = vunpack.c.l.b16 %v225
      %v821 = vunpack.c.l.b16 %v226
      %v822 = vunpack.c.l.b16 %v227
      %v823 = vunpack.c.l.b16 %v228
      %v824 = vunpack.c.l.b16 %v229
      %v825 = vunpack.c.l.b16 %v230
      %v826 = vunpack.c.l.b16 %v231
      %v827 = vunpack.c.l.b16 %v232
      %v828 = vunpack.c.l.b16 %v233
      %v829 = vunpack.c.l.b16 %v234
      %v830 = vunpack.c.l.b16 %v235
      %v831 = vunpack.c.l.b16 %v236
      %v832 = vunpack.c.l.b16 %v237
      %v833 = vunpack.c.l.b16 %v238
      %v834 = vunpack.c.l.b16 %v239
      %v835 = vunpack.c.l.b16 %v240
      %v836 = vunpack.c.l.b16 %v241
      %v837 = vunpack.c.l.b16 %v242
      %v838 = vunpack.c.l.b16 %v243
      %v839 = vunpack.c.l.b16 %v244
      %v840 = vunpack.c.l.b16 %v245
      %v841 = vunpack.c.l.b16 %v246
      %v842 = vunpack.c.l.b16 %v247
      %v843 = vunpack.c.l.b16 %v248
      %v844 = vunpack.c.l.b16 %v249
      %v845 = vunpack.c.l.b16 %v250
      %v846 = vunpack.c.l.b16 %v251
      %v847 = vunpack.c.l.b16 %v252
      %v848 = vunpack.c.l.b16 %v253
      %v849 = vunpack.c.l.b16 %v254
      %v850 = vunpack.c.l.b16 %v255
      %v851 = vunpack.c.l.b16 %v256
      %v852 = vunpack.c.l.b16 %v257
      %v853 = vunpack.c.l.b16 %v258
      %v854 = vunpack.c.l.b16 %v259
      %v855 = vunpack.c.l.b16 %v260
      %v856 = vunpack.c.l.b16 %v261
      %v857 = vunpack.c.l.b16 %v262
      %v858 = vunpack.c.l.b16 %v263
      %v859 = vpack.c.b16 %v812, %v811
      %v860 = vpack.c.b16 %v814, %v813
      %v861 = vpack.c.b16 %v816, %v815
      %v862 = vpack.c.b16 %v818, %v817
      %v863 = vpack.c.b16 %v820, %v819
      %v864 = vpack.c.b16 %v822, %v821
      %v865 = vpack.c.b16 %v824, %v823
      %v866 = vpack.c.b16 %v826, %v825
      %v867 = vpack.c.b16 %v828, %v827
      %v868 = vpack.c.b16 %v830, %v829
      %v869 = vpack.c.b16 %v832, %v831
      %v870 = vpack.c.b16 %v834, %v833
      %v871 = vpack.c.b16 %v836, %v835
      %v872 = vpack.c.b16 %v838, %v837
      %v873 = vpack.c.b16 %v840, %v839
      %v874 = vpack.c.b16 %v842, %v841
      %v875 = vpack.c.b16 %v844, %v843
      %v876 = vpack.c.b16 %v846, %v845
      %v877 = vpack.c.b16 %v848, %v847
      %v878 = vpack.c.b16 %v850, %v849
      %v879 = vpack.c.b16 %v852, %v851
      %v880 = vpack.c.b16 %v854, %v853
      %v881 = vpack.c.b16 %v856, %v855
      %v882 = vpack.c.b16 %v858, %v857
      %v923 = vunpack.c.l.b16 %v264
      %v924 = vunpack.c.l.b16 %v265
      %v925 = vunpack.c.l.b16 %v266
      %v926 = vunpack.c.l.b16 %v267
      %v927 = vunpack.c.l.b16 %v268
      %v928 = vunpack.c.l.b16 %v269
      %v929 = vunpack.c.l.b16 %v270
      %v930 = vunpack.c.l.b16 %v271
      %v931 = vunpack.c.l.b16 %v272
      %v932 = vunpack.c.l.b16 %v273
      %v933 = vunpack.c.l.b16 %v274
      %v934 = vunpack.c.l.b16 %v275
      %v935 = vunpack.c.l.b16 %v276
      %v936 = vunpack.c.l.b16 %v277
      %v937 = vunpack.c.l.b16 %v278
      %v938 = vunpack.c.l.b16 %v279
      %v939 = vpack.c.b16 %v924, %v923
      %v940 = vpack.c.b16 %v926, %v925
      %v941 = vpack.c.b16 %v928, %v927
      %v942 = vpack.c.b16 %v930, %v929
      %v943 = vpack.c.b16 %v932, %v931
      %v944 = vpack.c.b16 %v934, %v933
      %v945 = vpack.c.b16 %v936, %v935
      %v946 = vpack.c.b16 %v938, %v937
      %955 = vmatprep.subr.bf16.mxu0 0
      %956 = vmatpush1.bf16.msra.mxu0 %v946
      %957 = vmatprep.subr.bf16.mxu0 0
      %958 = vmatpush1.bf16.msra.mxu0 %v945
      %959 = vmatprep.subr.bf16.mxu0 0
      %960 = vmatpush1.bf16.msra.mxu0 %v944
      %961 = vmatprep.subr.bf16.mxu0 0
      %962 = vmatpush1.bf16.msra.mxu0 %v943
      %963 = vmatprep.subr.bf16.mxu0 0
      %964 = vmatpush1.bf16.msra.mxu0 %v942
      %965 = vmatprep.subr.bf16.mxu0 0
      %966 = vmatpush1.bf16.msra.mxu0 %v941
      %967 = vmatprep.subr.bf16.mxu0 0
      %968 = vmatpush1.bf16.msra.mxu0 %v940
      %969 = vmatprep.subr.bf16.mxu0 0
      %970 = vmatpush1.bf16.msra.mxu0 %v939
      %971 = vmatprep.subr.bf16.mxu0 0
      %972 = vmatpush2.bf16.msra.mxu0 0
      %973 = vmatprep.subr.bf16.mxu0 0
      %974 = vmatpush2.bf16.msra.mxu0 0
      %975 = vmatprep.subr.bf16.mxu0 0
      %976 = vmatpush2.bf16.msra.mxu0 0
      %977 = vmatprep.subr.bf16.mxu0 0
      %978 = vmatpush2.bf16.msra.mxu0 0
      %979 = vmatprep.subr.bf16.mxu0 0
      %980 = vmatpush2.bf16.msra.mxu0 0
      %981 = vmatprep.subr.bf16.mxu0 0
      %982 = vmatpush2.bf16.msra.mxu0 0
      %983 = vmatprep.subr.bf16.mxu0 0
      %984 = vmatpush2.bf16.msra.mxu0 0
      %985 = vmatprep.subr.bf16.mxu0 0
      %986 = vmatpush2.bf16.msra.mxu0 0
      %987 = vmatprep.mubr.bf16.mxu0 0
      %988 = vmatmul.mubr.bf16.gmra.mxu0 %v859
      %v989 = vpop.f32.mrf.mxu0
      %v990 = vadd.f32 %v573, %v989
      %v991 = vpop.f32.mrf.mxu0
      %v992 = vpop.f32.mrf.mxu0
      %v993 = vadd.f32 %v576, %v992
      %v994 = vpop.f32.mrf.mxu0
      %995 = vmatprep.mubr.bf16.mxu0 0
      %996 = vmatmul.mubr.bf16.gmra.mxu0 %v860
      %v997 = vpop.f32.mrf.mxu0
      %v998 = vadd.f32 %v581, %v997
      %v999 = vpop.f32.mrf.mxu0
      %v1000 = vpop.f32.mrf.mxu0
      %v1001 = vadd.f32 %v584, %v1000
      %v1002 = vpop.f32.mrf.mxu0
      %1003 = vmatprep.mubr.bf16.mxu0 0
      %1004 = vmatmul.mubr.bf16.gmra.mxu0 %v861
      %v1005 = vpop.f32.mrf.mxu0
      %v1006 = vadd.f32 %v589, %v1005
      %v1007 = vpop.f32.mrf.mxu0
      %v1008 = vpop.f32.mrf.mxu0
      %v1009 = vadd.f32 %v592, %v1008
      %v1010 = vpop.f32.mrf.mxu0
      %1011 = vmatprep.mubr.bf16.mxu0 0
      %1012 = vmatmul.mubr.bf16.gmra.mxu0 %v862
      %v1013 = vpop.f32.mrf.mxu0
      %v1014 = vadd.f32 %v597, %v1013
      %v1015 = vpop.f32.mrf.mxu0
      %v1016 = vpop.f32.mrf.mxu0
      %v1017 = vadd.f32 %v600, %v1016
      %v1018 = vpop.f32.mrf.mxu0
      %1019 = vmatprep.mubr.bf16.mxu0 0
      %1020 = vmatmul.mubr.bf16.gmra.mxu0 %v863
      %v1021 = vpop.f32.mrf.mxu0
      %v1022 = vadd.f32 %v605, %v1021
      %v1023 = vpop.f32.mrf.mxu0
      %v1024 = vpop.f32.mrf.mxu0
      %v1025 = vadd.f32 %v608, %v1024
      %v1026 = vpop.f32.mrf.mxu0
      %1027 = vmatprep.mubr.bf16.mxu0 0
      %1028 = vmatmul.mubr.bf16.gmra.mxu0 %v864
      %v1029 = vpop.f32.mrf.mxu0
      %v1030 = vadd.f32 %v613, %v1029
      %v1031 = vpop.f32.mrf.mxu0
      %v1032 = vpop.f32.mrf.mxu0
      %v1033 = vadd.f32 %v616, %v1032
      %v1034 = vpop.f32.mrf.mxu0
      %1035 = vmatprep.mubr.bf16.mxu0 0
      %1036 = vmatmul.mubr.bf16.gmra.mxu0 %v865
      %v1037 = vpop.f32.mrf.mxu0
      %v1038 = vadd.f32 %v621, %v1037
      %v1039 = vpop.f32.mrf.mxu0
      %v1040 = vpop.f32.mrf.mxu0
      %v1041 = vadd.f32 %v624, %v1040
      %v1042 = vpop.f32.mrf.mxu0
      %1043 = vmatprep.mubr.bf16.mxu0 0
      %1044 = vmatmul.mubr.bf16.gmra.mxu0 %v866
      %v1045 = vpop.f32.mrf.mxu0
      %v1046 = vadd.f32 %v629, %v1045
      %v1047 = vpop.f32.mrf.mxu0
      %v1048 = vpop.f32.mrf.mxu0
      %v1049 = vadd.f32 %v632, %v1048
      %v1050 = vpop.f32.mrf.mxu0
      %1051 = vmatprep.mubr.bf16.mxu0 0
      %1052 = vmatmul.mubr.bf16.gmra.mxu0 %v867
      %v1053 = vpop.f32.mrf.mxu0
      %v1054 = vadd.f32 %v637, %v1053
      %v1055 = vpop.f32.mrf.mxu0
      %v1056 = vpop.f32.mrf.mxu0
      %v1057 = vadd.f32 %v640, %v1056
      %v1058 = vpop.f32.mrf.mxu0
      %1059 = vmatprep.mubr.bf16.mxu0 0
      %1060 = vmatmul.mubr.bf16.gmra.mxu0 %v868
      %v1061 = vpop.f32.mrf.mxu0
      %v1062 = vadd.f32 %v645, %v1061
      %v1063 = vpop.f32.mrf.mxu0
      %v1064 = vpop.f32.mrf.mxu0
      %v1065 = vadd.f32 %v648, %v1064
      %v1066 = vpop.f32.mrf.mxu0
      %1067 = vmatprep.mubr.bf16.mxu0 0
      %1068 = vmatmul.mubr.bf16.gmra.mxu0 %v869
      %v1069 = vpop.f32.mrf.mxu0
      %v1070 = vadd.f32 %v653, %v1069
      %v1071 = vpop.f32.mrf.mxu0
      %v1072 = vpop.f32.mrf.mxu0
      %v1073 = vadd.f32 %v656, %v1072
      %v1074 = vpop.f32.mrf.mxu0
      %1075 = vmatprep.mubr.bf16.mxu0 0
      %1076 = vmatmul.mubr.bf16.gmra.mxu0 %v870
      %v1077 = vpop.f32.mrf.mxu0
      %v1078 = vadd.f32 %v661, %v1077
      %v1079 = vpop.f32.mrf.mxu0
      %v1080 = vpop.f32.mrf.mxu0
      %v1081 = vadd.f32 %v664, %v1080
      %v1082 = vpop.f32.mrf.mxu0
      %1083 = vmatprep.mubr.bf16.mxu0 0
      %1084 = vmatmul.mubr.bf16.gmra.mxu0 %v871
      %v1085 = vpop.f32.mrf.mxu0
      %v1086 = vadd.f32 %v669, %v1085
      %v1087 = vpop.f32.mrf.mxu0
      %v1088 = vpop.f32.mrf.mxu0
      %v1089 = vadd.f32 %v672, %v1088
      %v1090 = vpop.f32.mrf.mxu0
      %1091 = vmatprep.mubr.bf16.mxu0 0
      %1092 = vmatmul.mubr.bf16.gmra.mxu0 %v872
      %v1093 = vpop.f32.mrf.mxu0
      %v1094 = vadd.f32 %v677, %v1093
      %v1095 = vpop.f32.mrf.mxu0
      %v1096 = vpop.f32.mrf.mxu0
      %v1097 = vadd.f32 %v680, %v1096
      %v1098 = vpop.f32.mrf.mxu0
      %1099 = vmatprep.mubr.bf16.mxu0 0
      %1100 = vmatmul.mubr.bf16.gmra.mxu0 %v873
      %v1101 = vpop.f32.mrf.mxu0
      %v1102 = vadd.f32 %v685, %v1101
      %v1103 = vpop.f32.mrf.mxu0
      %v1104 = vpop.f32.mrf.mxu0
      %v1105 = vadd.f32 %v688, %v1104
      %v1106 = vpop.f32.mrf.mxu0
      %1107 = vmatprep.mubr.bf16.mxu0 0
      %1108 = vmatmul.mubr.bf16.gmra.mxu0 %v874
      %v1109 = vpop.f32.mrf.mxu0
      %v1110 = vadd.f32 %v693, %v1109
      %v1111 = vpop.f32.mrf.mxu0
      %v1112 = vpop.f32.mrf.mxu0
      %v1113 = vadd.f32 %v696, %v1112
      %v1114 = vpop.f32.mrf.mxu0
      %1115 = vmatprep.mubr.bf16.mxu0 0
      %1116 = vmatmul.mubr.bf16.gmra.mxu0 %v875
      %v1117 = vpop.f32.mrf.mxu0
      %v1118 = vadd.f32 %v701, %v1117
      %v1119 = vpop.f32.mrf.mxu0
      %v1120 = vpop.f32.mrf.mxu0
      %v1121 = vadd.f32 %v704, %v1120
      %v1122 = vpop.f32.mrf.mxu0
      %1123 = vmatprep.mubr.bf16.mxu0 0
      %1124 = vmatmul.mubr.bf16.gmra.mxu0 %v876
      %v1125 = vpop.f32.mrf.mxu0
      %v1126 = vadd.f32 %v709, %v1125
      %v1127 = vpop.f32.mrf.mxu0
      %v1128 = vpop.f32.mrf.mxu0
      %v1129 = vadd.f32 %v712, %v1128
      %v1130 = vpop.f32.mrf.mxu0
      %1131 = vmatprep.mubr.bf16.mxu0 0
      %1132 = vmatmul.mubr.bf16.gmra.mxu0 %v877
      %v1133 = vpop.f32.mrf.mxu0
      %v1134 = vadd.f32 %v717, %v1133
      %v1135 = vpop.f32.mrf.mxu0
      %v1136 = vpop.f32.mrf.mxu0
      %v1137 = vadd.f32 %v720, %v1136
      %v1138 = vpop.f32.mrf.mxu0
      %1139 = vmatprep.mubr.bf16.mxu0 0
      %1140 = vmatmul.mubr.bf16.gmra.mxu0 %v878
      %v1141 = vpop.f32.mrf.mxu0
      %v1142 = vadd.f32 %v725, %v1141
      %v1143 = vpop.f32.mrf.mxu0
      %v1144 = vpop.f32.mrf.mxu0
      %v1145 = vadd.f32 %v728, %v1144
      %v1146 = vpop.f32.mrf.mxu0
      %1147 = vmatprep.mubr.bf16.mxu0 0
      %1148 = vmatmul.mubr.bf16.gmra.mxu0 %v879
      %v1149 = vpop.f32.mrf.mxu0
      %v1150 = vadd.f32 %v733, %v1149
      %v1151 = vpop.f32.mrf.mxu0
      %v1152 = vpop.f32.mrf.mxu0
      %v1153 = vadd.f32 %v736, %v1152
      %v1154 = vpop.f32.mrf.mxu0
      %1155 = vmatprep.mubr.bf16.mxu0 0
      %1156 = vmatmul.mubr.bf16.gmra.mxu0 %v880
      %v1157 = vpop.f32.mrf.mxu0
      %v1158 = vadd.f32 %v741, %v1157
      %v1159 = vpop.f32.mrf.mxu0
      %v1160 = vpop.f32.mrf.mxu0
      %v1161 = vadd.f32 %v744, %v1160
      %v1162 = vpop.f32.mrf.mxu0
      %1163 = vmatprep.mubr.bf16.mxu0 0
      %1164 = vmatmul.mubr.bf16.gmra.mxu0 %v881
      %v1165 = vpop.f32.mrf.mxu0
      %v1166 = vadd.f32 %v749, %v1165
      %v1167 = vpop.f32.mrf.mxu0
      %v1168 = vpop.f32.mrf.mxu0
      %v1169 = vadd.f32 %v752, %v1168
      %v1170 = vpop.f32.mrf.mxu0
      %1171 = vmatprep.mubr.bf16.mxu0 0
      %1172 = vmatmul.mubr.bf16.gmra.mxu0 %v882
      %v1173 = vpop.f32.mrf.mxu0
      %v1174 = vadd.f32 %v757, %v1173
      %v1175 = vpop.f32.mrf.mxu0
      %v1176 = vpop.f32.mrf.mxu0
      %v1177 = vadd.f32 %v760, %v1176
      %v1178 = vpop.f32.mrf.mxu0
      %1179 = vdwg.mxu0
      %s1180 = scalar_lea.vmem %s203, 24
      %v1181 = vld [vmem:[%s1180] sm:$0xf]
      %v1182 = vld [vmem:[%s1180 + $0x4] sm:$0xf]
      %v1183 = vld [vmem:[%s1180 + $0x8] sm:$0xf]
      %v1184 = vld [vmem:[%s1180 + $0xc] sm:$0xf]
      %v1185 = vld [vmem:[%s1180 + $0x10] sm:$0xf]
      %v1186 = vld [vmem:[%s1180 + $0x14] sm:$0xf]
      %v1187 = vld [vmem:[%s1180 + $0x18] sm:$0xf]
      %v1188 = vld [vmem:[%s1180 + $0x1c] sm:$0xf]
      %v1189 = vld [vmem:[%s1180 + $0x20] sm:$0xf]
      %v1190 = vld [vmem:[%s1180 + $0x24] sm:$0xf]
      %v1191 = vld [vmem:[%s1180 + $0x28] sm:$0xf]
      %v1192 = vld [vmem:[%s1180 + $0x2c] sm:$0xf]
      %v1193 = vld [vmem:[%s1180 + $0x30] sm:$0xf]
      %v1194 = vld [vmem:[%s1180 + $0x34] sm:$0xf]
      %v1195 = vld [vmem:[%s1180 + $0x38] sm:$0xf]
      %v1196 = vld [vmem:[%s1180 + $0x3c] sm:$0xf]
      %v1197 = vld [vmem:[%s1180 + $0x40] sm:$0xf]
      %v1198 = vld [vmem:[%s1180 + $0x44] sm:$0xf]
      %v1199 = vld [vmem:[%s1180 + $0x48] sm:$0xf]
      %v1200 = vld [vmem:[%s1180 + $0x4c] sm:$0xf]
      %v1201 = vld [vmem:[%s1180 + $0x50] sm:$0xf]
      %v1202 = vld [vmem:[%s1180 + $0x54] sm:$0xf]
      %v1203 = vld [vmem:[%s1180 + $0x58] sm:$0xf]
      %v1204 = vld [vmem:[%s1180 + $0x5c] sm:$0xf]
      %v1205 = vld [vmem:[%s1180 + $0x60] sm:$0xf]
      %v1206 = vld [vmem:[%s1180 + $0x64] sm:$0xf]
      %v1207 = vld [vmem:[%s1180 + $0x68] sm:$0xf]
      %v1208 = vld [vmem:[%s1180 + $0x6c] sm:$0xf]
      %v1209 = vld [vmem:[%s1180 + $0x70] sm:$0xf]
      %v1210 = vld [vmem:[%s1180 + $0x74] sm:$0xf]
      %v1211 = vld [vmem:[%s1180 + $0x78] sm:$0xf]
      %v1212 = vld [vmem:[%s1180 + $0x7c] sm:$0xf]
      %v1213 = vld [vmem:[%s1180 + $0x80] sm:$0xf]
      %v1214 = vld [vmem:[%s1180 + $0x84] sm:$0xf]
      %v1215 = vld [vmem:[%s1180 + $0x88] sm:$0xf]
      %v1216 = vld [vmem:[%s1180 + $0x8c] sm:$0xf]
      %v1217 = vld [vmem:[%s1180 + $0x90] sm:$0xf]
      %v1218 = vld [vmem:[%s1180 + $0x94] sm:$0xf]
      %v1219 = vld [vmem:[%s1180 + $0x98] sm:$0xf]
      %v1220 = vld [vmem:[%s1180 + $0x9c] sm:$0xf]
      %v1221 = vld [vmem:[%s1180 + $0xa0] sm:$0xf]
      %v1222 = vld [vmem:[%s1180 + $0xa4] sm:$0xf]
      %v1223 = vld [vmem:[%s1180 + $0xa8] sm:$0xf]
      %v1224 = vld [vmem:[%s1180 + $0xac] sm:$0xf]
      %v1225 = vld [vmem:[%s1180 + $0xb0] sm:$0xf]
      %v1226 = vld [vmem:[%s1180 + $0xb4] sm:$0xf]
      %v1227 = vld [vmem:[%s1180 + $0xb8] sm:$0xf]
      %v1228 = vld [vmem:[%s1180 + $0xbc] sm:$0xf]
      %s1229 = scalar_lea.vmem %s1, 384
      %v1230 = vld [vmem:[%s1229] sm:$0xf]
      %v1231 = vld [vmem:[%s1229 + $0x4] sm:$0xf]
      %v1232 = vld [vmem:[%s1229 + $0x8] sm:$0xf]
      %v1233 = vld [vmem:[%s1229 + $0xc] sm:$0xf]
      %v1234 = vld [vmem:[%s1229 + $0x10] sm:$0xf]
      %v1235 = vld [vmem:[%s1229 + $0x14] sm:$0xf]
      %v1236 = vld [vmem:[%s1229 + $0x18] sm:$0xf]
      %v1237 = vld [vmem:[%s1229 + $0x1c] sm:$0xf]
      %v1238 = vld [vmem:[%s1229 + $0x20] sm:$0xf]
      %v1239 = vld [vmem:[%s1229 + $0x24] sm:$0xf]
      %v1240 = vld [vmem:[%s1229 + $0x28] sm:$0xf]
      %v1241 = vld [vmem:[%s1229 + $0x2c] sm:$0xf]
      %v1242 = vld [vmem:[%s1229 + $0x30] sm:$0xf]
      %v1243 = vld [vmem:[%s1229 + $0x34] sm:$0xf]
      %v1244 = vld [vmem:[%s1229 + $0x38] sm:$0xf]
      %v1245 = vld [vmem:[%s1229 + $0x3c] sm:$0xf]
      %v1294 = vunpack.c.l.b16 %v1181
      %v1295 = vunpack.c.l.b16 %v1182
      %v1296 = vunpack.c.l.b16 %v1183
      %v1297 = vunpack.c.l.b16 %v1184
      %v1298 = vunpack.c.l.b16 %v1185
      %v1299 = vunpack.c.l.b16 %v1186
      %v1300 = vunpack.c.l.b16 %v1187
      %v1301 = vunpack.c.l.b16 %v1188
      %v1302 = vunpack.c.l.b16 %v1189
      %v1303 = vunpack.c.l.b16 %v1190
      %v1304 = vunpack.c.l.b16 %v1191
      %v1305 = vunpack.c.l.b16 %v1192
      %v1306 = vunpack.c.l.b16 %v1193
      %v1307 = vunpack.c.l.b16 %v1194
      %v1308 = vunpack.c.l.b16 %v1195
      %v1309 = vunpack.c.l.b16 %v1196
      %v1310 = vunpack.c.l.b16 %v1197
      %v1311 = vunpack.c.l.b16 %v1198
      %v1312 = vunpack.c.l.b16 %v1199
      %v1313 = vunpack.c.l.b16 %v1200
      %v1314 = vunpack.c.l.b16 %v1201
      %v1315 = vunpack.c.l.b16 %v1202
      %v1316 = vunpack.c.l.b16 %v1203
      %v1317 = vunpack.c.l.b16 %v1204
      %v1318 = vunpack.c.l.b16 %v1205
      %v1319 = vunpack.c.l.b16 %v1206
      %v1320 = vunpack.c.l.b16 %v1207
      %v1321 = vunpack.c.l.b16 %v1208
      %v1322 = vunpack.c.l.b16 %v1209
      %v1323 = vunpack.c.l.b16 %v1210
      %v1324 = vunpack.c.l.b16 %v1211
      %v1325 = vunpack.c.l.b16 %v1212
      %v1326 = vunpack.c.l.b16 %v1213
      %v1327 = vunpack.c.l.b16 %v1214
      %v1328 = vunpack.c.l.b16 %v1215
      %v1329 = vunpack.c.l.b16 %v1216
      %v1330 = vunpack.c.l.b16 %v1217
      %v1331 = vunpack.c.l.b16 %v1218
      %v1332 = vunpack.c.l.b16 %v1219
      %v1333 = vunpack.c.l.b16 %v1220
      %v1334 = vunpack.c.l.b16 %v1221
      %v1335 = vunpack.c.l.b16 %v1222
      %v1336 = vunpack.c.l.b16 %v1223
      %v1337 = vunpack.c.l.b16 %v1224
      %v1338 = vunpack.c.l.b16 %v1225
      %v1339 = vunpack.c.l.b16 %v1226
      %v1340 = vunpack.c.l.b16 %v1227
      %v1341 = vunpack.c.l.b16 %v1228
      %v1342 = vpack.c.b16 %v1295, %v1294
      %v1343 = vpack.c.b16 %v1297, %v1296
      %v1344 = vpack.c.b16 %v1299, %v1298
      %v1345 = vpack.c.b16 %v1301, %v1300
      %v1346 = vpack.c.b16 %v1303, %v1302
      %v1347 = vpack.c.b16 %v1305, %v1304
      %v1348 = vpack.c.b16 %v1307, %v1306
      %v1349 = vpack.c.b16 %v1309, %v1308
      %v1350 = vpack.c.b16 %v1311, %v1310
      %v1351 = vpack.c.b16 %v1313, %v1312
      %v1352 = vpack.c.b16 %v1315, %v1314
      %v1353 = vpack.c.b16 %v1317, %v1316
      %v1354 = vpack.c.b16 %v1319, %v1318
      %v1355 = vpack.c.b16 %v1321, %v1320
      %v1356 = vpack.c.b16 %v1323, %v1322
      %v1357 = vpack.c.b16 %v1325, %v1324
      %v1358 = vpack.c.b16 %v1327, %v1326
      %v1359 = vpack.c.b16 %v1329, %v1328
      %v1360 = vpack.c.b16 %v1331, %v1330
      %v1361 = vpack.c.b16 %v1333, %v1332
      %v1362 = vpack.c.b16 %v1335, %v1334
      %v1363 = vpack.c.b16 %v1337, %v1336
      %v1364 = vpack.c.b16 %v1339, %v1338
      %v1365 = vpack.c.b16 %v1341, %v1340
      %v1406 = vunpack.c.l.b16 %v1230
      %v1407 = vunpack.c.l.b16 %v1231
      %v1408 = vunpack.c.l.b16 %v1232
      %v1409 = vunpack.c.l.b16 %v1233
      %v1410 = vunpack.c.l.b16 %v1234
      %v1411 = vunpack.c.l.b16 %v1235
      %v1412 = vunpack.c.l.b16 %v1236
      %v1413 = vunpack.c.l.b16 %v1237
      %v1414 = vunpack.c.l.b16 %v1238
      %v1415 = vunpack.c.l.b16 %v1239
      %v1416 = vunpack.c.l.b16 %v1240
      %v1417 = vunpack.c.l.b16 %v1241
      %v1418 = vunpack.c.l.b16 %v1242
      %v1419 = vunpack.c.l.b16 %v1243
      %v1420 = vunpack.c.l.b16 %v1244
      %v1421 = vunpack.c.l.b16 %v1245
      %v1422 = vpack.c.b16 %v1407, %v1406
      %v1423 = vpack.c.b16 %v1409, %v1408
      %v1424 = vpack.c.b16 %v1411, %v1410
      %v1425 = vpack.c.b16 %v1413, %v1412
      %v1426 = vpack.c.b16 %v1415, %v1414
      %v1427 = vpack.c.b16 %v1417, %v1416
      %v1428 = vpack.c.b16 %v1419, %v1418
      %v1429 = vpack.c.b16 %v1421, %v1420
      %1438 = vmatprep.subr.bf16.mxu0 0
      %1439 = vmatpush1.bf16.msra.mxu0 %v1429
      %1440 = vmatprep.subr.bf16.mxu0 0
      %1441 = vmatpush1.bf16.msra.mxu0 %v1428
      %1442 = vmatprep.subr.bf16.mxu0 0
      %1443 = vmatpush1.bf16.msra.mxu0 %v1427
      %1444 = vmatprep.subr.bf16.mxu0 0
      %1445 = vmatpush1.bf16.msra.mxu0 %v1426
      %1446 = vmatprep.subr.bf16.mxu0 0
      %1447 = vmatpush1.bf16.msra.mxu0 %v1425
      %1448 = vmatprep.subr.bf16.mxu0 0
      %1449 = vmatpush1.bf16.msra.mxu0 %v1424
      %1450 = vmatprep.subr.bf16.mxu0 0
      %1451 = vmatpush1.bf16.msra.mxu0 %v1423
      %1452 = vmatprep.subr.bf16.mxu0 0
      %1453 = vmatpush1.bf16.msra.mxu0 %v1422
      %1454 = vmatprep.subr.bf16.mxu0 0
      %1455 = vmatpush2.bf16.msra.mxu0 0
      %1456 = vmatprep.subr.bf16.mxu0 0
      %1457 = vmatpush2.bf16.msra.mxu0 0
      %1458 = vmatprep.subr.bf16.mxu0 0
      %1459 = vmatpush2.bf16.msra.mxu0 0
      %1460 = vmatprep.subr.bf16.mxu0 0
      %1461 = vmatpush2.bf16.msra.mxu0 0
      %1462 = vmatprep.subr.bf16.mxu0 0
      %1463 = vmatpush2.bf16.msra.mxu0 0
      %1464 = vmatprep.subr.bf16.mxu0 0
      %1465 = vmatpush2.bf16.msra.mxu0 0
      %1466 = vmatprep.subr.bf16.mxu0 0
      %1467 = vmatpush2.bf16.msra.mxu0 0
      %1468 = vmatprep.subr.bf16.mxu0 0
      %1469 = vmatpush2.bf16.msra.mxu0 0
      %1470 = vmatprep.mubr.bf16.mxu0 0
      %1471 = vmatmul.mubr.bf16.gmra.mxu0 %v1342
      %v1472 = vpop.f32.mrf.mxu0
      %v1473 = vadd.f32 0.0, %v1472
      %v1474 = vpop.f32.mrf.mxu0
      %v1475 = vpop.f32.mrf.mxu0
      %v1476 = vadd.f32 0.0, %v1475
      %v1477 = vpop.f32.mrf.mxu0
      %1478 = vmatprep.mubr.bf16.mxu0 0
      %1479 = vmatmul.mubr.bf16.gmra.mxu0 %v1343
      %v1480 = vpop.f32.mrf.mxu0
      %v1481 = vadd.f32 0.0, %v1480
      %v1482 = vpop.f32.mrf.mxu0
      %v1483 = vpop.f32.mrf.mxu0
      %v1484 = vadd.f32 0.0, %v1483
      %v1485 = vpop.f32.mrf.mxu0
      %1486 = vmatprep.mubr.bf16.mxu0 0
      %1487 = vmatmul.mubr.bf16.gmra.mxu0 %v1344
      %v1488 = vpop.f32.mrf.mxu0
      %v1489 = vadd.f32 0.0, %v1488
      %v1490 = vpop.f32.mrf.mxu0
      %v1491 = vpop.f32.mrf.mxu0
      %v1492 = vadd.f32 0.0, %v1491
      %v1493 = vpop.f32.mrf.mxu0
      %1494 = vmatprep.mubr.bf16.mxu0 0
      %1495 = vmatmul.mubr.bf16.gmra.mxu0 %v1345
      %v1496 = vpop.f32.mrf.mxu0
      %v1497 = vadd.f32 0.0, %v1496
      %v1498 = vpop.f32.mrf.mxu0
      %v1499 = vpop.f32.mrf.mxu0
      %v1500 = vadd.f32 0.0, %v1499
      %v1501 = vpop.f32.mrf.mxu0
      %1502 = vmatprep.mubr.bf16.mxu0 0
      %1503 = vmatmul.mubr.bf16.gmra.mxu0 %v1346
      %v1504 = vpop.f32.mrf.mxu0
      %v1505 = vadd.f32 0.0, %v1504
      %v1506 = vpop.f32.mrf.mxu0
      %v1507 = vpop.f32.mrf.mxu0
      %v1508 = vadd.f32 0.0, %v1507
      %v1509 = vpop.f32.mrf.mxu0
      %1510 = vmatprep.mubr.bf16.mxu0 0
      %1511 = vmatmul.mubr.bf16.gmra.mxu0 %v1347
      %v1512 = vpop.f32.mrf.mxu0
      %v1513 = vadd.f32 0.0, %v1512
      %v1514 = vpop.f32.mrf.mxu0
      %v1515 = vpop.f32.mrf.mxu0
      %v1516 = vadd.f32 0.0, %v1515
      %v1517 = vpop.f32.mrf.mxu0
      %1518 = vmatprep.mubr.bf16.mxu0 0
      %1519 = vmatmul.mubr.bf16.gmra.mxu0 %v1348
      %v1520 = vpop.f32.mrf.mxu0
      %v1521 = vadd.f32 0.0, %v1520
      %v1522 = vpop.f32.mrf.mxu0
      %v1523 = vpop.f32.mrf.mxu0
      %v1524 = vadd.f32 0.0, %v1523
      %v1525 = vpop.f32.mrf.mxu0
      %1526 = vmatprep.mubr.bf16.mxu0 0
      %1527 = vmatmul.mubr.bf16.gmra.mxu0 %v1349
      %v1528 = vpop.f32.mrf.mxu0
      %v1529 = vadd.f32 0.0, %v1528
      %v1530 = vpop.f32.mrf.mxu0
      %v1531 = vpop.f32.mrf.mxu0
      %v1532 = vadd.f32 0.0, %v1531
      %v1533 = vpop.f32.mrf.mxu0
      %1534 = vmatprep.mubr.bf16.mxu0 0
      %1535 = vmatmul.mubr.bf16.gmra.mxu0 %v1350
      %v1536 = vpop.f32.mrf.mxu0
      %v1537 = vadd.f32 0.0, %v1536
      %v1538 = vpop.f32.mrf.mxu0
      %v1539 = vpop.f32.mrf.mxu0
      %v1540 = vadd.f32 0.0, %v1539
      %v1541 = vpop.f32.mrf.mxu0
      %1542 = vmatprep.mubr.bf16.mxu0 0
      %1543 = vmatmul.mubr.bf16.gmra.mxu0 %v1351
      %v1544 = vpop.f32.mrf.mxu0
      %v1545 = vadd.f32 0.0, %v1544
      %v1546 = vpop.f32.mrf.mxu0
      %v1547 = vpop.f32.mrf.mxu0
      %v1548 = vadd.f32 0.0, %v1547
      %v1549 = vpop.f32.mrf.mxu0
      %1550 = vmatprep.mubr.bf16.mxu0 0
      %1551 = vmatmul.mubr.bf16.gmra.mxu0 %v1352
      %v1552 = vpop.f32.mrf.mxu0
      %v1553 = vadd.f32 0.0, %v1552
      %v1554 = vpop.f32.mrf.mxu0
      %v1555 = vpop.f32.mrf.mxu0
      %v1556 = vadd.f32 0.0, %v1555
      %v1557 = vpop.f32.mrf.mxu0
      %1558 = vmatprep.mubr.bf16.mxu0 0
      %1559 = vmatmul.mubr.bf16.gmra.mxu0 %v1353
      %v1560 = vpop.f32.mrf.mxu0
      %v1561 = vadd.f32 0.0, %v1560
      %v1562 = vpop.f32.mrf.mxu0
      %v1563 = vpop.f32.mrf.mxu0
      %v1564 = vadd.f32 0.0, %v1563
      %v1565 = vpop.f32.mrf.mxu0
      %1566 = vmatprep.mubr.bf16.mxu0 0
      %1567 = vmatmul.mubr.bf16.gmra.mxu0 %v1354
      %v1568 = vpop.f32.mrf.mxu0
      %v1569 = vadd.f32 0.0, %v1568
      %v1570 = vpop.f32.mrf.mxu0
      %v1571 = vpop.f32.mrf.mxu0
      %v1572 = vadd.f32 0.0, %v1571
      %v1573 = vpop.f32.mrf.mxu0
      %1574 = vmatprep.mubr.bf16.mxu0 0
      %1575 = vmatmul.mubr.bf16.gmra.mxu0 %v1355
      %v1576 = vpop.f32.mrf.mxu0
      %v1577 = vadd.f32 0.0, %v1576
      %v1578 = vpop.f32.mrf.mxu0
      %v1579 = vpop.f32.mrf.mxu0
      %v1580 = vadd.f32 0.0, %v1579
      %v1581 = vpop.f32.mrf.mxu0
      %1582 = vmatprep.mubr.bf16.mxu0 0
      %1583 = vmatmul.mubr.bf16.gmra.mxu0 %v1356
      %v1584 = vpop.f32.mrf.mxu0
      %v1585 = vadd.f32 0.0, %v1584
      %v1586 = vpop.f32.mrf.mxu0
      %v1587 = vpop.f32.mrf.mxu0
      %v1588 = vadd.f32 0.0, %v1587
      %v1589 = vpop.f32.mrf.mxu0
      %1590 = vmatprep.mubr.bf16.mxu0 0
      %1591 = vmatmul.mubr.bf16.gmra.mxu0 %v1357
      %v1592 = vpop.f32.mrf.mxu0
      %v1593 = vadd.f32 0.0, %v1592
      %v1594 = vpop.f32.mrf.mxu0
      %v1595 = vpop.f32.mrf.mxu0
      %v1596 = vadd.f32 0.0, %v1595
      %v1597 = vpop.f32.mrf.mxu0
      %1598 = vmatprep.mubr.bf16.mxu0 0
      %1599 = vmatmul.mubr.bf16.gmra.mxu0 %v1358
      %v1600 = vpop.f32.mrf.mxu0
      %v1601 = vadd.f32 0.0, %v1600
      %v1602 = vpop.f32.mrf.mxu0
      %v1603 = vpop.f32.mrf.mxu0
      %v1604 = vadd.f32 0.0, %v1603
      %v1605 = vpop.f32.mrf.mxu0
      %1606 = vmatprep.mubr.bf16.mxu0 0
      %1607 = vmatmul.mubr.bf16.gmra.mxu0 %v1359
      %v1608 = vpop.f32.mrf.mxu0
      %v1609 = vadd.f32 0.0, %v1608
      %v1610 = vpop.f32.mrf.mxu0
      %v1611 = vpop.f32.mrf.mxu0
      %v1612 = vadd.f32 0.0, %v1611
      %v1613 = vpop.f32.mrf.mxu0
      %1614 = vmatprep.mubr.bf16.mxu0 0
      %1615 = vmatmul.mubr.bf16.gmra.mxu0 %v1360
      %v1616 = vpop.f32.mrf.mxu0
      %v1617 = vadd.f32 0.0, %v1616
      %v1618 = vpop.f32.mrf.mxu0
      %v1619 = vpop.f32.mrf.mxu0
      %v1620 = vadd.f32 0.0, %v1619
      %v1621 = vpop.f32.mrf.mxu0
      %1622 = vmatprep.mubr.bf16.mxu0 0
      %1623 = vmatmul.mubr.bf16.gmra.mxu0 %v1361
      %v1624 = vpop.f32.mrf.mxu0
      %v1625 = vadd.f32 0.0, %v1624
      %v1626 = vpop.f32.mrf.mxu0
      %v1627 = vpop.f32.mrf.mxu0
      %v1628 = vadd.f32 0.0, %v1627
      %v1629 = vpop.f32.mrf.mxu0
      %1630 = vmatprep.mubr.bf16.mxu0 0
      %1631 = vmatmul.mubr.bf16.gmra.mxu0 %v1362
      %v1632 = vpop.f32.mrf.mxu0
      %v1633 = vadd.f32 0.0, %v1632
      %v1634 = vpop.f32.mrf.mxu0
      %v1635 = vpop.f32.mrf.mxu0
      %v1636 = vadd.f32 0.0, %v1635
      %v1637 = vpop.f32.mrf.mxu0
      %1638 = vmatprep.mubr.bf16.mxu0 0
      %1639 = vmatmul.mubr.bf16.gmra.mxu0 %v1363
      %v1640 = vpop.f32.mrf.mxu0
      %v1641 = vadd.f32 0.0, %v1640
      %v1642 = vpop.f32.mrf.mxu0
      %v1643 = vpop.f32.mrf.mxu0
      %v1644 = vadd.f32 0.0, %v1643
      %v1645 = vpop.f32.mrf.mxu0
      %1646 = vmatprep.mubr.bf16.mxu0 0
      %1647 = vmatmul.mubr.bf16.gmra.mxu0 %v1364
      %v1648 = vpop.f32.mrf.mxu0
      %v1649 = vadd.f32 0.0, %v1648
      %v1650 = vpop.f32.mrf.mxu0
      %v1651 = vpop.f32.mrf.mxu0
      %v1652 = vadd.f32 0.0, %v1651
      %v1653 = vpop.f32.mrf.mxu0
      %1654 = vmatprep.mubr.bf16.mxu0 0
      %1655 = vmatmul.mubr.bf16.gmra.mxu0 %v1365
      %v1656 = vpop.f32.mrf.mxu0
      %v1657 = vadd.f32 0.0, %v1656
      %v1658 = vpop.f32.mrf.mxu0
      %v1659 = vpop.f32.mrf.mxu0
      %v1660 = vadd.f32 0.0, %v1659
      %v1661 = vpop.f32.mrf.mxu0
      %1662 = vdwg.mxu0
      %v1663 = vadd.f32 %v990, %v1473
      %v1664 = vadd.f32 %v993, %v1476
      %v1665 = vadd.f32 %v998, %v1481
      %v1666 = vadd.f32 %v1001, %v1484
      %v1667 = vadd.f32 %v1006, %v1489
      %v1668 = vadd.f32 %v1009, %v1492
      %v1669 = vadd.f32 %v1014, %v1497
      %v1670 = vadd.f32 %v1017, %v1500
      %v1671 = vadd.f32 %v1022, %v1505
      %v1672 = vadd.f32 %v1025, %v1508
      %v1673 = vadd.f32 %v1030, %v1513
      %v1674 = vadd.f32 %v1033, %v1516
      %v1675 = vadd.f32 %v1038, %v1521
      %v1676 = vadd.f32 %v1041, %v1524
      %v1677 = vadd.f32 %v1046, %v1529
      %v1678 = vadd.f32 %v1049, %v1532
      %v1679 = vadd.f32 %v1054, %v1537
      %v1680 = vadd.f32 %v1057, %v1540
      %v1681 = vadd.f32 %v1062, %v1545
      %v1682 = vadd.f32 %v1065, %v1548
      %v1683 = vadd.f32 %v1070, %v1553
      %v1684 = vadd.f32 %v1073, %v1556
      %v1685 = vadd.f32 %v1078, %v1561
      %v1686 = vadd.f32 %v1081, %v1564
      %v1687 = vadd.f32 %v1086, %v1569
      %v1688 = vadd.f32 %v1089, %v1572
      %v1689 = vadd.f32 %v1094, %v1577
      %v1690 = vadd.f32 %v1097, %v1580
      %v1691 = vadd.f32 %v1102, %v1585
      %v1692 = vadd.f32 %v1105, %v1588
      %v1693 = vadd.f32 %v1110, %v1593
      %v1694 = vadd.f32 %v1113, %v1596
      %v1695 = vadd.f32 %v1118, %v1601
      %v1696 = vadd.f32 %v1121, %v1604
      %v1697 = vadd.f32 %v1126, %v1609
      %v1698 = vadd.f32 %v1129, %v1612
      %v1699 = vadd.f32 %v1134, %v1617
      %v1700 = vadd.f32 %v1137, %v1620
      %v1701 = vadd.f32 %v1142, %v1625
      %v1702 = vadd.f32 %v1145, %v1628
      %v1703 = vadd.f32 %v1150, %v1633
      %v1704 = vadd.f32 %v1153, %v1636
      %v1705 = vadd.f32 %v1158, %v1641
      %v1706 = vadd.f32 %v1161, %v1644
      %v1707 = vadd.f32 %v1166, %v1649
      %v1708 = vadd.f32 %v1169, %v1652
      %v1709 = vadd.f32 %v1174, %v1657
      %v1710 = vadd.f32 %v1177, %v1660
      %v1711 = vrot.slane %v1663, 7
      %v1712 = vrot.slane %v1664, 7
      %v1713 = vrot.slane %v1665, 7
      %v1714 = vrot.slane %v1666, 7
      %v1715 = vrot.slane %v1667, 7
      %v1716 = vrot.slane %v1668, 7
      %v1717 = vrot.slane %v1669, 7
      %v1718 = vrot.slane %v1670, 7
      %v1719 = vrot.slane %v1671, 7
      %v1720 = vrot.slane %v1672, 7
      %v1721 = vrot.slane %v1673, 7
      %v1722 = vrot.slane %v1674, 7
      %v1723 = vrot.slane %v1675, 7
      %v1724 = vrot.slane %v1676, 7
      %v1725 = vrot.slane %v1677, 7
      %v1726 = vrot.slane %v1678, 7
      %v1727 = vrot.slane %v1679, 7
      %v1728 = vrot.slane %v1680, 7
      %v1729 = vrot.slane %v1681, 7
      %v1730 = vrot.slane %v1682, 7
      %v1731 = vrot.slane %v1683, 7
      %v1732 = vrot.slane %v1684, 7
      %v1733 = vrot.slane %v1685, 7
      %v1734 = vrot.slane %v1686, 7
      %v1735 = vrot.slane %v1687, 7
      %v1736 = vrot.slane %v1688, 7
      %v1737 = vrot.slane %v1689, 7
      %v1738 = vrot.slane %v1690, 7
      %v1739 = vrot.slane %v1691, 7
      %v1740 = vrot.slane %v1692, 7
      %v1741 = vrot.slane %v1693, 7
      %v1742 = vrot.slane %v1694, 7
      %v1743 = vrot.slane %v1695, 7
      %v1744 = vrot.slane %v1696, 7
      %v1745 = vrot.slane %v1697, 7
      %v1746 = vrot.slane %v1698, 7
      %v1747 = vrot.slane %v1699, 7
      %v1748 = vrot.slane %v1700, 7
      %v1749 = vrot.slane %v1701, 7
      %v1750 = vrot.slane %v1702, 7
      %v1751 = vrot.slane %v1703, 7
      %v1752 = vrot.slane %v1704, 7
      %v1753 = vrot.slane %v1705, 7
      %v1754 = vrot.slane %v1706, 7
      %v1755 = vrot.slane %v1707, 7
      %v1756 = vrot.slane %v1708, 7
      %v1757 = vrot.slane %v1709, 7
      %v1758 = vrot.slane %v1710, 7
      %v1759 = vlaneseq
      %v1760 = vshrl.u32 %v1759, 7
      %vm1761 = vcmp.lt.s32.totalorder %v1760, 1
      %v1762 = vsel %vm1761, %v1757, %v1758
      %v1763 = vsel %vm1761, %v1756, %v1757
      %v1764 = vsel %vm1761, %v1755, %v1756
      %v1765 = vsel %vm1761, %v1754, %v1755
      %v1766 = vsel %vm1761, %v1753, %v1754
      %v1767 = vsel %vm1761, %v1752, %v1753
      %v1768 = vsel %vm1761, %v1751, %v1752
      %v1769 = vsel %vm1761, %v1750, %v1751
      %v1770 = vsel %vm1761, %v1749, %v1750
      %v1771 = vsel %vm1761, %v1748, %v1749
      %v1772 = vsel %vm1761, %v1747, %v1748
      %v1773 = vsel %vm1761, %v1746, %v1747
      %v1774 = vsel %vm1761, %v1745, %v1746
      %v1775 = vsel %vm1761, %v1744, %v1745
      %v1776 = vsel %vm1761, %v1743, %v1744
      %v1777 = vsel %vm1761, %v1742, %v1743
      %v1778 = vsel %vm1761, %v1741, %v1742
      %v1779 = vsel %vm1761, %v1740, %v1741
      %v1780 = vsel %vm1761, %v1739, %v1740
      %v1781 = vsel %vm1761, %v1738, %v1739
      %v1782 = vsel %vm1761, %v1737, %v1738
      %v1783 = vsel %vm1761, %v1736, %v1737
      %v1784 = vsel %vm1761, %v1735, %v1736
      %v1785 = vsel %vm1761, %v1734, %v1735
      %v1786 = vsel %vm1761, %v1733, %v1734
      %v1787 = vsel %vm1761, %v1732, %v1733
      %v1788 = vsel %vm1761, %v1731, %v1732
      %v1789 = vsel %vm1761, %v1730, %v1731
      %v1790 = vsel %vm1761, %v1729, %v1730
      %v1791 = vsel %vm1761, %v1728, %v1729
      %v1792 = vsel %vm1761, %v1727, %v1728
      %v1793 = vsel %vm1761, %v1726, %v1727
      %v1794 = vsel %vm1761, %v1725, %v1726
      %v1795 = vsel %vm1761, %v1724, %v1725
      %v1796 = vsel %vm1761, %v1723, %v1724
      %v1797 = vsel %vm1761, %v1722, %v1723
      %v1798 = vsel %vm1761, %v1721, %v1722
      %v1799 = vsel %vm1761, %v1720, %v1721
      %v1800 = vsel %vm1761, %v1719, %v1720
      %v1801 = vsel %vm1761, %v1718, %v1719
      %v1802 = vsel %vm1761, %v1717, %v1718
      %v1803 = vsel %vm1761, %v1716, %v1717
      %v1804 = vsel %vm1761, %v1715, %v1716
      %v1805 = vsel %vm1761, %v1714, %v1715
      %v1806 = vsel %vm1761, %v1713, %v1714
      %v1807 = vsel %vm1761, %v1712, %v1713
      %v1808 = vsel %vm1761, %v1711, %v1712
      %v1809 = vsel %vm1761, %v1758, %v1711
      %s1810 = scalar_lea.vmem %s1, 64
      %v1811 = vld [vmem:[%s1810] sm:$0xf]
      %v1812 = vld [vmem:[%s1810 + $0x4] sm:$0xf]
      %v1813 = vld [vmem:[%s1810 + $0x8] sm:$0xf]
      %v1814 = vld [vmem:[%s1810 + $0xc] sm:$0xf]
      %v1815 = vld [vmem:[%s1810 + $0x10] sm:$0xf]
      %v1816 = vld [vmem:[%s1810 + $0x14] sm:$0xf]
      %v1817 = vld [vmem:[%s1810 + $0x18] sm:$0xf]
      %v1818 = vld [vmem:[%s1810 + $0x1c] sm:$0xf]
      %v1819 = vld [vmem:[%s1810 + $0x20] sm:$0xf]
      %v1820 = vld [vmem:[%s1810 + $0x24] sm:$0xf]
      %v1821 = vld [vmem:[%s1810 + $0x28] sm:$0xf]
      %v1822 = vld [vmem:[%s1810 + $0x2c] sm:$0xf]
      %v1823 = vld [vmem:[%s1810 + $0x30] sm:$0xf]
      %v1824 = vld [vmem:[%s1810 + $0x34] sm:$0xf]
      %v1825 = vld [vmem:[%s1810 + $0x38] sm:$0xf]
      %v1826 = vld [vmem:[%s1810 + $0x3c] sm:$0xf]
      %s1827 = scalar_lea.vmem %s1, 256
      %v1828 = vld [vmem:[%s1827] sm:$0xf]
      %v1829 = vld [vmem:[%s1827 + $0x4] sm:$0xf]
      %v1830 = vld [vmem:[%s1827 + $0x8] sm:$0xf]
      %v1831 = vld [vmem:[%s1827 + $0xc] sm:$0xf]
      %v1832 = vld [vmem:[%s1827 + $0x10] sm:$0xf]
      %v1833 = vld [vmem:[%s1827 + $0x14] sm:$0xf]
      %v1834 = vld [vmem:[%s1827 + $0x18] sm:$0xf]
      %v1835 = vld [vmem:[%s1827 + $0x1c] sm:$0xf]
      %v1836 = vld [vmem:[%s1827 + $0x20] sm:$0xf]
      %v1837 = vld [vmem:[%s1827 + $0x24] sm:$0xf]
      %v1838 = vld [vmem:[%s1827 + $0x28] sm:$0xf]
      %v1839 = vld [vmem:[%s1827 + $0x2c] sm:$0xf]
      %v1840 = vld [vmem:[%s1827 + $0x30] sm:$0xf]
      %v1841 = vld [vmem:[%s1827 + $0x34] sm:$0xf]
      %v1842 = vld [vmem:[%s1827 + $0x38] sm:$0xf]
      %v1843 = vld [vmem:[%s1827 + $0x3c] sm:$0xf]
      %v1860 = vunpack.c.l.b16 %v1828
      %v1861 = vunpack.c.l.b16 %v1829
      %v1862 = vunpack.c.l.b16 %v1830
      %v1863 = vunpack.c.l.b16 %v1831
      %v1864 = vunpack.c.l.b16 %v1832
      %v1865 = vunpack.c.l.b16 %v1833
      %v1866 = vunpack.c.l.b16 %v1834
      %v1867 = vunpack.c.l.b16 %v1835
      %v1868 = vunpack.c.l.b16 %v1836
      %v1869 = vunpack.c.l.b16 %v1837
      %v1870 = vunpack.c.l.b16 %v1838
      %v1871 = vunpack.c.l.b16 %v1839
      %v1872 = vunpack.c.l.b16 %v1840
      %v1873 = vunpack.c.l.b16 %v1841
      %v1874 = vunpack.c.l.b16 %v1842
      %v1875 = vunpack.c.l.b16 %v1843
      %v1876 = vpack.c.b16 %v1861, %v1860
      %v1877 = vpack.c.b16 %v1863, %v1862
      %v1878 = vpack.c.b16 %v1865, %v1864
      %v1879 = vpack.c.b16 %v1867, %v1866
      %v1880 = vpack.c.b16 %v1869, %v1868
      %v1881 = vpack.c.b16 %v1871, %v1870
      %v1882 = vpack.c.b16 %v1873, %v1872
      %v1883 = vpack.c.b16 %v1875, %v1874
      %1892 = vmatprep.subr.bf16.mxu0 0
      %1893 = vmatpush1.bf16.msra.mxu0 %v1883
      %1894 = vmatprep.subr.bf16.mxu0 0
      %1895 = vmatpush1.bf16.msra.mxu0 %v1882
      %1896 = vmatprep.subr.bf16.mxu0 0
      %1897 = vmatpush1.bf16.msra.mxu0 %v1881
      %1898 = vmatprep.subr.bf16.mxu0 0
      %1899 = vmatpush1.bf16.msra.mxu0 %v1880
      %1900 = vmatprep.subr.bf16.mxu0 0
      %1901 = vmatpush1.bf16.msra.mxu0 %v1879
      %1902 = vmatprep.subr.bf16.mxu0 0
      %1903 = vmatpush1.bf16.msra.mxu0 %v1878
      %1904 = vmatprep.subr.bf16.mxu0 0
      %1905 = vmatpush1.bf16.msra.mxu0 %v1877
      %1906 = vmatprep.subr.bf16.mxu0 0
      %1907 = vmatpush1.bf16.msra.mxu0 %v1876
      %1908 = vmatprep.subr.bf16.mxu0 0
      %1909 = vmatpush2.bf16.msra.mxu0 0
      %1910 = vmatprep.subr.bf16.mxu0 0
      %1911 = vmatpush2.bf16.msra.mxu0 0
      %1912 = vmatprep.subr.bf16.mxu0 0
      %1913 = vmatpush2.bf16.msra.mxu0 0
      %1914 = vmatprep.subr.bf16.mxu0 0
      %1915 = vmatpush2.bf16.msra.mxu0 0
      %1916 = vmatprep.subr.bf16.mxu0 0
      %1917 = vmatpush2.bf16.msra.mxu0 0
      %1918 = vmatprep.subr.bf16.mxu0 0
      %1919 = vmatpush2.bf16.msra.mxu0 0
      %1920 = vmatprep.subr.bf16.mxu0 0
      %1921 = vmatpush2.bf16.msra.mxu0 0
      %1922 = vmatprep.subr.bf16.mxu0 0
      %1923 = vmatpush2.bf16.msra.mxu0 0
      %1924 = vmatprep.mubr.bf16.mxu0 0
      %1925 = vmatmul.mubr.bf16.gmra.mxu0 %v442
      %v1926 = vpop.f32.mrf.mxu0
      %v1927 = vadd.f32 0.0, %v1926
      %v1928 = vpop.f32.mrf.mxu0
      %v1929 = vpop.f32.mrf.mxu0
      %v1930 = vadd.f32 0.0, %v1929
      %v1931 = vpop.f32.mrf.mxu0
      %1932 = vmatprep.mubr.bf16.mxu0 0
      %1933 = vmatmul.mubr.bf16.gmra.mxu0 %v443
      %v1934 = vpop.f32.mrf.mxu0
      %v1935 = vadd.f32 0.0, %v1934
      %v1936 = vpop.f32.mrf.mxu0
      %v1937 = vpop.f32.mrf.mxu0
      %v1938 = vadd.f32 0.0, %v1937
      %v1939 = vpop.f32.mrf.mxu0
      %1940 = vmatprep.mubr.bf16.mxu0 0
      %1941 = vmatmul.mubr.bf16.gmra.mxu0 %v444
      %v1942 = vpop.f32.mrf.mxu0
      %v1943 = vadd.f32 0.0, %v1942
      %v1944 = vpop.f32.mrf.mxu0
      %v1945 = vpop.f32.mrf.mxu0
      %v1946 = vadd.f32 0.0, %v1945
      %v1947 = vpop.f32.mrf.mxu0
      %1948 = vmatprep.mubr.bf16.mxu0 0
      %1949 = vmatmul.mubr.bf16.gmra.mxu0 %v445
      %v1950 = vpop.f32.mrf.mxu0
      %v1951 = vadd.f32 0.0, %v1950
      %v1952 = vpop.f32.mrf.mxu0
      %v1953 = vpop.f32.mrf.mxu0
      %v1954 = vadd.f32 0.0, %v1953
      %v1955 = vpop.f32.mrf.mxu0
      %1956 = vmatprep.mubr.bf16.mxu0 0
      %1957 = vmatmul.mubr.bf16.gmra.mxu0 %v446
      %v1958 = vpop.f32.mrf.mxu0
      %v1959 = vadd.f32 0.0, %v1958
      %v1960 = vpop.f32.mrf.mxu0
      %v1961 = vpop.f32.mrf.mxu0
      %v1962 = vadd.f32 0.0, %v1961
      %v1963 = vpop.f32.mrf.mxu0
      %1964 = vmatprep.mubr.bf16.mxu0 0
      %1965 = vmatmul.mubr.bf16.gmra.mxu0 %v447
      %v1966 = vpop.f32.mrf.mxu0
      %v1967 = vadd.f32 0.0, %v1966
      %v1968 = vpop.f32.mrf.mxu0
      %v1969 = vpop.f32.mrf.mxu0
      %v1970 = vadd.f32 0.0, %v1969
      %v1971 = vpop.f32.mrf.mxu0
      %1972 = vmatprep.mubr.bf16.mxu0 0
      %1973 = vmatmul.mubr.bf16.gmra.mxu0 %v448
      %v1974 = vpop.f32.mrf.mxu0
      %v1975 = vadd.f32 0.0, %v1974
      %v1976 = vpop.f32.mrf.mxu0
      %v1977 = vpop.f32.mrf.mxu0
      %v1978 = vadd.f32 0.0, %v1977
      %v1979 = vpop.f32.mrf.mxu0
      %1980 = vmatprep.mubr.bf16.mxu0 0
      %1981 = vmatmul.mubr.bf16.gmra.mxu0 %v449
      %v1982 = vpop.f32.mrf.mxu0
      %v1983 = vadd.f32 0.0, %v1982
      %v1984 = vpop.f32.mrf.mxu0
      %v1985 = vpop.f32.mrf.mxu0
      %v1986 = vadd.f32 0.0, %v1985
      %v1987 = vpop.f32.mrf.mxu0
      %1988 = vmatprep.mubr.bf16.mxu0 0
      %1989 = vmatmul.mubr.bf16.gmra.mxu0 %v450
      %v1990 = vpop.f32.mrf.mxu0
      %v1991 = vadd.f32 0.0, %v1990
      %v1992 = vpop.f32.mrf.mxu0
      %v1993 = vpop.f32.mrf.mxu0
      %v1994 = vadd.f32 0.0, %v1993
      %v1995 = vpop.f32.mrf.mxu0
      %1996 = vmatprep.mubr.bf16.mxu0 0
      %1997 = vmatmul.mubr.bf16.gmra.mxu0 %v451
      %v1998 = vpop.f32.mrf.mxu0
      %v1999 = vadd.f32 0.0, %v1998
      %v2000 = vpop.f32.mrf.mxu0
      %v2001 = vpop.f32.mrf.mxu0
      %v2002 = vadd.f32 0.0, %v2001
      %v2003 = vpop.f32.mrf.mxu0
      %2004 = vmatprep.mubr.bf16.mxu0 0
      %2005 = vmatmul.mubr.bf16.gmra.mxu0 %v452
      %v2006 = vpop.f32.mrf.mxu0
      %v2007 = vadd.f32 0.0, %v2006
      %v2008 = vpop.f32.mrf.mxu0
      %v2009 = vpop.f32.mrf.mxu0
      %v2010 = vadd.f32 0.0, %v2009
      %v2011 = vpop.f32.mrf.mxu0
      %2012 = vmatprep.mubr.bf16.mxu0 0
      %2013 = vmatmul.mubr.bf16.gmra.mxu0 %v453
      %v2014 = vpop.f32.mrf.mxu0
      %v2015 = vadd.f32 0.0, %v2014
      %v2016 = vpop.f32.mrf.mxu0
      %v2017 = vpop.f32.mrf.mxu0
      %v2018 = vadd.f32 0.0, %v2017
      %v2019 = vpop.f32.mrf.mxu0
      %2020 = vmatprep.mubr.bf16.mxu0 0
      %2021 = vmatmul.mubr.bf16.gmra.mxu0 %v454
      %v2022 = vpop.f32.mrf.mxu0
      %v2023 = vadd.f32 0.0, %v2022
      %v2024 = vpop.f32.mrf.mxu0
      %v2025 = vpop.f32.mrf.mxu0
      %v2026 = vadd.f32 0.0, %v2025
      %v2027 = vpop.f32.mrf.mxu0
      %2028 = vmatprep.mubr.bf16.mxu0 0
      %2029 = vmatmul.mubr.bf16.gmra.mxu0 %v455
      %v2030 = vpop.f32.mrf.mxu0
      %v2031 = vadd.f32 0.0, %v2030
      %v2032 = vpop.f32.mrf.mxu0
      %v2033 = vpop.f32.mrf.mxu0
      %v2034 = vadd.f32 0.0, %v2033
      %v2035 = vpop.f32.mrf.mxu0
      %2036 = vmatprep.mubr.bf16.mxu0 0
      %2037 = vmatmul.mubr.bf16.gmra.mxu0 %v456
      %v2038 = vpop.f32.mrf.mxu0
      %v2039 = vadd.f32 0.0, %v2038
      %v2040 = vpop.f32.mrf.mxu0
      %v2041 = vpop.f32.mrf.mxu0
      %v2042 = vadd.f32 0.0, %v2041
      %v2043 = vpop.f32.mrf.mxu0
      %2044 = vmatprep.mubr.bf16.mxu0 0
      %2045 = vmatmul.mubr.bf16.gmra.mxu0 %v457
      %v2046 = vpop.f32.mrf.mxu0
      %v2047 = vadd.f32 0.0, %v2046
      %v2048 = vpop.f32.mrf.mxu0
      %v2049 = vpop.f32.mrf.mxu0
      %v2050 = vadd.f32 0.0, %v2049
      %v2051 = vpop.f32.mrf.mxu0
      %2052 = vmatprep.mubr.bf16.mxu0 0
      %2053 = vmatmul.mubr.bf16.gmra.mxu0 %v458
      %v2054 = vpop.f32.mrf.mxu0
      %v2055 = vadd.f32 0.0, %v2054
      %v2056 = vpop.f32.mrf.mxu0
      %v2057 = vpop.f32.mrf.mxu0
      %v2058 = vadd.f32 0.0, %v2057
      %v2059 = vpop.f32.mrf.mxu0
      %2060 = vmatprep.mubr.bf16.mxu0 0
      %2061 = vmatmul.mubr.bf16.gmra.mxu0 %v459
      %v2062 = vpop.f32.mrf.mxu0
      %v2063 = vadd.f32 0.0, %v2062
      %v2064 = vpop.f32.mrf.mxu0
      %v2065 = vpop.f32.mrf.mxu0
      %v2066 = vadd.f32 0.0, %v2065
      %v2067 = vpop.f32.mrf.mxu0
      %2068 = vmatprep.mubr.bf16.mxu0 0
      %2069 = vmatmul.mubr.bf16.gmra.mxu0 %v460
      %v2070 = vpop.f32.mrf.mxu0
      %v2071 = vadd.f32 0.0, %v2070
      %v2072 = vpop.f32.mrf.mxu0
      %v2073 = vpop.f32.mrf.mxu0
      %v2074 = vadd.f32 0.0, %v2073
      %v2075 = vpop.f32.mrf.mxu0
      %2076 = vmatprep.mubr.bf16.mxu0 0
      %2077 = vmatmul.mubr.bf16.gmra.mxu0 %v461
      %v2078 = vpop.f32.mrf.mxu0
      %v2079 = vadd.f32 0.0, %v2078
      %v2080 = vpop.f32.mrf.mxu0
      %v2081 = vpop.f32.mrf.mxu0
      %v2082 = vadd.f32 0.0, %v2081
      %v2083 = vpop.f32.mrf.mxu0
      %2084 = vmatprep.mubr.bf16.mxu0 0
      %2085 = vmatmul.mubr.bf16.gmra.mxu0 %v462
      %v2086 = vpop.f32.mrf.mxu0
      %v2087 = vadd.f32 0.0, %v2086
      %v2088 = vpop.f32.mrf.mxu0
      %v2089 = vpop.f32.mrf.mxu0
      %v2090 = vadd.f32 0.0, %v2089
      %v2091 = vpop.f32.mrf.mxu0
      %2092 = vmatprep.mubr.bf16.mxu0 0
      %2093 = vmatmul.mubr.bf16.gmra.mxu0 %v463
      %v2094 = vpop.f32.mrf.mxu0
      %v2095 = vadd.f32 0.0, %v2094
      %v2096 = vpop.f32.mrf.mxu0
      %v2097 = vpop.f32.mrf.mxu0
      %v2098 = vadd.f32 0.0, %v2097
      %v2099 = vpop.f32.mrf.mxu0
      %2100 = vmatprep.mubr.bf16.mxu0 0
      %2101 = vmatmul.mubr.bf16.gmra.mxu0 %v464
      %v2102 = vpop.f32.mrf.mxu0
      %v2103 = vadd.f32 0.0, %v2102
      %v2104 = vpop.f32.mrf.mxu0
      %v2105 = vpop.f32.mrf.mxu0
      %v2106 = vadd.f32 0.0, %v2105
      %v2107 = vpop.f32.mrf.mxu0
      %2108 = vmatprep.mubr.bf16.mxu0 0
      %2109 = vmatmul.mubr.bf16.gmra.mxu0 %v465
      %v2110 = vpop.f32.mrf.mxu0
      %v2111 = vadd.f32 0.0, %v2110
      %v2112 = vpop.f32.mrf.mxu0
      %v2113 = vpop.f32.mrf.mxu0
      %v2114 = vadd.f32 0.0, %v2113
      %v2115 = vpop.f32.mrf.mxu0
      %2116 = vdwg.mxu0
      %v2133 = vunpack.c.l.b16 %v1811
      %v2134 = vunpack.c.l.b16 %v1812
      %v2135 = vunpack.c.l.b16 %v1813
      %v2136 = vunpack.c.l.b16 %v1814
      %v2137 = vunpack.c.l.b16 %v1815
      %v2138 = vunpack.c.l.b16 %v1816
      %v2139 = vunpack.c.l.b16 %v1817
      %v2140 = vunpack.c.l.b16 %v1818
      %v2141 = vunpack.c.l.b16 %v1819
      %v2142 = vunpack.c.l.b16 %v1820
      %v2143 = vunpack.c.l.b16 %v1821
      %v2144 = vunpack.c.l.b16 %v1822
      %v2145 = vunpack.c.l.b16 %v1823
      %v2146 = vunpack.c.l.b16 %v1824
      %v2147 = vunpack.c.l.b16 %v1825
      %v2148 = vunpack.c.l.b16 %v1826
      %v2149 = vpack.c.b16 %v2134, %v2133
      %v2150 = vpack.c.b16 %v2136, %v2135
      %v2151 = vpack.c.b16 %v2138, %v2137
      %v2152 = vpack.c.b16 %v2140, %v2139
      %v2153 = vpack.c.b16 %v2142, %v2141
      %v2154 = vpack.c.b16 %v2144, %v2143
      %v2155 = vpack.c.b16 %v2146, %v2145
      %v2156 = vpack.c.b16 %v2148, %v2147
      %2165 = vmatprep.subr.bf16.mxu0 0
      %2166 = vmatpush1.bf16.msra.mxu0 %v2156
      %2167 = vmatprep.subr.bf16.mxu0 0
      %2168 = vmatpush1.bf16.msra.mxu0 %v2155
      %2169 = vmatprep.subr.bf16.mxu0 0
      %2170 = vmatpush1.bf16.msra.mxu0 %v2154
      %2171 = vmatprep.subr.bf16.mxu0 0
      %2172 = vmatpush1.bf16.msra.mxu0 %v2153
      %2173 = vmatprep.subr.bf16.mxu0 0
      %2174 = vmatpush1.bf16.msra.mxu0 %v2152
      %2175 = vmatprep.subr.bf16.mxu0 0
      %2176 = vmatpush1.bf16.msra.mxu0 %v2151
      %2177 = vmatprep.subr.bf16.mxu0 0
      %2178 = vmatpush1.bf16.msra.mxu0 %v2150
      %2179 = vmatprep.subr.bf16.mxu0 0
      %2180 = vmatpush1.bf16.msra.mxu0 %v2149
      %2181 = vmatprep.subr.bf16.mxu0 0
      %2182 = vmatpush2.bf16.msra.mxu0 0
      %2183 = vmatprep.subr.bf16.mxu0 0
      %2184 = vmatpush2.bf16.msra.mxu0 0
      %2185 = vmatprep.subr.bf16.mxu0 0
      %2186 = vmatpush2.bf16.msra.mxu0 0
      %2187 = vmatprep.subr.bf16.mxu0 0
      %2188 = vmatpush2.bf16.msra.mxu0 0
      %2189 = vmatprep.subr.bf16.mxu0 0
      %2190 = vmatpush2.bf16.msra.mxu0 0
      %2191 = vmatprep.subr.bf16.mxu0 0
      %2192 = vmatpush2.bf16.msra.mxu0 0
      %2193 = vmatprep.subr.bf16.mxu0 0
      %2194 = vmatpush2.bf16.msra.mxu0 0
      %2195 = vmatprep.subr.bf16.mxu0 0
      %2196 = vmatpush2.bf16.msra.mxu0 0
      %2197 = vmatprep.mubr.bf16.mxu0 0
      %2198 = vmatmul.mubr.bf16.gmra.mxu0 %v859
      %v2199 = vpop.f32.mrf.mxu0
      %v2200 = vadd.f32 %v1927, %v2199
      %v2201 = vpop.f32.mrf.mxu0
      %v2202 = vpop.f32.mrf.mxu0
      %v2203 = vadd.f32 %v1930, %v2202
      %v2204 = vpop.f32.mrf.mxu0
      %2205 = vmatprep.mubr.bf16.mxu0 0
      %2206 = vmatmul.mubr.bf16.gmra.mxu0 %v860
      %v2207 = vpop.f32.mrf.mxu0
      %v2208 = vadd.f32 %v1935, %v2207
      %v2209 = vpop.f32.mrf.mxu0
      %v2210 = vpop.f32.mrf.mxu0
      %v2211 = vadd.f32 %v1938, %v2210
      %v2212 = vpop.f32.mrf.mxu0
      %2213 = vmatprep.mubr.bf16.mxu0 0
      %2214 = vmatmul.mubr.bf16.gmra.mxu0 %v861
      %v2215 = vpop.f32.mrf.mxu0
      %v2216 = vadd.f32 %v1943, %v2215
      %v2217 = vpop.f32.mrf.mxu0
      %v2218 = vpop.f32.mrf.mxu0
      %v2219 = vadd.f32 %v1946, %v2218
      %v2220 = vpop.f32.mrf.mxu0
      %2221 = vmatprep.mubr.bf16.mxu0 0
      %2222 = vmatmul.mubr.bf16.gmra.mxu0 %v862
      %v2223 = vpop.f32.mrf.mxu0
      %v2224 = vadd.f32 %v1951, %v2223
      %v2225 = vpop.f32.mrf.mxu0
      %v2226 = vpop.f32.mrf.mxu0
      %v2227 = vadd.f32 %v1954, %v2226
      %v2228 = vpop.f32.mrf.mxu0
      %2229 = vmatprep.mubr.bf16.mxu0 0
      %2230 = vmatmul.mubr.bf16.gmra.mxu0 %v863
      %v2231 = vpop.f32.mrf.mxu0
      %v2232 = vadd.f32 %v1959, %v2231
      %v2233 = vpop.f32.mrf.mxu0
      %v2234 = vpop.f32.mrf.mxu0
      %v2235 = vadd.f32 %v1962, %v2234
      %v2236 = vpop.f32.mrf.mxu0
      %2237 = vmatprep.mubr.bf16.mxu0 0
      %2238 = vmatmul.mubr.bf16.gmra.mxu0 %v864
      %v2239 = vpop.f32.mrf.mxu0
      %v2240 = vadd.f32 %v1967, %v2239
      %v2241 = vpop.f32.mrf.mxu0
      %v2242 = vpop.f32.mrf.mxu0
      %v2243 = vadd.f32 %v1970, %v2242
      %v2244 = vpop.f32.mrf.mxu0
      %2245 = vmatprep.mubr.bf16.mxu0 0
      %2246 = vmatmul.mubr.bf16.gmra.mxu0 %v865
      %v2247 = vpop.f32.mrf.mxu0
      %v2248 = vadd.f32 %v1975, %v2247
      %v2249 = vpop.f32.mrf.mxu0
      %v2250 = vpop.f32.mrf.mxu0
      %v2251 = vadd.f32 %v1978, %v2250
      %v2252 = vpop.f32.mrf.mxu0
      %2253 = vmatprep.mubr.bf16.mxu0 0
      %2254 = vmatmul.mubr.bf16.gmra.mxu0 %v866
      %v2255 = vpop.f32.mrf.mxu0
      %v2256 = vadd.f32 %v1983, %v2255
      %v2257 = vpop.f32.mrf.mxu0
      %v2258 = vpop.f32.mrf.mxu0
      %v2259 = vadd.f32 %v1986, %v2258
      %v2260 = vpop.f32.mrf.mxu0
      %2261 = vmatprep.mubr.bf16.mxu0 0
      %2262 = vmatmul.mubr.bf16.gmra.mxu0 %v867
      %v2263 = vpop.f32.mrf.mxu0
      %v2264 = vadd.f32 %v1991, %v2263
      %v2265 = vpop.f32.mrf.mxu0
      %v2266 = vpop.f32.mrf.mxu0
      %v2267 = vadd.f32 %v1994, %v2266
      %v2268 = vpop.f32.mrf.mxu0
      %2269 = vmatprep.mubr.bf16.mxu0 0
      %2270 = vmatmul.mubr.bf16.gmra.mxu0 %v868
      %v2271 = vpop.f32.mrf.mxu0
      %v2272 = vadd.f32 %v1999, %v2271
      %v2273 = vpop.f32.mrf.mxu0
      %v2274 = vpop.f32.mrf.mxu0
      %v2275 = vadd.f32 %v2002, %v2274
      %v2276 = vpop.f32.mrf.mxu0
      %2277 = vmatprep.mubr.bf16.mxu0 0
      %2278 = vmatmul.mubr.bf16.gmra.mxu0 %v869
      %v2279 = vpop.f32.mrf.mxu0
      %v2280 = vadd.f32 %v2007, %v2279
      %v2281 = vpop.f32.mrf.mxu0
      %v2282 = vpop.f32.mrf.mxu0
      %v2283 = vadd.f32 %v2010, %v2282
      %v2284 = vpop.f32.mrf.mxu0
      %2285 = vmatprep.mubr.bf16.mxu0 0
      %2286 = vmatmul.mubr.bf16.gmra.mxu0 %v870
      %v2287 = vpop.f32.mrf.mxu0
      %v2288 = vadd.f32 %v2015, %v2287
      %v2289 = vpop.f32.mrf.mxu0
      %v2290 = vpop.f32.mrf.mxu0
      %v2291 = vadd.f32 %v2018, %v2290
      %v2292 = vpop.f32.mrf.mxu0
      %2293 = vmatprep.mubr.bf16.mxu0 0
      %2294 = vmatmul.mubr.bf16.gmra.mxu0 %v871
      %v2295 = vpop.f32.mrf.mxu0
      %v2296 = vadd.f32 %v2023, %v2295
      %v2297 = vpop.f32.mrf.mxu0
      %v2298 = vpop.f32.mrf.mxu0
      %v2299 = vadd.f32 %v2026, %v2298
      %v2300 = vpop.f32.mrf.mxu0
      %2301 = vmatprep.mubr.bf16.mxu0 0
      %2302 = vmatmul.mubr.bf16.gmra.mxu0 %v872
      %v2303 = vpop.f32.mrf.mxu0
      %v2304 = vadd.f32 %v2031, %v2303
      %v2305 = vpop.f32.mrf.mxu0
      %v2306 = vpop.f32.mrf.mxu0
      %v2307 = vadd.f32 %v2034, %v2306
      %v2308 = vpop.f32.mrf.mxu0
      %2309 = vmatprep.mubr.bf16.mxu0 0
      %2310 = vmatmul.mubr.bf16.gmra.mxu0 %v873
      %v2311 = vpop.f32.mrf.mxu0
      %v2312 = vadd.f32 %v2039, %v2311
      %v2313 = vpop.f32.mrf.mxu0
      %v2314 = vpop.f32.mrf.mxu0
      %v2315 = vadd.f32 %v2042, %v2314
      %v2316 = vpop.f32.mrf.mxu0
      %2317 = vmatprep.mubr.bf16.mxu0 0
      %2318 = vmatmul.mubr.bf16.gmra.mxu0 %v874
      %v2319 = vpop.f32.mrf.mxu0
      %v2320 = vadd.f32 %v2047, %v2319
      %v2321 = vpop.f32.mrf.mxu0
      %v2322 = vpop.f32.mrf.mxu0
      %v2323 = vadd.f32 %v2050, %v2322
      %v2324 = vpop.f32.mrf.mxu0
      %2325 = vmatprep.mubr.bf16.mxu0 0
      %2326 = vmatmul.mubr.bf16.gmra.mxu0 %v875
      %v2327 = vpop.f32.mrf.mxu0
      %v2328 = vadd.f32 %v2055, %v2327
      %v2329 = vpop.f32.mrf.mxu0
      %v2330 = vpop.f32.mrf.mxu0
      %v2331 = vadd.f32 %v2058, %v2330
      %v2332 = vpop.f32.mrf.mxu0
      %2333 = vmatprep.mubr.bf16.mxu0 0
      %2334 = vmatmul.mubr.bf16.gmra.mxu0 %v876
      %v2335 = vpop.f32.mrf.mxu0
      %v2336 = vadd.f32 %v2063, %v2335
      %v2337 = vpop.f32.mrf.mxu0
      %v2338 = vpop.f32.mrf.mxu0
      %v2339 = vadd.f32 %v2066, %v2338
      %v2340 = vpop.f32.mrf.mxu0
      %2341 = vmatprep.mubr.bf16.mxu0 0
      %2342 = vmatmul.mubr.bf16.gmra.mxu0 %v877
      %v2343 = vpop.f32.mrf.mxu0
      %v2344 = vadd.f32 %v2071, %v2343
      %v2345 = vpop.f32.mrf.mxu0
      %v2346 = vpop.f32.mrf.mxu0
      %v2347 = vadd.f32 %v2074, %v2346
      %v2348 = vpop.f32.mrf.mxu0
      %2349 = vmatprep.mubr.bf16.mxu0 0
      %2350 = vmatmul.mubr.bf16.gmra.mxu0 %v878
      %v2351 = vpop.f32.mrf.mxu0
      %v2352 = vadd.f32 %v2079, %v2351
      %v2353 = vpop.f32.mrf.mxu0
      %v2354 = vpop.f32.mrf.mxu0
      %v2355 = vadd.f32 %v2082, %v2354
      %v2356 = vpop.f32.mrf.mxu0
      %2357 = vmatprep.mubr.bf16.mxu0 0
      %2358 = vmatmul.mubr.bf16.gmra.mxu0 %v879
      %v2359 = vpop.f32.mrf.mxu0
      %v2360 = vadd.f32 %v2087, %v2359
      %v2361 = vpop.f32.mrf.mxu0
      %v2362 = vpop.f32.mrf.mxu0
      %v2363 = vadd.f32 %v2090, %v2362
      %v2364 = vpop.f32.mrf.mxu0
      %2365 = vmatprep.mubr.bf16.mxu0 0
      %2366 = vmatmul.mubr.bf16.gmra.mxu0 %v880
      %v2367 = vpop.f32.mrf.mxu0
      %v2368 = vadd.f32 %v2095, %v2367
      %v2369 = vpop.f32.mrf.mxu0
      %v2370 = vpop.f32.mrf.mxu0
      %v2371 = vadd.f32 %v2098, %v2370
      %v2372 = vpop.f32.mrf.mxu0
      %2373 = vmatprep.mubr.bf16.mxu0 0
      %2374 = vmatmul.mubr.bf16.gmra.mxu0 %v881
      %v2375 = vpop.f32.mrf.mxu0
      %v2376 = vadd.f32 %v2103, %v2375
      %v2377 = vpop.f32.mrf.mxu0
      %v2378 = vpop.f32.mrf.mxu0
      %v2379 = vadd.f32 %v2106, %v2378
      %v2380 = vpop.f32.mrf.mxu0
      %2381 = vmatprep.mubr.bf16.mxu0 0
      %2382 = vmatmul.mubr.bf16.gmra.mxu0 %v882
      %v2383 = vpop.f32.mrf.mxu0
      %v2384 = vadd.f32 %v2111, %v2383
      %v2385 = vpop.f32.mrf.mxu0
      %v2386 = vpop.f32.mrf.mxu0
      %v2387 = vadd.f32 %v2114, %v2386
      %v2388 = vpop.f32.mrf.mxu0
      %2389 = vdwg.mxu0
      %s2390 = scalar_lea.vmem %s1, 448
      %v2391 = vld [vmem:[%s2390] sm:$0xf]
      %v2392 = vld [vmem:[%s2390 + $0x4] sm:$0xf]
      %v2393 = vld [vmem:[%s2390 + $0x8] sm:$0xf]
      %v2394 = vld [vmem:[%s2390 + $0xc] sm:$0xf]
      %v2395 = vld [vmem:[%s2390 + $0x10] sm:$0xf]
      %v2396 = vld [vmem:[%s2390 + $0x14] sm:$0xf]
      %v2397 = vld [vmem:[%s2390 + $0x18] sm:$0xf]
      %v2398 = vld [vmem:[%s2390 + $0x1c] sm:$0xf]
      %v2399 = vld [vmem:[%s2390 + $0x20] sm:$0xf]
      %v2400 = vld [vmem:[%s2390 + $0x24] sm:$0xf]
      %v2401 = vld [vmem:[%s2390 + $0x28] sm:$0xf]
      %v2402 = vld [vmem:[%s2390 + $0x2c] sm:$0xf]
      %v2403 = vld [vmem:[%s2390 + $0x30] sm:$0xf]
      %v2404 = vld [vmem:[%s2390 + $0x34] sm:$0xf]
      %v2405 = vld [vmem:[%s2390 + $0x38] sm:$0xf]
      %v2406 = vld [vmem:[%s2390 + $0x3c] sm:$0xf]
      %v2423 = vunpack.c.l.b16 %v2391
      %v2424 = vunpack.c.l.b16 %v2392
      %v2425 = vunpack.c.l.b16 %v2393
      %v2426 = vunpack.c.l.b16 %v2394
      %v2427 = vunpack.c.l.b16 %v2395
      %v2428 = vunpack.c.l.b16 %v2396
      %v2429 = vunpack.c.l.b16 %v2397
      %v2430 = vunpack.c.l.b16 %v2398
      %v2431 = vunpack.c.l.b16 %v2399
      %v2432 = vunpack.c.l.b16 %v2400
      %v2433 = vunpack.c.l.b16 %v2401
      %v2434 = vunpack.c.l.b16 %v2402
      %v2435 = vunpack.c.l.b16 %v2403
      %v2436 = vunpack.c.l.b16 %v2404
      %v2437 = vunpack.c.l.b16 %v2405
      %v2438 = vunpack.c.l.b16 %v2406
      %v2439 = vpack.c.b16 %v2424, %v2423
      %v2440 = vpack.c.b16 %v2426, %v2425
      %v2441 = vpack.c.b16 %v2428, %v2427
      %v2442 = vpack.c.b16 %v2430, %v2429
      %v2443 = vpack.c.b16 %v2432, %v2431
      %v2444 = vpack.c.b16 %v2434, %v2433
      %v2445 = vpack.c.b16 %v2436, %v2435
      %v2446 = vpack.c.b16 %v2438, %v2437
      %2455 = vmatprep.subr.bf16.mxu0 0
      %2456 = vmatpush1.bf16.msra.mxu0 %v2446
      %2457 = vmatprep.subr.bf16.mxu0 0
      %2458 = vmatpush1.bf16.msra.mxu0 %v2445
      %2459 = vmatprep.subr.bf16.mxu0 0
      %2460 = vmatpush1.bf16.msra.mxu0 %v2444
      %2461 = vmatprep.subr.bf16.mxu0 0
      %2462 = vmatpush1.bf16.msra.mxu0 %v2443
      %2463 = vmatprep.subr.bf16.mxu0 0
      %2464 = vmatpush1.bf16.msra.mxu0 %v2442
      %2465 = vmatprep.subr.bf16.mxu0 0
      %2466 = vmatpush1.bf16.msra.mxu0 %v2441
      %2467 = vmatprep.subr.bf16.mxu0 0
      %2468 = vmatpush1.bf16.msra.mxu0 %v2440
      %2469 = vmatprep.subr.bf16.mxu0 0
      %2470 = vmatpush1.bf16.msra.mxu0 %v2439
      %2471 = vmatprep.subr.bf16.mxu0 0
      %2472 = vmatpush2.bf16.msra.mxu0 0
      %2473 = vmatprep.subr.bf16.mxu0 0
      %2474 = vmatpush2.bf16.msra.mxu0 0
      %2475 = vmatprep.subr.bf16.mxu0 0
      %2476 = vmatpush2.bf16.msra.mxu0 0
      %2477 = vmatprep.subr.bf16.mxu0 0
      %2478 = vmatpush2.bf16.msra.mxu0 0
      %2479 = vmatprep.subr.bf16.mxu0 0
      %2480 = vmatpush2.bf16.msra.mxu0 0
      %2481 = vmatprep.subr.bf16.mxu0 0
      %2482 = vmatpush2.bf16.msra.mxu0 0
      %2483 = vmatprep.subr.bf16.mxu0 0
      %2484 = vmatpush2.bf16.msra.mxu0 0
      %2485 = vmatprep.subr.bf16.mxu0 0
      %2486 = vmatpush2.bf16.msra.mxu0 0
      %2487 = vmatprep.mubr.bf16.mxu0 0
      %2488 = vmatmul.mubr.bf16.gmra.mxu0 %v1342
      %v2489 = vpop.f32.mrf.mxu0
      %v2490 = vadd.f32 0.0, %v2489
      %v2491 = vpop.f32.mrf.mxu0
      %v2492 = vpop.f32.mrf.mxu0
      %v2493 = vadd.f32 0.0, %v2492
      %v2494 = vpop.f32.mrf.mxu0
      %2495 = vmatprep.mubr.bf16.mxu0 0
      %2496 = vmatmul.mubr.bf16.gmra.mxu0 %v1343
      %v2497 = vpop.f32.mrf.mxu0
      %v2498 = vadd.f32 0.0, %v2497
      %v2499 = vpop.f32.mrf.mxu0
      %v2500 = vpop.f32.mrf.mxu0
      %v2501 = vadd.f32 0.0, %v2500
      %v2502 = vpop.f32.mrf.mxu0
      %2503 = vmatprep.mubr.bf16.mxu0 0
      %2504 = vmatmul.mubr.bf16.gmra.mxu0 %v1344
      %v2505 = vpop.f32.mrf.mxu0
      %v2506 = vadd.f32 0.0, %v2505
      %v2507 = vpop.f32.mrf.mxu0
      %v2508 = vpop.f32.mrf.mxu0
      %v2509 = vadd.f32 0.0, %v2508
      %v2510 = vpop.f32.mrf.mxu0
      %2511 = vmatprep.mubr.bf16.mxu0 0
      %2512 = vmatmul.mubr.bf16.gmra.mxu0 %v1345
      %v2513 = vpop.f32.mrf.mxu0
      %v2514 = vadd.f32 0.0, %v2513
      %v2515 = vpop.f32.mrf.mxu0
      %v2516 = vpop.f32.mrf.mxu0
      %v2517 = vadd.f32 0.0, %v2516
      %v2518 = vpop.f32.mrf.mxu0
      %2519 = vmatprep.mubr.bf16.mxu0 0
      %2520 = vmatmul.mubr.bf16.gmra.mxu0 %v1346
      %v2521 = vpop.f32.mrf.mxu0
      %v2522 = vadd.f32 0.0, %v2521
      %v2523 = vpop.f32.mrf.mxu0
      %v2524 = vpop.f32.mrf.mxu0
      %v2525 = vadd.f32 0.0, %v2524
      %v2526 = vpop.f32.mrf.mxu0
      %2527 = vmatprep.mubr.bf16.mxu0 0
      %2528 = vmatmul.mubr.bf16.gmra.mxu0 %v1347
      %v2529 = vpop.f32.mrf.mxu0
      %v2530 = vadd.f32 0.0, %v2529
      %v2531 = vpop.f32.mrf.mxu0
      %v2532 = vpop.f32.mrf.mxu0
      %v2533 = vadd.f32 0.0, %v2532
      %v2534 = vpop.f32.mrf.mxu0
      %2535 = vmatprep.mubr.bf16.mxu0 0
      %2536 = vmatmul.mubr.bf16.gmra.mxu0 %v1348
      %v2537 = vpop.f32.mrf.mxu0
      %v2538 = vadd.f32 0.0, %v2537
      %v2539 = vpop.f32.mrf.mxu0
      %v2540 = vpop.f32.mrf.mxu0
      %v2541 = vadd.f32 0.0, %v2540
      %v2542 = vpop.f32.mrf.mxu0
      %2543 = vmatprep.mubr.bf16.mxu0 0
      %2544 = vmatmul.mubr.bf16.gmra.mxu0 %v1349
      %v2545 = vpop.f32.mrf.mxu0
      %v2546 = vadd.f32 0.0, %v2545
      %v2547 = vpop.f32.mrf.mxu0
      %v2548 = vpop.f32.mrf.mxu0
      %v2549 = vadd.f32 0.0, %v2548
      %v2550 = vpop.f32.mrf.mxu0
      %2551 = vmatprep.mubr.bf16.mxu0 0
      %2552 = vmatmul.mubr.bf16.gmra.mxu0 %v1350
      %v2553 = vpop.f32.mrf.mxu0
      %v2554 = vadd.f32 0.0, %v2553
      %v2555 = vpop.f32.mrf.mxu0
      %v2556 = vpop.f32.mrf.mxu0
      %v2557 = vadd.f32 0.0, %v2556
      %v2558 = vpop.f32.mrf.mxu0
      %2559 = vmatprep.mubr.bf16.mxu0 0
      %2560 = vmatmul.mubr.bf16.gmra.mxu0 %v1351
      %v2561 = vpop.f32.mrf.mxu0
      %v2562 = vadd.f32 0.0, %v2561
      %v2563 = vpop.f32.mrf.mxu0
      %v2564 = vpop.f32.mrf.mxu0
      %v2565 = vadd.f32 0.0, %v2564
      %v2566 = vpop.f32.mrf.mxu0
      %2567 = vmatprep.mubr.bf16.mxu0 0
      %2568 = vmatmul.mubr.bf16.gmra.mxu0 %v1352
      %v2569 = vpop.f32.mrf.mxu0
      %v2570 = vadd.f32 0.0, %v2569
      %v2571 = vpop.f32.mrf.mxu0
      %v2572 = vpop.f32.mrf.mxu0
      %v2573 = vadd.f32 0.0, %v2572
      %v2574 = vpop.f32.mrf.mxu0
      %2575 = vmatprep.mubr.bf16.mxu0 0
      %2576 = vmatmul.mubr.bf16.gmra.mxu0 %v1353
      %v2577 = vpop.f32.mrf.mxu0
      %v2578 = vadd.f32 0.0, %v2577
      %v2579 = vpop.f32.mrf.mxu0
      %v2580 = vpop.f32.mrf.mxu0
      %v2581 = vadd.f32 0.0, %v2580
      %v2582 = vpop.f32.mrf.mxu0
      %2583 = vmatprep.mubr.bf16.mxu0 0
      %2584 = vmatmul.mubr.bf16.gmra.mxu0 %v1354
      %v2585 = vpop.f32.mrf.mxu0
      %v2586 = vadd.f32 0.0, %v2585
      %v2587 = vpop.f32.mrf.mxu0
      %v2588 = vpop.f32.mrf.mxu0
      %v2589 = vadd.f32 0.0, %v2588
      %v2590 = vpop.f32.mrf.mxu0
      %2591 = vmatprep.mubr.bf16.mxu0 0
      %2592 = vmatmul.mubr.bf16.gmra.mxu0 %v1355
      %v2593 = vpop.f32.mrf.mxu0
      %v2594 = vadd.f32 0.0, %v2593
      %v2595 = vpop.f32.mrf.mxu0
      %v2596 = vpop.f32.mrf.mxu0
      %v2597 = vadd.f32 0.0, %v2596
      %v2598 = vpop.f32.mrf.mxu0
      %2599 = vmatprep.mubr.bf16.mxu0 0
      %2600 = vmatmul.mubr.bf16.gmra.mxu0 %v1356
      %v2601 = vpop.f32.mrf.mxu0
      %v2602 = vadd.f32 0.0, %v2601
      %v2603 = vpop.f32.mrf.mxu0
      %v2604 = vpop.f32.mrf.mxu0
      %v2605 = vadd.f32 0.0, %v2604
      %v2606 = vpop.f32.mrf.mxu0
      %2607 = vmatprep.mubr.bf16.mxu0 0
      %2608 = vmatmul.mubr.bf16.gmra.mxu0 %v1357
      %v2609 = vpop.f32.mrf.mxu0
      %v2610 = vadd.f32 0.0, %v2609
      %v2611 = vpop.f32.mrf.mxu0
      %v2612 = vpop.f32.mrf.mxu0
      %v2613 = vadd.f32 0.0, %v2612
      %v2614 = vpop.f32.mrf.mxu0
      %2615 = vmatprep.mubr.bf16.mxu0 0
      %2616 = vmatmul.mubr.bf16.gmra.mxu0 %v1358
      %v2617 = vpop.f32.mrf.mxu0
      %v2618 = vadd.f32 0.0, %v2617
      %v2619 = vpop.f32.mrf.mxu0
      %v2620 = vpop.f32.mrf.mxu0
      %v2621 = vadd.f32 0.0, %v2620
      %v2622 = vpop.f32.mrf.mxu0
      %2623 = vmatprep.mubr.bf16.mxu0 0
      %2624 = vmatmul.mubr.bf16.gmra.mxu0 %v1359
      %v2625 = vpop.f32.mrf.mxu0
      %v2626 = vadd.f32 0.0, %v2625
      %v2627 = vpop.f32.mrf.mxu0
      %v2628 = vpop.f32.mrf.mxu0
      %v2629 = vadd.f32 0.0, %v2628
      %v2630 = vpop.f32.mrf.mxu0
      %2631 = vmatprep.mubr.bf16.mxu0 0
      %2632 = vmatmul.mubr.bf16.gmra.mxu0 %v1360
      %v2633 = vpop.f32.mrf.mxu0
      %v2634 = vadd.f32 0.0, %v2633
      %v2635 = vpop.f32.mrf.mxu0
      %v2636 = vpop.f32.mrf.mxu0
      %v2637 = vadd.f32 0.0, %v2636
      %v2638 = vpop.f32.mrf.mxu0
      %2639 = vmatprep.mubr.bf16.mxu0 0
      %2640 = vmatmul.mubr.bf16.gmra.mxu0 %v1361
      %v2641 = vpop.f32.mrf.mxu0
      %v2642 = vadd.f32 0.0, %v2641
      %v2643 = vpop.f32.mrf.mxu0
      %v2644 = vpop.f32.mrf.mxu0
      %v2645 = vadd.f32 0.0, %v2644
      %v2646 = vpop.f32.mrf.mxu0
      %2647 = vmatprep.mubr.bf16.mxu0 0
      %2648 = vmatmul.mubr.bf16.gmra.mxu0 %v1362
      %v2649 = vpop.f32.mrf.mxu0
      %v2650 = vadd.f32 0.0, %v2649
      %v2651 = vpop.f32.mrf.mxu0
      %v2652 = vpop.f32.mrf.mxu0
      %v2653 = vadd.f32 0.0, %v2652
      %v2654 = vpop.f32.mrf.mxu0
      %2655 = vmatprep.mubr.bf16.mxu0 0
      %2656 = vmatmul.mubr.bf16.gmra.mxu0 %v1363
      %v2657 = vpop.f32.mrf.mxu0
      %v2658 = vadd.f32 0.0, %v2657
      %v2659 = vpop.f32.mrf.mxu0
      %v2660 = vpop.f32.mrf.mxu0
      %v2661 = vadd.f32 0.0, %v2660
      %v2662 = vpop.f32.mrf.mxu0
      %2663 = vmatprep.mubr.bf16.mxu0 0
      %2664 = vmatmul.mubr.bf16.gmra.mxu0 %v1364
      %v2665 = vpop.f32.mrf.mxu0
      %v2666 = vadd.f32 0.0, %v2665
      %v2667 = vpop.f32.mrf.mxu0
      %v2668 = vpop.f32.mrf.mxu0
      %v2669 = vadd.f32 0.0, %v2668
      %v2670 = vpop.f32.mrf.mxu0
      %2671 = vmatprep.mubr.bf16.mxu0 0
      %2672 = vmatmul.mubr.bf16.gmra.mxu0 %v1365
      %v2673 = vpop.f32.mrf.mxu0
      %v2674 = vadd.f32 0.0, %v2673
      %v2675 = vpop.f32.mrf.mxu0
      %v2676 = vpop.f32.mrf.mxu0
      %v2677 = vadd.f32 0.0, %v2676
      %v2678 = vpop.f32.mrf.mxu0
      %2679 = vdwg.mxu0
      %v2680 = vadd.f32 %v2200, %v2490
      %v2681 = vadd.f32 %v2203, %v2493
      %v2682 = vadd.f32 %v2208, %v2498
      %v2683 = vadd.f32 %v2211, %v2501
      %v2684 = vadd.f32 %v2216, %v2506
      %v2685 = vadd.f32 %v2219, %v2509
      %v2686 = vadd.f32 %v2224, %v2514
      %v2687 = vadd.f32 %v2227, %v2517
      %v2688 = vadd.f32 %v2232, %v2522
      %v2689 = vadd.f32 %v2235, %v2525
      %v2690 = vadd.f32 %v2240, %v2530
      %v2691 = vadd.f32 %v2243, %v2533
      %v2692 = vadd.f32 %v2248, %v2538
      %v2693 = vadd.f32 %v2251, %v2541
      %v2694 = vadd.f32 %v2256, %v2546
      %v2695 = vadd.f32 %v2259, %v2549
      %v2696 = vadd.f32 %v2264, %v2554
      %v2697 = vadd.f32 %v2267, %v2557
      %v2698 = vadd.f32 %v2272, %v2562
      %v2699 = vadd.f32 %v2275, %v2565
      %v2700 = vadd.f32 %v2280, %v2570
      %v2701 = vadd.f32 %v2283, %v2573
      %v2702 = vadd.f32 %v2288, %v2578
      %v2703 = vadd.f32 %v2291, %v2581
      %v2704 = vadd.f32 %v2296, %v2586
      %v2705 = vadd.f32 %v2299, %v2589
      %v2706 = vadd.f32 %v2304, %v2594
      %v2707 = vadd.f32 %v2307, %v2597
      %v2708 = vadd.f32 %v2312, %v2602
      %v2709 = vadd.f32 %v2315, %v2605
      %v2710 = vadd.f32 %v2320, %v2610
      %v2711 = vadd.f32 %v2323, %v2613
      %v2712 = vadd.f32 %v2328, %v2618
      %v2713 = vadd.f32 %v2331, %v2621
      %v2714 = vadd.f32 %v2336, %v2626
      %v2715 = vadd.f32 %v2339, %v2629
      %v2716 = vadd.f32 %v2344, %v2634
      %v2717 = vadd.f32 %v2347, %v2637
      %v2718 = vadd.f32 %v2352, %v2642
      %v2719 = vadd.f32 %v2355, %v2645
      %v2720 = vadd.f32 %v2360, %v2650
      %v2721 = vadd.f32 %v2363, %v2653
      %v2722 = vadd.f32 %v2368, %v2658
      %v2723 = vadd.f32 %v2371, %v2661
      %v2724 = vadd.f32 %v2376, %v2666
      %v2725 = vadd.f32 %v2379, %v2669
      %v2726 = vadd.f32 %v2384, %v2674
      %v2727 = vadd.f32 %v2387, %v2677
      %v2728 = vadd.f32 %v1809, %v2680
      %v2729 = vadd.f32 %v1808, %v2681
      %v2730 = vadd.f32 %v1807, %v2682
      %v2731 = vadd.f32 %v1806, %v2683
      %v2732 = vadd.f32 %v1805, %v2684
      %v2733 = vadd.f32 %v1804, %v2685
      %v2734 = vadd.f32 %v1803, %v2686
      %v2735 = vadd.f32 %v1802, %v2687
      %v2736 = vadd.f32 %v1801, %v2688
      %v2737 = vadd.f32 %v1800, %v2689
      %v2738 = vadd.f32 %v1799, %v2690
      %v2739 = vadd.f32 %v1798, %v2691
      %v2740 = vadd.f32 %v1797, %v2692
      %v2741 = vadd.f32 %v1796, %v2693
      %v2742 = vadd.f32 %v1795, %v2694
      %v2743 = vadd.f32 %v1794, %v2695
      %v2744 = vadd.f32 %v1793, %v2696
      %v2745 = vadd.f32 %v1792, %v2697
      %v2746 = vadd.f32 %v1791, %v2698
      %v2747 = vadd.f32 %v1790, %v2699
      %v2748 = vadd.f32 %v1789, %v2700
      %v2749 = vadd.f32 %v1788, %v2701
      %v2750 = vadd.f32 %v1787, %v2702
      %v2751 = vadd.f32 %v1786, %v2703
      %v2752 = vadd.f32 %v1785, %v2704
      %v2753 = vadd.f32 %v1784, %v2705
      %v2754 = vadd.f32 %v1783, %v2706
      %v2755 = vadd.f32 %v1782, %v2707
      %v2756 = vadd.f32 %v1781, %v2708
      %v2757 = vadd.f32 %v1780, %v2709
      %v2758 = vadd.f32 %v1779, %v2710
      %v2759 = vadd.f32 %v1778, %v2711
      %v2760 = vadd.f32 %v1777, %v2712
      %v2761 = vadd.f32 %v1776, %v2713
      %v2762 = vadd.f32 %v1775, %v2714
      %v2763 = vadd.f32 %v1774, %v2715
      %v2764 = vadd.f32 %v1773, %v2716
      %v2765 = vadd.f32 %v1772, %v2717
      %v2766 = vadd.f32 %v1771, %v2718
      %v2767 = vadd.f32 %v1770, %v2719
      %v2768 = vadd.f32 %v1769, %v2720
      %v2769 = vadd.f32 %v1768, %v2721
      %v2770 = vadd.f32 %v1767, %v2722
      %v2771 = vadd.f32 %v1766, %v2723
      %v2772 = vadd.f32 %v1765, %v2724
      %v2773 = vadd.f32 %v1764, %v2725
      %v2774 = vadd.f32 %v1763, %v2726
      %v2775 = vadd.f32 %v1762, %v2727
      %s2776 = scalar_lea.vmem %s1, 128
      %v2777 = vld [vmem:[%s2776] sm:$0xf]
      %v2778 = vld [vmem:[%s2776 + $0x4] sm:$0xf]
      %v2779 = vld [vmem:[%s2776 + $0x8] sm:$0xf]
      %v2780 = vld [vmem:[%s2776 + $0xc] sm:$0xf]
      %v2781 = vld [vmem:[%s2776 + $0x10] sm:$0xf]
      %v2782 = vld [vmem:[%s2776 + $0x14] sm:$0xf]
      %v2783 = vld [vmem:[%s2776 + $0x18] sm:$0xf]
      %v2784 = vld [vmem:[%s2776 + $0x1c] sm:$0xf]
      %v2785 = vld [vmem:[%s2776 + $0x20] sm:$0xf]
      %v2786 = vld [vmem:[%s2776 + $0x24] sm:$0xf]
      %v2787 = vld [vmem:[%s2776 + $0x28] sm:$0xf]
      %v2788 = vld [vmem:[%s2776 + $0x2c] sm:$0xf]
      %v2789 = vld [vmem:[%s2776 + $0x30] sm:$0xf]
      %v2790 = vld [vmem:[%s2776 + $0x34] sm:$0xf]
      %v2791 = vld [vmem:[%s2776 + $0x38] sm:$0xf]
      %v2792 = vld [vmem:[%s2776 + $0x3c] sm:$0xf]
      %s2793 = scalar_lea.vmem %s1, 320
      %v2794 = vld [vmem:[%s2793] sm:$0xf]
      %v2795 = vld [vmem:[%s2793 + $0x4] sm:$0xf]
      %v2796 = vld [vmem:[%s2793 + $0x8] sm:$0xf]
      %v2797 = vld [vmem:[%s2793 + $0xc] sm:$0xf]
      %v2798 = vld [vmem:[%s2793 + $0x10] sm:$0xf]
      %v2799 = vld [vmem:[%s2793 + $0x14] sm:$0xf]
      %v2800 = vld [vmem:[%s2793 + $0x18] sm:$0xf]
      %v2801 = vld [vmem:[%s2793 + $0x1c] sm:$0xf]
      %v2802 = vld [vmem:[%s2793 + $0x20] sm:$0xf]
      %v2803 = vld [vmem:[%s2793 + $0x24] sm:$0xf]
      %v2804 = vld [vmem:[%s2793 + $0x28] sm:$0xf]
      %v2805 = vld [vmem:[%s2793 + $0x2c] sm:$0xf]
      %v2806 = vld [vmem:[%s2793 + $0x30] sm:$0xf]
      %v2807 = vld [vmem:[%s2793 + $0x34] sm:$0xf]
      %v2808 = vld [vmem:[%s2793 + $0x38] sm:$0xf]
      %v2809 = vld [vmem:[%s2793 + $0x3c] sm:$0xf]
      %v2826 = vunpack.c.l.b16 %v2794
      %v2827 = vunpack.c.l.b16 %v2795
      %v2828 = vunpack.c.l.b16 %v2796
      %v2829 = vunpack.c.l.b16 %v2797
      %v2830 = vunpack.c.l.b16 %v2798
      %v2831 = vunpack.c.l.b16 %v2799
      %v2832 = vunpack.c.l.b16 %v2800
      %v2833 = vunpack.c.l.b16 %v2801
      %v2834 = vunpack.c.l.b16 %v2802
      %v2835 = vunpack.c.l.b16 %v2803
      %v2836 = vunpack.c.l.b16 %v2804
      %v2837 = vunpack.c.l.b16 %v2805
      %v2838 = vunpack.c.l.b16 %v2806
      %v2839 = vunpack.c.l.b16 %v2807
      %v2840 = vunpack.c.l.b16 %v2808
      %v2841 = vunpack.c.l.b16 %v2809
      %v2842 = vpack.c.b16 %v2827, %v2826
      %v2843 = vpack.c.b16 %v2829, %v2828
      %v2844 = vpack.c.b16 %v2831, %v2830
      %v2845 = vpack.c.b16 %v2833, %v2832
      %v2846 = vpack.c.b16 %v2835, %v2834
      %v2847 = vpack.c.b16 %v2837, %v2836
      %v2848 = vpack.c.b16 %v2839, %v2838
      %v2849 = vpack.c.b16 %v2841, %v2840
      %2858 = vmatprep.subr.bf16.mxu0 0
      %2859 = vmatpush1.bf16.msra.mxu0 %v2849
      %2860 = vmatprep.subr.bf16.mxu0 0
      %2861 = vmatpush1.bf16.msra.mxu0 %v2848
      %2862 = vmatprep.subr.bf16.mxu0 0
      %2863 = vmatpush1.bf16.msra.mxu0 %v2847
      %2864 = vmatprep.subr.bf16.mxu0 0
      %2865 = vmatpush1.bf16.msra.mxu0 %v2846
      %2866 = vmatprep.subr.bf16.mxu0 0
      %2867 = vmatpush1.bf16.msra.mxu0 %v2845
      %2868 = vmatprep.subr.bf16.mxu0 0
      %2869 = vmatpush1.bf16.msra.mxu0 %v2844
      %2870 = vmatprep.subr.bf16.mxu0 0
      %2871 = vmatpush1.bf16.msra.mxu0 %v2843
      %2872 = vmatprep.subr.bf16.mxu0 0
      %2873 = vmatpush1.bf16.msra.mxu0 %v2842
      %2874 = vmatprep.subr.bf16.mxu0 0
      %2875 = vmatpush2.bf16.msra.mxu0 0
      %2876 = vmatprep.subr.bf16.mxu0 0
      %2877 = vmatpush2.bf16.msra.mxu0 0
      %2878 = vmatprep.subr.bf16.mxu0 0
      %2879 = vmatpush2.bf16.msra.mxu0 0
      %2880 = vmatprep.subr.bf16.mxu0 0
      %2881 = vmatpush2.bf16.msra.mxu0 0
      %2882 = vmatprep.subr.bf16.mxu0 0
      %2883 = vmatpush2.bf16.msra.mxu0 0
      %2884 = vmatprep.subr.bf16.mxu0 0
      %2885 = vmatpush2.bf16.msra.mxu0 0
      %2886 = vmatprep.subr.bf16.mxu0 0
      %2887 = vmatpush2.bf16.msra.mxu0 0
      %2888 = vmatprep.subr.bf16.mxu0 0
      %2889 = vmatpush2.bf16.msra.mxu0 0
      %2890 = vmatprep.mubr.bf16.mxu0 0
      %2891 = vmatmul.mubr.bf16.gmra.mxu0 %v442
      %v2892 = vpop.f32.mrf.mxu0
      %v2893 = vadd.f32 0.0, %v2892
      %v2894 = vpop.f32.mrf.mxu0
      %v2895 = vpop.f32.mrf.mxu0
      %v2896 = vadd.f32 0.0, %v2895
      %v2897 = vpop.f32.mrf.mxu0
      %2898 = vmatprep.mubr.bf16.mxu0 0
      %2899 = vmatmul.mubr.bf16.gmra.mxu0 %v443
      %v2900 = vpop.f32.mrf.mxu0
      %v2901 = vadd.f32 0.0, %v2900
      %v2902 = vpop.f32.mrf.mxu0
      %v2903 = vpop.f32.mrf.mxu0
      %v2904 = vadd.f32 0.0, %v2903
      %v2905 = vpop.f32.mrf.mxu0
      %2906 = vmatprep.mubr.bf16.mxu0 0
      %2907 = vmatmul.mubr.bf16.gmra.mxu0 %v444
      %v2908 = vpop.f32.mrf.mxu0
      %v2909 = vadd.f32 0.0, %v2908
      %v2910 = vpop.f32.mrf.mxu0
      %v2911 = vpop.f32.mrf.mxu0
      %v2912 = vadd.f32 0.0, %v2911
      %v2913 = vpop.f32.mrf.mxu0
      %2914 = vmatprep.mubr.bf16.mxu0 0
      %2915 = vmatmul.mubr.bf16.gmra.mxu0 %v445
      %v2916 = vpop.f32.mrf.mxu0
      %v2917 = vadd.f32 0.0, %v2916
      %v2918 = vpop.f32.mrf.mxu0
      %v2919 = vpop.f32.mrf.mxu0
      %v2920 = vadd.f32 0.0, %v2919
      %v2921 = vpop.f32.mrf.mxu0
      %2922 = vmatprep.mubr.bf16.mxu0 0
      %2923 = vmatmul.mubr.bf16.gmra.mxu0 %v446
      %v2924 = vpop.f32.mrf.mxu0
      %v2925 = vadd.f32 0.0, %v2924
      %v2926 = vpop.f32.mrf.mxu0
      %v2927 = vpop.f32.mrf.mxu0
      %v2928 = vadd.f32 0.0, %v2927
      %v2929 = vpop.f32.mrf.mxu0
      %2930 = vmatprep.mubr.bf16.mxu0 0
      %2931 = vmatmul.mubr.bf16.gmra.mxu0 %v447
      %v2932 = vpop.f32.mrf.mxu0
      %v2933 = vadd.f32 0.0, %v2932
      %v2934 = vpop.f32.mrf.mxu0
      %v2935 = vpop.f32.mrf.mxu0
      %v2936 = vadd.f32 0.0, %v2935
      %v2937 = vpop.f32.mrf.mxu0
      %2938 = vmatprep.mubr.bf16.mxu0 0
      %2939 = vmatmul.mubr.bf16.gmra.mxu0 %v448
      %v2940 = vpop.f32.mrf.mxu0
      %v2941 = vadd.f32 0.0, %v2940
      %v2942 = vpop.f32.mrf.mxu0
      %v2943 = vpop.f32.mrf.mxu0
      %v2944 = vadd.f32 0.0, %v2943
      %v2945 = vpop.f32.mrf.mxu0
      %2946 = vmatprep.mubr.bf16.mxu0 0
      %2947 = vmatmul.mubr.bf16.gmra.mxu0 %v449
      %v2948 = vpop.f32.mrf.mxu0
      %v2949 = vadd.f32 0.0, %v2948
      %v2950 = vpop.f32.mrf.mxu0
      %v2951 = vpop.f32.mrf.mxu0
      %v2952 = vadd.f32 0.0, %v2951
      %v2953 = vpop.f32.mrf.mxu0
      %2954 = vmatprep.mubr.bf16.mxu0 0
      %2955 = vmatmul.mubr.bf16.gmra.mxu0 %v450
      %v2956 = vpop.f32.mrf.mxu0
      %v2957 = vadd.f32 0.0, %v2956
      %v2958 = vpop.f32.mrf.mxu0
      %v2959 = vpop.f32.mrf.mxu0
      %v2960 = vadd.f32 0.0, %v2959
      %v2961 = vpop.f32.mrf.mxu0
      %2962 = vmatprep.mubr.bf16.mxu0 0
      %2963 = vmatmul.mubr.bf16.gmra.mxu0 %v451
      %v2964 = vpop.f32.mrf.mxu0
      %v2965 = vadd.f32 0.0, %v2964
      %v2966 = vpop.f32.mrf.mxu0
      %v2967 = vpop.f32.mrf.mxu0
      %v2968 = vadd.f32 0.0, %v2967
      %v2969 = vpop.f32.mrf.mxu0
      %2970 = vmatprep.mubr.bf16.mxu0 0
      %2971 = vmatmul.mubr.bf16.gmra.mxu0 %v452
      %v2972 = vpop.f32.mrf.mxu0
      %v2973 = vadd.f32 0.0, %v2972
      %v2974 = vpop.f32.mrf.mxu0
      %v2975 = vpop.f32.mrf.mxu0
      %v2976 = vadd.f32 0.0, %v2975
      %v2977 = vpop.f32.mrf.mxu0
      %2978 = vmatprep.mubr.bf16.mxu0 0
      %2979 = vmatmul.mubr.bf16.gmra.mxu0 %v453
      %v2980 = vpop.f32.mrf.mxu0
      %v2981 = vadd.f32 0.0, %v2980
      %v2982 = vpop.f32.mrf.mxu0
      %v2983 = vpop.f32.mrf.mxu0
      %v2984 = vadd.f32 0.0, %v2983
      %v2985 = vpop.f32.mrf.mxu0
      %2986 = vmatprep.mubr.bf16.mxu0 0
      %2987 = vmatmul.mubr.bf16.gmra.mxu0 %v454
      %v2988 = vpop.f32.mrf.mxu0
      %v2989 = vadd.f32 0.0, %v2988
      %v2990 = vpop.f32.mrf.mxu0
      %v2991 = vpop.f32.mrf.mxu0
      %v2992 = vadd.f32 0.0, %v2991
      %v2993 = vpop.f32.mrf.mxu0
      %2994 = vmatprep.mubr.bf16.mxu0 0
      %2995 = vmatmul.mubr.bf16.gmra.mxu0 %v455
      %v2996 = vpop.f32.mrf.mxu0
      %v2997 = vadd.f32 0.0, %v2996
      %v2998 = vpop.f32.mrf.mxu0
      %v2999 = vpop.f32.mrf.mxu0
      %v3000 = vadd.f32 0.0, %v2999
      %v3001 = vpop.f32.mrf.mxu0
      %3002 = vmatprep.mubr.bf16.mxu0 0
      %3003 = vmatmul.mubr.bf16.gmra.mxu0 %v456
      %v3004 = vpop.f32.mrf.mxu0
      %v3005 = vadd.f32 0.0, %v3004
      %v3006 = vpop.f32.mrf.mxu0
      %v3007 = vpop.f32.mrf.mxu0
      %v3008 = vadd.f32 0.0, %v3007
      %v3009 = vpop.f32.mrf.mxu0
      %3010 = vmatprep.mubr.bf16.mxu0 0
      %3011 = vmatmul.mubr.bf16.gmra.mxu0 %v457
      %v3012 = vpop.f32.mrf.mxu0
      %v3013 = vadd.f32 0.0, %v3012
      %v3014 = vpop.f32.mrf.mxu0
      %v3015 = vpop.f32.mrf.mxu0
      %v3016 = vadd.f32 0.0, %v3015
      %v3017 = vpop.f32.mrf.mxu0
      %3018 = vmatprep.mubr.bf16.mxu0 0
      %3019 = vmatmul.mubr.bf16.gmra.mxu0 %v458
      %v3020 = vpop.f32.mrf.mxu0
      %v3021 = vadd.f32 0.0, %v3020
      %v3022 = vpop.f32.mrf.mxu0
      %v3023 = vpop.f32.mrf.mxu0
      %v3024 = vadd.f32 0.0, %v3023
      %v3025 = vpop.f32.mrf.mxu0
      %3026 = vmatprep.mubr.bf16.mxu0 0
      %3027 = vmatmul.mubr.bf16.gmra.mxu0 %v459
      %v3028 = vpop.f32.mrf.mxu0
      %v3029 = vadd.f32 0.0, %v3028
      %v3030 = vpop.f32.mrf.mxu0
      %v3031 = vpop.f32.mrf.mxu0
      %v3032 = vadd.f32 0.0, %v3031
      %v3033 = vpop.f32.mrf.mxu0
      %3034 = vmatprep.mubr.bf16.mxu0 0
      %3035 = vmatmul.mubr.bf16.gmra.mxu0 %v460
      %v3036 = vpop.f32.mrf.mxu0
      %v3037 = vadd.f32 0.0, %v3036
      %v3038 = vpop.f32.mrf.mxu0
      %v3039 = vpop.f32.mrf.mxu0
      %v3040 = vadd.f32 0.0, %v3039
      %v3041 = vpop.f32.mrf.mxu0
      %3042 = vmatprep.mubr.bf16.mxu0 0
      %3043 = vmatmul.mubr.bf16.gmra.mxu0 %v461
      %v3044 = vpop.f32.mrf.mxu0
      %v3045 = vadd.f32 0.0, %v3044
      %v3046 = vpop.f32.mrf.mxu0
      %v3047 = vpop.f32.mrf.mxu0
      %v3048 = vadd.f32 0.0, %v3047
      %v3049 = vpop.f32.mrf.mxu0
      %3050 = vmatprep.mubr.bf16.mxu0 0
      %3051 = vmatmul.mubr.bf16.gmra.mxu0 %v462
      %v3052 = vpop.f32.mrf.mxu0
      %v3053 = vadd.f32 0.0, %v3052
      %v3054 = vpop.f32.mrf.mxu0
      %v3055 = vpop.f32.mrf.mxu0
      %v3056 = vadd.f32 0.0, %v3055
      %v3057 = vpop.f32.mrf.mxu0
      %3058 = vmatprep.mubr.bf16.mxu0 0
      %3059 = vmatmul.mubr.bf16.gmra.mxu0 %v463
      %v3060 = vpop.f32.mrf.mxu0
      %v3061 = vadd.f32 0.0, %v3060
      %v3062 = vpop.f32.mrf.mxu0
      %v3063 = vpop.f32.mrf.mxu0
      %v3064 = vadd.f32 0.0, %v3063
      %v3065 = vpop.f32.mrf.mxu0
      %3066 = vmatprep.mubr.bf16.mxu0 0
      %3067 = vmatmul.mubr.bf16.gmra.mxu0 %v464
      %v3068 = vpop.f32.mrf.mxu0
      %v3069 = vadd.f32 0.0, %v3068
      %v3070 = vpop.f32.mrf.mxu0
      %v3071 = vpop.f32.mrf.mxu0
      %v3072 = vadd.f32 0.0, %v3071
      %v3073 = vpop.f32.mrf.mxu0
      %3074 = vmatprep.mubr.bf16.mxu0 0
      %3075 = vmatmul.mubr.bf16.gmra.mxu0 %v465
      %v3076 = vpop.f32.mrf.mxu0
      %v3077 = vadd.f32 0.0, %v3076
      %v3078 = vpop.f32.mrf.mxu0
      %v3079 = vpop.f32.mrf.mxu0
      %v3080 = vadd.f32 0.0, %v3079
      %v3081 = vpop.f32.mrf.mxu0
      %3082 = vdwg.mxu0
      %v3099 = vunpack.c.l.b16 %v2777
      %v3100 = vunpack.c.l.b16 %v2778
      %v3101 = vunpack.c.l.b16 %v2779
      %v3102 = vunpack.c.l.b16 %v2780
      %v3103 = vunpack.c.l.b16 %v2781
      %v3104 = vunpack.c.l.b16 %v2782
      %v3105 = vunpack.c.l.b16 %v2783
      %v3106 = vunpack.c.l.b16 %v2784
      %v3107 = vunpack.c.l.b16 %v2785
      %v3108 = vunpack.c.l.b16 %v2786
      %v3109 = vunpack.c.l.b16 %v2787
      %v3110 = vunpack.c.l.b16 %v2788
      %v3111 = vunpack.c.l.b16 %v2789
      %v3112 = vunpack.c.l.b16 %v2790
      %v3113 = vunpack.c.l.b16 %v2791
      %v3114 = vunpack.c.l.b16 %v2792
      %v3115 = vpack.c.b16 %v3100, %v3099
      %v3116 = vpack.c.b16 %v3102, %v3101
      %v3117 = vpack.c.b16 %v3104, %v3103
      %v3118 = vpack.c.b16 %v3106, %v3105
      %v3119 = vpack.c.b16 %v3108, %v3107
      %v3120 = vpack.c.b16 %v3110, %v3109
      %v3121 = vpack.c.b16 %v3112, %v3111
      %v3122 = vpack.c.b16 %v3114, %v3113
      %3131 = vmatprep.subr.bf16.mxu0 0
      %3132 = vmatpush1.bf16.msra.mxu0 %v3122
      %3133 = vmatprep.subr.bf16.mxu0 0
      %3134 = vmatpush1.bf16.msra.mxu0 %v3121
      %3135 = vmatprep.subr.bf16.mxu0 0
      %3136 = vmatpush1.bf16.msra.mxu0 %v3120
      %3137 = vmatprep.subr.bf16.mxu0 0
      %3138 = vmatpush1.bf16.msra.mxu0 %v3119
      %3139 = vmatprep.subr.bf16.mxu0 0
      %3140 = vmatpush1.bf16.msra.mxu0 %v3118
      %3141 = vmatprep.subr.bf16.mxu0 0
      %3142 = vmatpush1.bf16.msra.mxu0 %v3117
      %3143 = vmatprep.subr.bf16.mxu0 0
      %3144 = vmatpush1.bf16.msra.mxu0 %v3116
      %3145 = vmatprep.subr.bf16.mxu0 0
      %3146 = vmatpush1.bf16.msra.mxu0 %v3115
      %3147 = vmatprep.subr.bf16.mxu0 0
      %3148 = vmatpush2.bf16.msra.mxu0 0
      %3149 = vmatprep.subr.bf16.mxu0 0
      %3150 = vmatpush2.bf16.msra.mxu0 0
      %3151 = vmatprep.subr.bf16.mxu0 0
      %3152 = vmatpush2.bf16.msra.mxu0 0
      %3153 = vmatprep.subr.bf16.mxu0 0
      %3154 = vmatpush2.bf16.msra.mxu0 0
      %3155 = vmatprep.subr.bf16.mxu0 0
      %3156 = vmatpush2.bf16.msra.mxu0 0
      %3157 = vmatprep.subr.bf16.mxu0 0
      %3158 = vmatpush2.bf16.msra.mxu0 0
      %3159 = vmatprep.subr.bf16.mxu0 0
      %3160 = vmatpush2.bf16.msra.mxu0 0
      %3161 = vmatprep.subr.bf16.mxu0 0
      %3162 = vmatpush2.bf16.msra.mxu0 0
      %3163 = vmatprep.mubr.bf16.mxu0 0
      %3164 = vmatmul.mubr.bf16.gmra.mxu0 %v859
      %v3165 = vpop.f32.mrf.mxu0
      %v3166 = vadd.f32 %v2893, %v3165
      %v3167 = vpop.f32.mrf.mxu0
      %v3168 = vpop.f32.mrf.mxu0
      %v3169 = vadd.f32 %v2896, %v3168
      %v3170 = vpop.f32.mrf.mxu0
      %3171 = vmatprep.mubr.bf16.mxu0 0
      %3172 = vmatmul.mubr.bf16.gmra.mxu0 %v860
      %v3173 = vpop.f32.mrf.mxu0
      %v3174 = vadd.f32 %v2901, %v3173
      %v3175 = vpop.f32.mrf.mxu0
      %v3176 = vpop.f32.mrf.mxu0
      %v3177 = vadd.f32 %v2904, %v3176
      %v3178 = vpop.f32.mrf.mxu0
      %3179 = vmatprep.mubr.bf16.mxu0 0
      %3180 = vmatmul.mubr.bf16.gmra.mxu0 %v861
      %v3181 = vpop.f32.mrf.mxu0
      %v3182 = vadd.f32 %v2909, %v3181
      %v3183 = vpop.f32.mrf.mxu0
      %v3184 = vpop.f32.mrf.mxu0
      %v3185 = vadd.f32 %v2912, %v3184
      %v3186 = vpop.f32.mrf.mxu0
      %3187 = vmatprep.mubr.bf16.mxu0 0
      %3188 = vmatmul.mubr.bf16.gmra.mxu0 %v862
      %v3189 = vpop.f32.mrf.mxu0
      %v3190 = vadd.f32 %v2917, %v3189
      %v3191 = vpop.f32.mrf.mxu0
      %v3192 = vpop.f32.mrf.mxu0
      %v3193 = vadd.f32 %v2920, %v3192
      %v3194 = vpop.f32.mrf.mxu0
      %3195 = vmatprep.mubr.bf16.mxu0 0
      %3196 = vmatmul.mubr.bf16.gmra.mxu0 %v863
      %v3197 = vpop.f32.mrf.mxu0
      %v3198 = vadd.f32 %v2925, %v3197
      %v3199 = vpop.f32.mrf.mxu0
      %v3200 = vpop.f32.mrf.mxu0
      %v3201 = vadd.f32 %v2928, %v3200
      %v3202 = vpop.f32.mrf.mxu0
      %3203 = vmatprep.mubr.bf16.mxu0 0
      %3204 = vmatmul.mubr.bf16.gmra.mxu0 %v864
      %v3205 = vpop.f32.mrf.mxu0
      %v3206 = vadd.f32 %v2933, %v3205
      %v3207 = vpop.f32.mrf.mxu0
      %v3208 = vpop.f32.mrf.mxu0
      %v3209 = vadd.f32 %v2936, %v3208
      %v3210 = vpop.f32.mrf.mxu0
      %3211 = vmatprep.mubr.bf16.mxu0 0
      %3212 = vmatmul.mubr.bf16.gmra.mxu0 %v865
      %v3213 = vpop.f32.mrf.mxu0
      %v3214 = vadd.f32 %v2941, %v3213
      %v3215 = vpop.f32.mrf.mxu0
      %v3216 = vpop.f32.mrf.mxu0
      %v3217 = vadd.f32 %v2944, %v3216
      %v3218 = vpop.f32.mrf.mxu0
      %3219 = vmatprep.mubr.bf16.mxu0 0
      %3220 = vmatmul.mubr.bf16.gmra.mxu0 %v866
      %v3221 = vpop.f32.mrf.mxu0
      %v3222 = vadd.f32 %v2949, %v3221
      %v3223 = vpop.f32.mrf.mxu0
      %v3224 = vpop.f32.mrf.mxu0
      %v3225 = vadd.f32 %v2952, %v3224
      %v3226 = vpop.f32.mrf.mxu0
      %3227 = vmatprep.mubr.bf16.mxu0 0
      %3228 = vmatmul.mubr.bf16.gmra.mxu0 %v867
      %v3229 = vpop.f32.mrf.mxu0
      %v3230 = vadd.f32 %v2957, %v3229
      %v3231 = vpop.f32.mrf.mxu0
      %v3232 = vpop.f32.mrf.mxu0
      %v3233 = vadd.f32 %v2960, %v3232
      %v3234 = vpop.f32.mrf.mxu0
      %3235 = vmatprep.mubr.bf16.mxu0 0
      %3236 = vmatmul.mubr.bf16.gmra.mxu0 %v868
      %v3237 = vpop.f32.mrf.mxu0
      %v3238 = vadd.f32 %v2965, %v3237
      %v3239 = vpop.f32.mrf.mxu0
      %v3240 = vpop.f32.mrf.mxu0
      %v3241 = vadd.f32 %v2968, %v3240
      %v3242 = vpop.f32.mrf.mxu0
      %3243 = vmatprep.mubr.bf16.mxu0 0
      %3244 = vmatmul.mubr.bf16.gmra.mxu0 %v869
      %v3245 = vpop.f32.mrf.mxu0
      %v3246 = vadd.f32 %v2973, %v3245
      %v3247 = vpop.f32.mrf.mxu0
      %v3248 = vpop.f32.mrf.mxu0
      %v3249 = vadd.f32 %v2976, %v3248
      %v3250 = vpop.f32.mrf.mxu0
      %3251 = vmatprep.mubr.bf16.mxu0 0
      %3252 = vmatmul.mubr.bf16.gmra.mxu0 %v870
      %v3253 = vpop.f32.mrf.mxu0
      %v3254 = vadd.f32 %v2981, %v3253
      %v3255 = vpop.f32.mrf.mxu0
      %v3256 = vpop.f32.mrf.mxu0
      %v3257 = vadd.f32 %v2984, %v3256
      %v3258 = vpop.f32.mrf.mxu0
      %3259 = vmatprep.mubr.bf16.mxu0 0
      %3260 = vmatmul.mubr.bf16.gmra.mxu0 %v871
      %v3261 = vpop.f32.mrf.mxu0
      %v3262 = vadd.f32 %v2989, %v3261
      %v3263 = vpop.f32.mrf.mxu0
      %v3264 = vpop.f32.mrf.mxu0
      %v3265 = vadd.f32 %v2992, %v3264
      %v3266 = vpop.f32.mrf.mxu0
      %3267 = vmatprep.mubr.bf16.mxu0 0
      %3268 = vmatmul.mubr.bf16.gmra.mxu0 %v872
      %v3269 = vpop.f32.mrf.mxu0
      %v3270 = vadd.f32 %v2997, %v3269
      %v3271 = vpop.f32.mrf.mxu0
      %v3272 = vpop.f32.mrf.mxu0
      %v3273 = vadd.f32 %v3000, %v3272
      %v3274 = vpop.f32.mrf.mxu0
      %3275 = vmatprep.mubr.bf16.mxu0 0
      %3276 = vmatmul.mubr.bf16.gmra.mxu0 %v873
      %v3277 = vpop.f32.mrf.mxu0
      %v3278 = vadd.f32 %v3005, %v3277
      %v3279 = vpop.f32.mrf.mxu0
      %v3280 = vpop.f32.mrf.mxu0
      %v3281 = vadd.f32 %v3008, %v3280
      %v3282 = vpop.f32.mrf.mxu0
      %3283 = vmatprep.mubr.bf16.mxu0 0
      %3284 = vmatmul.mubr.bf16.gmra.mxu0 %v874
      %v3285 = vpop.f32.mrf.mxu0
      %v3286 = vadd.f32 %v3013, %v3285
      %v3287 = vpop.f32.mrf.mxu0
      %v3288 = vpop.f32.mrf.mxu0
      %v3289 = vadd.f32 %v3016, %v3288
      %v3290 = vpop.f32.mrf.mxu0
      %3291 = vmatprep.mubr.bf16.mxu0 0
      %3292 = vmatmul.mubr.bf16.gmra.mxu0 %v875
      %v3293 = vpop.f32.mrf.mxu0
      %v3294 = vadd.f32 %v3021, %v3293
      %v3295 = vpop.f32.mrf.mxu0
      %v3296 = vpop.f32.mrf.mxu0
      %v3297 = vadd.f32 %v3024, %v3296
      %v3298 = vpop.f32.mrf.mxu0
      %3299 = vmatprep.mubr.bf16.mxu0 0
      %3300 = vmatmul.mubr.bf16.gmra.mxu0 %v876
      %v3301 = vpop.f32.mrf.mxu0
      %v3302 = vadd.f32 %v3029, %v3301
      %v3303 = vpop.f32.mrf.mxu0
      %v3304 = vpop.f32.mrf.mxu0
      %v3305 = vadd.f32 %v3032, %v3304
      %v3306 = vpop.f32.mrf.mxu0
      %3307 = vmatprep.mubr.bf16.mxu0 0
      %3308 = vmatmul.mubr.bf16.gmra.mxu0 %v877
      %v3309 = vpop.f32.mrf.mxu0
      %v3310 = vadd.f32 %v3037, %v3309
      %v3311 = vpop.f32.mrf.mxu0
      %v3312 = vpop.f32.mrf.mxu0
      %v3313 = vadd.f32 %v3040, %v3312
      %v3314 = vpop.f32.mrf.mxu0
      %3315 = vmatprep.mubr.bf16.mxu0 0
      %3316 = vmatmul.mubr.bf16.gmra.mxu0 %v878
      %v3317 = vpop.f32.mrf.mxu0
      %v3318 = vadd.f32 %v3045, %v3317
      %v3319 = vpop.f32.mrf.mxu0
      %v3320 = vpop.f32.mrf.mxu0
      %v3321 = vadd.f32 %v3048, %v3320
      %v3322 = vpop.f32.mrf.mxu0
      %3323 = vmatprep.mubr.bf16.mxu0 0
      %3324 = vmatmul.mubr.bf16.gmra.mxu0 %v879
      %v3325 = vpop.f32.mrf.mxu0
      %v3326 = vadd.f32 %v3053, %v3325
      %v3327 = vpop.f32.mrf.mxu0
      %v3328 = vpop.f32.mrf.mxu0
      %v3329 = vadd.f32 %v3056, %v3328
      %v3330 = vpop.f32.mrf.mxu0
      %3331 = vmatprep.mubr.bf16.mxu0 0
      %3332 = vmatmul.mubr.bf16.gmra.mxu0 %v880
      %v3333 = vpop.f32.mrf.mxu0
      %v3334 = vadd.f32 %v3061, %v3333
      %v3335 = vpop.f32.mrf.mxu0
      %v3336 = vpop.f32.mrf.mxu0
      %v3337 = vadd.f32 %v3064, %v3336
      %v3338 = vpop.f32.mrf.mxu0
      %3339 = vmatprep.mubr.bf16.mxu0 0
      %3340 = vmatmul.mubr.bf16.gmra.mxu0 %v881
      %v3341 = vpop.f32.mrf.mxu0
      %v3342 = vadd.f32 %v3069, %v3341
      %v3343 = vpop.f32.mrf.mxu0
      %v3344 = vpop.f32.mrf.mxu0
      %v3345 = vadd.f32 %v3072, %v3344
      %v3346 = vpop.f32.mrf.mxu0
      %3347 = vmatprep.mubr.bf16.mxu0 0
      %3348 = vmatmul.mubr.bf16.gmra.mxu0 %v882
      %v3349 = vpop.f32.mrf.mxu0
      %v3350 = vadd.f32 %v3077, %v3349
      %v3351 = vpop.f32.mrf.mxu0
      %v3352 = vpop.f32.mrf.mxu0
      %v3353 = vadd.f32 %v3080, %v3352
      %v3354 = vpop.f32.mrf.mxu0
      %3355 = vdwg.mxu0
      %s3356 = scalar_lea.vmem %s1, 512
      %v3357 = vld [vmem:[%s3356] sm:$0xf]
      %v3358 = vld [vmem:[%s3356 + $0x4] sm:$0xf]
      %v3359 = vld [vmem:[%s3356 + $0x8] sm:$0xf]
      %v3360 = vld [vmem:[%s3356 + $0xc] sm:$0xf]
      %v3361 = vld [vmem:[%s3356 + $0x10] sm:$0xf]
      %v3362 = vld [vmem:[%s3356 + $0x14] sm:$0xf]
      %v3363 = vld [vmem:[%s3356 + $0x18] sm:$0xf]
      %v3364 = vld [vmem:[%s3356 + $0x1c] sm:$0xf]
      %v3365 = vld [vmem:[%s3356 + $0x20] sm:$0xf]
      %v3366 = vld [vmem:[%s3356 + $0x24] sm:$0xf]
      %v3367 = vld [vmem:[%s3356 + $0x28] sm:$0xf]
      %v3368 = vld [vmem:[%s3356 + $0x2c] sm:$0xf]
      %v3369 = vld [vmem:[%s3356 + $0x30] sm:$0xf]
      %v3370 = vld [vmem:[%s3356 + $0x34] sm:$0xf]
      %v3371 = vld [vmem:[%s3356 + $0x38] sm:$0xf]
      %v3372 = vld [vmem:[%s3356 + $0x3c] sm:$0xf]
      %v3389 = vunpack.c.l.b16 %v3357
      %v3390 = vunpack.c.l.b16 %v3358
      %v3391 = vunpack.c.l.b16 %v3359
      %v3392 = vunpack.c.l.b16 %v3360
      %v3393 = vunpack.c.l.b16 %v3361
      %v3394 = vunpack.c.l.b16 %v3362
      %v3395 = vunpack.c.l.b16 %v3363
      %v3396 = vunpack.c.l.b16 %v3364
      %v3397 = vunpack.c.l.b16 %v3365
      %v3398 = vunpack.c.l.b16 %v3366
      %v3399 = vunpack.c.l.b16 %v3367
      %v3400 = vunpack.c.l.b16 %v3368
      %v3401 = vunpack.c.l.b16 %v3369
      %v3402 = vunpack.c.l.b16 %v3370
      %v3403 = vunpack.c.l.b16 %v3371
      %v3404 = vunpack.c.l.b16 %v3372
      %v3405 = vpack.c.b16 %v3390, %v3389
      %v3406 = vpack.c.b16 %v3392, %v3391
      %v3407 = vpack.c.b16 %v3394, %v3393
      %v3408 = vpack.c.b16 %v3396, %v3395
      %v3409 = vpack.c.b16 %v3398, %v3397
      %v3410 = vpack.c.b16 %v3400, %v3399
      %v3411 = vpack.c.b16 %v3402, %v3401
      %v3412 = vpack.c.b16 %v3404, %v3403
      %3421 = vmatprep.subr.bf16.mxu0 0
      %3422 = vmatpush1.bf16.msra.mxu0 %v3412
      %3423 = vmatprep.subr.bf16.mxu0 0
      %3424 = vmatpush1.bf16.msra.mxu0 %v3411
      %3425 = vmatprep.subr.bf16.mxu0 0
      %3426 = vmatpush1.bf16.msra.mxu0 %v3410
      %3427 = vmatprep.subr.bf16.mxu0 0
      %3428 = vmatpush1.bf16.msra.mxu0 %v3409
      %3429 = vmatprep.subr.bf16.mxu0 0
      %3430 = vmatpush1.bf16.msra.mxu0 %v3408
      %3431 = vmatprep.subr.bf16.mxu0 0
      %3432 = vmatpush1.bf16.msra.mxu0 %v3407
      %3433 = vmatprep.subr.bf16.mxu0 0
      %3434 = vmatpush1.bf16.msra.mxu0 %v3406
      %3435 = vmatprep.subr.bf16.mxu0 0
      %3436 = vmatpush1.bf16.msra.mxu0 %v3405
      %3437 = vmatprep.subr.bf16.mxu0 0
      %3438 = vmatpush2.bf16.msra.mxu0 0
      %3439 = vmatprep.subr.bf16.mxu0 0
      %3440 = vmatpush2.bf16.msra.mxu0 0
      %3441 = vmatprep.subr.bf16.mxu0 0
      %3442 = vmatpush2.bf16.msra.mxu0 0
      %3443 = vmatprep.subr.bf16.mxu0 0
      %3444 = vmatpush2.bf16.msra.mxu0 0
      %3445 = vmatprep.subr.bf16.mxu0 0
      %3446 = vmatpush2.bf16.msra.mxu0 0
      %3447 = vmatprep.subr.bf16.mxu0 0
      %3448 = vmatpush2.bf16.msra.mxu0 0
      %3449 = vmatprep.subr.bf16.mxu0 0
      %3450 = vmatpush2.bf16.msra.mxu0 0
      %3451 = vmatprep.subr.bf16.mxu0 0
      %3452 = vmatpush2.bf16.msra.mxu0 0
      %3453 = vmatprep.mubr.bf16.mxu0 0
      %3454 = vmatmul.mubr.bf16.gmra.mxu0 %v1342
      %v3455 = vpop.f32.mrf.mxu0
      %v3456 = vadd.f32 0.0, %v3455
      %v3457 = vpop.f32.mrf.mxu0
      %v3458 = vpop.f32.mrf.mxu0
      %v3459 = vadd.f32 0.0, %v3458
      %v3460 = vpop.f32.mrf.mxu0
      %3461 = vmatprep.mubr.bf16.mxu0 0
      %3462 = vmatmul.mubr.bf16.gmra.mxu0 %v1343
      %v3463 = vpop.f32.mrf.mxu0
      %v3464 = vadd.f32 0.0, %v3463
      %v3465 = vpop.f32.mrf.mxu0
      %v3466 = vpop.f32.mrf.mxu0
      %v3467 = vadd.f32 0.0, %v3466
      %v3468 = vpop.f32.mrf.mxu0
      %3469 = vmatprep.mubr.bf16.mxu0 0
      %3470 = vmatmul.mubr.bf16.gmra.mxu0 %v1344
      %v3471 = vpop.f32.mrf.mxu0
      %v3472 = vadd.f32 0.0, %v3471
      %v3473 = vpop.f32.mrf.mxu0
      %v3474 = vpop.f32.mrf.mxu0
      %v3475 = vadd.f32 0.0, %v3474
      %v3476 = vpop.f32.mrf.mxu0
      %3477 = vmatprep.mubr.bf16.mxu0 0
      %3478 = vmatmul.mubr.bf16.gmra.mxu0 %v1345
      %v3479 = vpop.f32.mrf.mxu0
      %v3480 = vadd.f32 0.0, %v3479
      %v3481 = vpop.f32.mrf.mxu0
      %v3482 = vpop.f32.mrf.mxu0
      %v3483 = vadd.f32 0.0, %v3482
      %v3484 = vpop.f32.mrf.mxu0
      %3485 = vmatprep.mubr.bf16.mxu0 0
      %3486 = vmatmul.mubr.bf16.gmra.mxu0 %v1346
      %v3487 = vpop.f32.mrf.mxu0
      %v3488 = vadd.f32 0.0, %v3487
      %v3489 = vpop.f32.mrf.mxu0
      %v3490 = vpop.f32.mrf.mxu0
      %v3491 = vadd.f32 0.0, %v3490
      %v3492 = vpop.f32.mrf.mxu0
      %3493 = vmatprep.mubr.bf16.mxu0 0
      %3494 = vmatmul.mubr.bf16.gmra.mxu0 %v1347
      %v3495 = vpop.f32.mrf.mxu0
      %v3496 = vadd.f32 0.0, %v3495
      %v3497 = vpop.f32.mrf.mxu0
      %v3498 = vpop.f32.mrf.mxu0
      %v3499 = vadd.f32 0.0, %v3498
      %v3500 = vpop.f32.mrf.mxu0
      %3501 = vmatprep.mubr.bf16.mxu0 0
      %3502 = vmatmul.mubr.bf16.gmra.mxu0 %v1348
      %v3503 = vpop.f32.mrf.mxu0
      %v3504 = vadd.f32 0.0, %v3503
      %v3505 = vpop.f32.mrf.mxu0
      %v3506 = vpop.f32.mrf.mxu0
      %v3507 = vadd.f32 0.0, %v3506
      %v3508 = vpop.f32.mrf.mxu0
      %3509 = vmatprep.mubr.bf16.mxu0 0
      %3510 = vmatmul.mubr.bf16.gmra.mxu0 %v1349
      %v3511 = vpop.f32.mrf.mxu0
      %v3512 = vadd.f32 0.0, %v3511
      %v3513 = vpop.f32.mrf.mxu0
      %v3514 = vpop.f32.mrf.mxu0
      %v3515 = vadd.f32 0.0, %v3514
      %v3516 = vpop.f32.mrf.mxu0
      %3517 = vmatprep.mubr.bf16.mxu0 0
      %3518 = vmatmul.mubr.bf16.gmra.mxu0 %v1350
      %v3519 = vpop.f32.mrf.mxu0
      %v3520 = vadd.f32 0.0, %v3519
      %v3521 = vpop.f32.mrf.mxu0
      %v3522 = vpop.f32.mrf.mxu0
      %v3523 = vadd.f32 0.0, %v3522
      %v3524 = vpop.f32.mrf.mxu0
      %3525 = vmatprep.mubr.bf16.mxu0 0
      %3526 = vmatmul.mubr.bf16.gmra.mxu0 %v1351
      %v3527 = vpop.f32.mrf.mxu0
      %v3528 = vadd.f32 0.0, %v3527
      %v3529 = vpop.f32.mrf.mxu0
      %v3530 = vpop.f32.mrf.mxu0
      %v3531 = vadd.f32 0.0, %v3530
      %v3532 = vpop.f32.mrf.mxu0
      %3533 = vmatprep.mubr.bf16.mxu0 0
      %3534 = vmatmul.mubr.bf16.gmra.mxu0 %v1352
      %v3535 = vpop.f32.mrf.mxu0
      %v3536 = vadd.f32 0.0, %v3535
      %v3537 = vpop.f32.mrf.mxu0
      %v3538 = vpop.f32.mrf.mxu0
      %v3539 = vadd.f32 0.0, %v3538
      %v3540 = vpop.f32.mrf.mxu0
      %3541 = vmatprep.mubr.bf16.mxu0 0
      %3542 = vmatmul.mubr.bf16.gmra.mxu0 %v1353
      %v3543 = vpop.f32.mrf.mxu0
      %v3544 = vadd.f32 0.0, %v3543
      %v3545 = vpop.f32.mrf.mxu0
      %v3546 = vpop.f32.mrf.mxu0
      %v3547 = vadd.f32 0.0, %v3546
      %v3548 = vpop.f32.mrf.mxu0
      %3549 = vmatprep.mubr.bf16.mxu0 0
      %3550 = vmatmul.mubr.bf16.gmra.mxu0 %v1354
      %v3551 = vpop.f32.mrf.mxu0
      %v3552 = vadd.f32 0.0, %v3551
      %v3553 = vpop.f32.mrf.mxu0
      %v3554 = vpop.f32.mrf.mxu0
      %v3555 = vadd.f32 0.0, %v3554
      %v3556 = vpop.f32.mrf.mxu0
      %3557 = vmatprep.mubr.bf16.mxu0 0
      %3558 = vmatmul.mubr.bf16.gmra.mxu0 %v1355
      %v3559 = vpop.f32.mrf.mxu0
      %v3560 = vadd.f32 0.0, %v3559
      %v3561 = vpop.f32.mrf.mxu0
      %v3562 = vpop.f32.mrf.mxu0
      %v3563 = vadd.f32 0.0, %v3562
      %v3564 = vpop.f32.mrf.mxu0
      %3565 = vmatprep.mubr.bf16.mxu0 0
      %3566 = vmatmul.mubr.bf16.gmra.mxu0 %v1356
      %v3567 = vpop.f32.mrf.mxu0
      %v3568 = vadd.f32 0.0, %v3567
      %v3569 = vpop.f32.mrf.mxu0
      %v3570 = vpop.f32.mrf.mxu0
      %v3571 = vadd.f32 0.0, %v3570
      %v3572 = vpop.f32.mrf.mxu0
      %3573 = vmatprep.mubr.bf16.mxu0 0
      %3574 = vmatmul.mubr.bf16.gmra.mxu0 %v1357
      %v3575 = vpop.f32.mrf.mxu0
      %v3576 = vadd.f32 0.0, %v3575
      %v3577 = vpop.f32.mrf.mxu0
      %v3578 = vpop.f32.mrf.mxu0
      %v3579 = vadd.f32 0.0, %v3578
      %v3580 = vpop.f32.mrf.mxu0
      %3581 = vmatprep.mubr.bf16.mxu0 0
      %3582 = vmatmul.mubr.bf16.gmra.mxu0 %v1358
      %v3583 = vpop.f32.mrf.mxu0
      %v3584 = vadd.f32 0.0, %v3583
      %v3585 = vpop.f32.mrf.mxu0
      %v3586 = vpop.f32.mrf.mxu0
      %v3587 = vadd.f32 0.0, %v3586
      %v3588 = vpop.f32.mrf.mxu0
      %3589 = vmatprep.mubr.bf16.mxu0 0
      %3590 = vmatmul.mubr.bf16.gmra.mxu0 %v1359
      %v3591 = vpop.f32.mrf.mxu0
      %v3592 = vadd.f32 0.0, %v3591
      %v3593 = vpop.f32.mrf.mxu0
      %v3594 = vpop.f32.mrf.mxu0
      %v3595 = vadd.f32 0.0, %v3594
      %v3596 = vpop.f32.mrf.mxu0
      %3597 = vmatprep.mubr.bf16.mxu0 0
      %3598 = vmatmul.mubr.bf16.gmra.mxu0 %v1360
      %v3599 = vpop.f32.mrf.mxu0
      %v3600 = vadd.f32 0.0, %v3599
      %v3601 = vpop.f32.mrf.mxu0
      %v3602 = vpop.f32.mrf.mxu0
      %v3603 = vadd.f32 0.0, %v3602
      %v3604 = vpop.f32.mrf.mxu0
      %3605 = vmatprep.mubr.bf16.mxu0 0
      %3606 = vmatmul.mubr.bf16.gmra.mxu0 %v1361
      %v3607 = vpop.f32.mrf.mxu0
      %v3608 = vadd.f32 0.0, %v3607
      %v3609 = vpop.f32.mrf.mxu0
      %v3610 = vpop.f32.mrf.mxu0
      %v3611 = vadd.f32 0.0, %v3610
      %v3612 = vpop.f32.mrf.mxu0
      %3613 = vmatprep.mubr.bf16.mxu0 0
      %3614 = vmatmul.mubr.bf16.gmra.mxu0 %v1362
      %v3615 = vpop.f32.mrf.mxu0
      %v3616 = vadd.f32 0.0, %v3615
      %v3617 = vpop.f32.mrf.mxu0
      %v3618 = vpop.f32.mrf.mxu0
      %v3619 = vadd.f32 0.0, %v3618
      %v3620 = vpop.f32.mrf.mxu0
      %3621 = vmatprep.mubr.bf16.mxu0 0
      %3622 = vmatmul.mubr.bf16.gmra.mxu0 %v1363
      %v3623 = vpop.f32.mrf.mxu0
      %v3624 = vadd.f32 0.0, %v3623
      %v3625 = vpop.f32.mrf.mxu0
      %v3626 = vpop.f32.mrf.mxu0
      %v3627 = vadd.f32 0.0, %v3626
      %v3628 = vpop.f32.mrf.mxu0
      %3629 = vmatprep.mubr.bf16.mxu0 0
      %3630 = vmatmul.mubr.bf16.gmra.mxu0 %v1364
      %v3631 = vpop.f32.mrf.mxu0
      %v3632 = vadd.f32 0.0, %v3631
      %v3633 = vpop.f32.mrf.mxu0
      %v3634 = vpop.f32.mrf.mxu0
      %v3635 = vadd.f32 0.0, %v3634
      %v3636 = vpop.f32.mrf.mxu0
      %3637 = vmatprep.mubr.bf16.mxu0 0
      %3638 = vmatmul.mubr.bf16.gmra.mxu0 %v1365
      %v3639 = vpop.f32.mrf.mxu0
      %v3640 = vadd.f32 0.0, %v3639
      %v3641 = vpop.f32.mrf.mxu0
      %v3642 = vpop.f32.mrf.mxu0
      %v3643 = vadd.f32 0.0, %v3642
      %v3644 = vpop.f32.mrf.mxu0
      %3645 = vdwg.mxu0
      %v3646 = vadd.f32 %v3166, %v3456
      %v3647 = vadd.f32 %v3169, %v3459
      %v3648 = vadd.f32 %v3174, %v3464
      %v3649 = vadd.f32 %v3177, %v3467
      %v3650 = vadd.f32 %v3182, %v3472
      %v3651 = vadd.f32 %v3185, %v3475
      %v3652 = vadd.f32 %v3190, %v3480
      %v3653 = vadd.f32 %v3193, %v3483
      %v3654 = vadd.f32 %v3198, %v3488
      %v3655 = vadd.f32 %v3201, %v3491
      %v3656 = vadd.f32 %v3206, %v3496
      %v3657 = vadd.f32 %v3209, %v3499
      %v3658 = vadd.f32 %v3214, %v3504
      %v3659 = vadd.f32 %v3217, %v3507
      %v3660 = vadd.f32 %v3222, %v3512
      %v3661 = vadd.f32 %v3225, %v3515
      %v3662 = vadd.f32 %v3230, %v3520
      %v3663 = vadd.f32 %v3233, %v3523
      %v3664 = vadd.f32 %v3238, %v3528
      %v3665 = vadd.f32 %v3241, %v3531
      %v3666 = vadd.f32 %v3246, %v3536
      %v3667 = vadd.f32 %v3249, %v3539
      %v3668 = vadd.f32 %v3254, %v3544
      %v3669 = vadd.f32 %v3257, %v3547
      %v3670 = vadd.f32 %v3262, %v3552
      %v3671 = vadd.f32 %v3265, %v3555
      %v3672 = vadd.f32 %v3270, %v3560
      %v3673 = vadd.f32 %v3273, %v3563
      %v3674 = vadd.f32 %v3278, %v3568
      %v3675 = vadd.f32 %v3281, %v3571
      %v3676 = vadd.f32 %v3286, %v3576
      %v3677 = vadd.f32 %v3289, %v3579
      %v3678 = vadd.f32 %v3294, %v3584
      %v3679 = vadd.f32 %v3297, %v3587
      %v3680 = vadd.f32 %v3302, %v3592
      %v3681 = vadd.f32 %v3305, %v3595
      %v3682 = vadd.f32 %v3310, %v3600
      %v3683 = vadd.f32 %v3313, %v3603
      %v3684 = vadd.f32 %v3318, %v3608
      %v3685 = vadd.f32 %v3321, %v3611
      %v3686 = vadd.f32 %v3326, %v3616
      %v3687 = vadd.f32 %v3329, %v3619
      %v3688 = vadd.f32 %v3334, %v3624
      %v3689 = vadd.f32 %v3337, %v3627
      %v3690 = vadd.f32 %v3342, %v3632
      %v3691 = vadd.f32 %v3345, %v3635
      %v3692 = vadd.f32 %v3350, %v3640
      %v3693 = vadd.f32 %v3353, %v3643
      %v3694 = vrot.slane %v3646, 1
      %v3695 = vrot.slane %v3647, 1
      %v3696 = vrot.slane %v3648, 1
      %v3697 = vrot.slane %v3649, 1
      %v3698 = vrot.slane %v3650, 1
      %v3699 = vrot.slane %v3651, 1
      %v3700 = vrot.slane %v3652, 1
      %v3701 = vrot.slane %v3653, 1
      %v3702 = vrot.slane %v3654, 1
      %v3703 = vrot.slane %v3655, 1
      %v3704 = vrot.slane %v3656, 1
      %v3705 = vrot.slane %v3657, 1
      %v3706 = vrot.slane %v3658, 1
      %v3707 = vrot.slane %v3659, 1
      %v3708 = vrot.slane %v3660, 1
      %v3709 = vrot.slane %v3661, 1
      %v3710 = vrot.slane %v3662, 1
      %v3711 = vrot.slane %v3663, 1
      %v3712 = vrot.slane %v3664, 1
      %v3713 = vrot.slane %v3665, 1
      %v3714 = vrot.slane %v3666, 1
      %v3715 = vrot.slane %v3667, 1
      %v3716 = vrot.slane %v3668, 1
      %v3717 = vrot.slane %v3669, 1
      %v3718 = vrot.slane %v3670, 1
      %v3719 = vrot.slane %v3671, 1
      %v3720 = vrot.slane %v3672, 1
      %v3721 = vrot.slane %v3673, 1
      %v3722 = vrot.slane %v3674, 1
      %v3723 = vrot.slane %v3675, 1
      %v3724 = vrot.slane %v3676, 1
      %v3725 = vrot.slane %v3677, 1
      %v3726 = vrot.slane %v3678, 1
      %v3727 = vrot.slane %v3679, 1
      %v3728 = vrot.slane %v3680, 1
      %v3729 = vrot.slane %v3681, 1
      %v3730 = vrot.slane %v3682, 1
      %v3731 = vrot.slane %v3683, 1
      %v3732 = vrot.slane %v3684, 1
      %v3733 = vrot.slane %v3685, 1
      %v3734 = vrot.slane %v3686, 1
      %v3735 = vrot.slane %v3687, 1
      %v3736 = vrot.slane %v3688, 1
      %v3737 = vrot.slane %v3689, 1
      %v3738 = vrot.slane %v3690, 1
      %v3739 = vrot.slane %v3691, 1
      %v3740 = vrot.slane %v3692, 1
      %v3741 = vrot.slane %v3693, 1
      %vm3742 = vcmp.lt.s32.totalorder %v1760, 7
      %v3743 = vsel %vm3742, %v3740, %v3741
      %v3744 = vsel %vm3742, %v3739, %v3740
      %v3745 = vsel %vm3742, %v3738, %v3739
      %v3746 = vsel %vm3742, %v3737, %v3738
      %v3747 = vsel %vm3742, %v3736, %v3737
      %v3748 = vsel %vm3742, %v3735, %v3736
      %v3749 = vsel %vm3742, %v3734, %v3735
      %v3750 = vsel %vm3742, %v3733, %v3734
      %v3751 = vsel %vm3742, %v3732, %v3733
      %v3752 = vsel %vm3742, %v3731, %v3732
      %v3753 = vsel %vm3742, %v3730, %v3731
      %v3754 = vsel %vm3742, %v3729, %v3730
      %v3755 = vsel %vm3742, %v3728, %v3729
      %v3756 = vsel %vm3742, %v3727, %v3728
      %v3757 = vsel %vm3742, %v3726, %v3727
      %v3758 = vsel %vm3742, %v3725, %v3726
      %v3759 = vsel %vm3742, %v3724, %v3725
      %v3760 = vsel %vm3742, %v3723, %v3724
      %v3761 = vsel %vm3742, %v3722, %v3723
      %v3762 = vsel %vm3742, %v3721, %v3722
      %v3763 = vsel %vm3742, %v3720, %v3721
      %v3764 = vsel %vm3742, %v3719, %v3720
      %v3765 = vsel %vm3742, %v3718, %v3719
      %v3766 = vsel %vm3742, %v3717, %v3718
      %v3767 = vsel %vm3742, %v3716, %v3717
      %v3768 = vsel %vm3742, %v3715, %v3716
      %v3769 = vsel %vm3742, %v3714, %v3715
      %v3770 = vsel %vm3742, %v3713, %v3714
      %v3771 = vsel %vm3742, %v3712, %v3713
      %v3772 = vsel %vm3742, %v3711, %v3712
      %v3773 = vsel %vm3742, %v3710, %v3711
      %v3774 = vsel %vm3742, %v3709, %v3710
      %v3775 = vsel %vm3742, %v3708, %v3709
      %v3776 = vsel %vm3742, %v3707, %v3708
      %v3777 = vsel %vm3742, %v3706, %v3707
      %v3778 = vsel %vm3742, %v3705, %v3706
      %v3779 = vsel %vm3742, %v3704, %v3705
      %v3780 = vsel %vm3742, %v3703, %v3704
      %v3781 = vsel %vm3742, %v3702, %v3703
      %v3782 = vsel %vm3742, %v3701, %v3702
      %v3783 = vsel %vm3742, %v3700, %v3701
      %v3784 = vsel %vm3742, %v3699, %v3700
      %v3785 = vsel %vm3742, %v3698, %v3699
      %v3786 = vsel %vm3742, %v3697, %v3698
      %v3787 = vsel %vm3742, %v3696, %v3697
      %v3788 = vsel %vm3742, %v3695, %v3696
      %v3789 = vsel %vm3742, %v3694, %v3695
      %v3790 = vsel %vm3742, %v3741, %v3694
      %v3791 = vadd.f32 %v2728, %v3789
      %v3792 = vadd.f32 %v2729, %v3788
      %v3793 = vadd.f32 %v2730, %v3787
      %v3794 = vadd.f32 %v2731, %v3786
      %v3795 = vadd.f32 %v2732, %v3785
      %v3796 = vadd.f32 %v2733, %v3784
      %v3797 = vadd.f32 %v2734, %v3783
      %v3798 = vadd.f32 %v2735, %v3782
      %v3799 = vadd.f32 %v2736, %v3781
      %v3800 = vadd.f32 %v2737, %v3780
      %v3801 = vadd.f32 %v2738, %v3779
      %v3802 = vadd.f32 %v2739, %v3778
      %v3803 = vadd.f32 %v2740, %v3777
      %v3804 = vadd.f32 %v2741, %v3776
      %v3805 = vadd.f32 %v2742, %v3775
      %v3806 = vadd.f32 %v2743, %v3774
      %v3807 = vadd.f32 %v2744, %v3773
      %v3808 = vadd.f32 %v2745, %v3772
      %v3809 = vadd.f32 %v2746, %v3771
      %v3810 = vadd.f32 %v2747, %v3770
      %v3811 = vadd.f32 %v2748, %v3769
      %v3812 = vadd.f32 %v2749, %v3768
      %v3813 = vadd.f32 %v2750, %v3767
      %v3814 = vadd.f32 %v2751, %v3766
      %v3815 = vadd.f32 %v2752, %v3765
      %v3816 = vadd.f32 %v2753, %v3764
      %v3817 = vadd.f32 %v2754, %v3763
      %v3818 = vadd.f32 %v2755, %v3762
      %v3819 = vadd.f32 %v2756, %v3761
      %v3820 = vadd.f32 %v2757, %v3760
      %v3821 = vadd.f32 %v2758, %v3759
      %v3822 = vadd.f32 %v2759, %v3758
      %v3823 = vadd.f32 %v2760, %v3757
      %v3824 = vadd.f32 %v2761, %v3756
      %v3825 = vadd.f32 %v2762, %v3755
      %v3826 = vadd.f32 %v2763, %v3754
      %v3827 = vadd.f32 %v2764, %v3753
      %v3828 = vadd.f32 %v2765, %v3752
      %v3829 = vadd.f32 %v2766, %v3751
      %v3830 = vadd.f32 %v2767, %v3750
      %v3831 = vadd.f32 %v2768, %v3749
      %v3832 = vadd.f32 %v2769, %v3748
      %v3833 = vadd.f32 %v2770, %v3747
      %v3834 = vadd.f32 %v2771, %v3746
      %v3835 = vadd.f32 %v2772, %v3745
      %v3836 = vadd.f32 %v2773, %v3744
      %v3837 = vadd.f32 %v2774, %v3743
      %v3838 = vadd.f32 %v2775, %v3790
      %v3839 = vadd.s32 %v1760, 8
      %v3840 = vadd.s32 %v1760, 16
      %vm3841 = vcmp.ge.s32.totalorder %v1760, 1
      %vm3842 = vcmp.ge.s32.totalorder %v3839, 1
      %vm3843 = vcmp.ge.s32.totalorder %v3840, 1
      %vm3844 = vcmp.le.s32.totalorder %v1760, 16
      %vm3845 = vcmp.le.s32.totalorder %v3839, 16
      %vm3846 = vcmp.le.s32.totalorder %v3840, 16
      %vm3847 = vmand %vm3841, %vm3844
      %vm3848 = vmand %vm3842, %vm3845
      %vm3849 = vmand %vm3843, %vm3846
      %v3850 = vsel %vm3847, %v3791, 0.0
      %v3851 = vsel %vm3848, %v3792, 0.0
      %v3852 = vsel %vm3849, %v3793, 0.0
      %v3853 = vsel %vm3847, %v3794, 0.0
      %v3854 = vsel %vm3848, %v3795, 0.0
      %v3855 = vsel %vm3849, %v3796, 0.0
      %v3856 = vsel %vm3847, %v3797, 0.0
      %v3857 = vsel %vm3848, %v3798, 0.0
      %v3858 = vsel %vm3849, %v3799, 0.0
      %v3859 = vsel %vm3847, %v3800, 0.0
      %v3860 = vsel %vm3848, %v3801, 0.0
      %v3861 = vsel %vm3849, %v3802, 0.0
      %v3862 = vsel %vm3847, %v3803, 0.0
      %v3863 = vsel %vm3848, %v3804, 0.0
      %v3864 = vsel %vm3849, %v3805, 0.0
      %v3865 = vsel %vm3847, %v3806, 0.0
      %v3866 = vsel %vm3848, %v3807, 0.0
      %v3867 = vsel %vm3849, %v3808, 0.0
      %v3868 = vsel %vm3847, %v3809, 0.0
      %v3869 = vsel %vm3848, %v3810, 0.0
      %v3870 = vsel %vm3849, %v3811, 0.0
      %v3871 = vsel %vm3847, %v3812, 0.0
      %v3872 = vsel %vm3848, %v3813, 0.0
      %v3873 = vsel %vm3849, %v3814, 0.0
      %v3874 = vsel %vm3847, %v3815, 0.0
      %v3875 = vsel %vm3848, %v3816, 0.0
      %v3876 = vsel %vm3849, %v3817, 0.0
      %v3877 = vsel %vm3847, %v3818, 0.0
      %v3878 = vsel %vm3848, %v3819, 0.0
      %v3879 = vsel %vm3849, %v3820, 0.0
      %v3880 = vsel %vm3847, %v3821, 0.0
      %v3881 = vsel %vm3848, %v3822, 0.0
      %v3882 = vsel %vm3849, %v3823, 0.0
      %v3883 = vsel %vm3847, %v3824, 0.0
      %v3884 = vsel %vm3848, %v3825, 0.0
      %v3885 = vsel %vm3849, %v3826, 0.0
      %v3886 = vsel %vm3847, %v3827, 0.0
      %v3887 = vsel %vm3848, %v3828, 0.0
      %v3888 = vsel %vm3849, %v3829, 0.0
      %v3889 = vsel %vm3847, %v3830, 0.0
      %v3890 = vsel %vm3848, %v3831, 0.0
      %v3891 = vsel %vm3849, %v3832, 0.0
      %v3892 = vsel %vm3847, %v3833, 0.0
      %v3893 = vsel %vm3848, %v3834, 0.0
      %v3894 = vsel %vm3849, %v3835, 0.0
      %v3895 = vsel %vm3847, %v3836, 0.0
      %v3896 = vsel %vm3848, %v3837, 0.0
      %v3897 = vsel %vm3849, %v3838, 0.0
      %v3898 = vadd.f32 %v3850, %v3851
      %v3899 = vadd.f32 %v3898, %v3852
      %v3900 = vadd.f32 %v3899, %v3853
      %v3901 = vadd.f32 %v3900, %v3854
      %v3902 = vadd.f32 %v3901, %v3855
      %v3903 = vadd.f32 %v3902, %v3856
      %v3904 = vadd.f32 %v3903, %v3857
      %v3905 = vadd.f32 %v3904, %v3858
      %v3906 = vadd.f32 %v3905, %v3859
      %v3907 = vadd.f32 %v3906, %v3860
      %v3908 = vadd.f32 %v3907, %v3861
      %v3909 = vadd.f32 %v3908, %v3862
      %v3910 = vadd.f32 %v3909, %v3863
      %v3911 = vadd.f32 %v3910, %v3864
      %v3912 = vadd.f32 %v3911, %v3865
      %v3913 = vadd.f32 %v3912, %v3866
      %v3914 = vadd.f32 %v3913, %v3867
      %v3915 = vadd.f32 %v3914, %v3868
      %v3916 = vadd.f32 %v3915, %v3869
      %v3917 = vadd.f32 %v3916, %v3870
      %v3918 = vadd.f32 %v3917, %v3871
      %v3919 = vadd.f32 %v3918, %v3872
      %v3920 = vadd.f32 %v3919, %v3873
      %v3921 = vadd.f32 %v3920, %v3874
      %v3922 = vadd.f32 %v3921, %v3875
      %v3923 = vadd.f32 %v3922, %v3876
      %v3924 = vadd.f32 %v3923, %v3877
      %v3925 = vadd.f32 %v3924, %v3878
      %v3926 = vadd.f32 %v3925, %v3879
      %v3927 = vadd.f32 %v3926, %v3880
      %v3928 = vadd.f32 %v3927, %v3881
      %v3929 = vadd.f32 %v3928, %v3882
      %v3930 = vadd.f32 %v3929, %v3883
      %v3931 = vadd.f32 %v3930, %v3884
      %v3932 = vadd.f32 %v3931, %v3885
      %v3933 = vadd.f32 %v3932, %v3886
      %v3934 = vadd.f32 %v3933, %v3887
      %v3935 = vadd.f32 %v3934, %v3888
      %v3936 = vadd.f32 %v3935, %v3889
      %v3937 = vadd.f32 %v3936, %v3890
      %v3938 = vadd.f32 %v3937, %v3891
      %v3939 = vadd.f32 %v3938, %v3892
      %v3940 = vadd.f32 %v3939, %v3893
      %v3941 = vadd.f32 %v3940, %v3894
      %v3942 = vadd.f32 %v3941, %v3895
      %v3943 = vadd.f32 %v3942, %v3896
      %v3944 = vadd.f32 %v3943, %v3897
      %v3945 = vrot.slane %v3944, 4
      %v3946 = vadd.f32 %v3944, %v3945
      %v3947 = vrot.slane %v3946, 2
      %v3948 = vadd.f32 %v3946, %v3947
      %v3949 = vrot.slane %v3948, 1
      %v3950 = vadd.f32 %v3948, %v3949
      %3951 = vst [vmem:[%s211] sm:$0x1] %v3950
      %v3952 = vmul.f32 %v3850, %v3850
      %v3953 = vmul.f32 %v3851, %v3851
      %v3954 = vmul.f32 %v3852, %v3852
      %v3955 = vmul.f32 %v3853, %v3853
      %v3956 = vmul.f32 %v3854, %v3854
      %v3957 = vmul.f32 %v3855, %v3855
      %v3958 = vmul.f32 %v3856, %v3856
      %v3959 = vmul.f32 %v3857, %v3857
      %v3960 = vmul.f32 %v3858, %v3858
      %v3961 = vmul.f32 %v3859, %v3859
      %v3962 = vmul.f32 %v3860, %v3860
      %v3963 = vmul.f32 %v3861, %v3861
      %v3964 = vmul.f32 %v3862, %v3862
      %v3965 = vmul.f32 %v3863, %v3863
      %v3966 = vmul.f32 %v3864, %v3864
      %v3967 = vmul.f32 %v3865, %v3865
      %v3968 = vmul.f32 %v3866, %v3866
      %v3969 = vmul.f32 %v3867, %v3867
      %v3970 = vmul.f32 %v3868, %v3868
      %v3971 = vmul.f32 %v3869, %v3869
      %v3972 = vmul.f32 %v3870, %v3870
      %v3973 = vmul.f32 %v3871, %v3871
      %v3974 = vmul.f32 %v3872, %v3872
      %v3975 = vmul.f32 %v3873, %v3873
      %v3976 = vmul.f32 %v3874, %v3874
      %v3977 = vmul.f32 %v3875, %v3875
      %v3978 = vmul.f32 %v3876, %v3876
      %v3979 = vmul.f32 %v3877, %v3877
      %v3980 = vmul.f32 %v3878, %v3878
      %v3981 = vmul.f32 %v3879, %v3879
      %v3982 = vmul.f32 %v3880, %v3880
      %v3983 = vmul.f32 %v3881, %v3881
      %v3984 = vmul.f32 %v3882, %v3882
      %v3985 = vmul.f32 %v3883, %v3883
      %v3986 = vmul.f32 %v3884, %v3884
      %v3987 = vmul.f32 %v3885, %v3885
      %v3988 = vmul.f32 %v3886, %v3886
      %v3989 = vmul.f32 %v3887, %v3887
      %v3990 = vmul.f32 %v3888, %v3888
      %v3991 = vmul.f32 %v3889, %v3889
      %v3992 = vmul.f32 %v3890, %v3890
      %v3993 = vmul.f32 %v3891, %v3891
      %v3994 = vmul.f32 %v3892, %v3892
      %v3995 = vmul.f32 %v3893, %v3893
      %v3996 = vmul.f32 %v3894, %v3894
      %v3997 = vmul.f32 %v3895, %v3895
      %v3998 = vmul.f32 %v3896, %v3896
      %v3999 = vmul.f32 %v3897, %v3897
      %v4000 = vadd.f32 %v3952, %v3953
      %v4001 = vadd.f32 %v4000, %v3954
      %v4002 = vadd.f32 %v4001, %v3955
      %v4003 = vadd.f32 %v4002, %v3956
      %v4004 = vadd.f32 %v4003, %v3957
      %v4005 = vadd.f32 %v4004, %v3958
      %v4006 = vadd.f32 %v4005, %v3959
      %v4007 = vadd.f32 %v4006, %v3960
      %v4008 = vadd.f32 %v4007, %v3961
      %v4009 = vadd.f32 %v4008, %v3962
      %v4010 = vadd.f32 %v4009, %v3963
      %v4011 = vadd.f32 %v4010, %v3964
      %v4012 = vadd.f32 %v4011, %v3965
      %v4013 = vadd.f32 %v4012, %v3966
      %v4014 = vadd.f32 %v4013, %v3967
      %v4015 = vadd.f32 %v4014, %v3968
      %v4016 = vadd.f32 %v4015, %v3969
      %v4017 = vadd.f32 %v4016, %v3970
      %v4018 = vadd.f32 %v4017, %v3971
      %v4019 = vadd.f32 %v4018, %v3972
      %v4020 = vadd.f32 %v4019, %v3973
      %v4021 = vadd.f32 %v4020, %v3974
      %v4022 = vadd.f32 %v4021, %v3975
      %v4023 = vadd.f32 %v4022, %v3976
      %v4024 = vadd.f32 %v4023, %v3977
      %v4025 = vadd.f32 %v4024, %v3978
      %v4026 = vadd.f32 %v4025, %v3979
      %v4027 = vadd.f32 %v4026, %v3980
      %v4028 = vadd.f32 %v4027, %v3981
      %v4029 = vadd.f32 %v4028, %v3982
      %v4030 = vadd.f32 %v4029, %v3983
      %v4031 = vadd.f32 %v4030, %v3984
      %v4032 = vadd.f32 %v4031, %v3985
      %v4033 = vadd.f32 %v4032, %v3986
      %v4034 = vadd.f32 %v4033, %v3987
      %v4035 = vadd.f32 %v4034, %v3988
      %v4036 = vadd.f32 %v4035, %v3989
      %v4037 = vadd.f32 %v4036, %v3990
      %v4038 = vadd.f32 %v4037, %v3991
      %v4039 = vadd.f32 %v4038, %v3992
      %v4040 = vadd.f32 %v4039, %v3993
      %v4041 = vadd.f32 %v4040, %v3994
      %v4042 = vadd.f32 %v4041, %v3995
      %v4043 = vadd.f32 %v4042, %v3996
      %v4044 = vadd.f32 %v4043, %v3997
      %v4045 = vadd.f32 %v4044, %v3998
      %v4046 = vadd.f32 %v4045, %v3999
      %v4047 = vrot.slane %v4046, 4
      %v4048 = vadd.f32 %v4046, %v4047
      %v4049 = vrot.slane %v4048, 2
      %v4050 = vadd.f32 %v4048, %v4049
      %v4051 = vrot.slane %v4050, 1
      %v4052 = vadd.f32 %v4050, %v4051
      %4053 = vst [vmem:[%s214] sm:$0x1] %v4052
      %v4054 = vpack.c.bf16 %v3851, %v3850
      %v4055 = vpack.c.bf16 %v3852, %v3852
      %v4056 = vpack.c.bf16 %v3854, %v3853
      %v4057 = vpack.c.bf16 %v3855, %v3855
      %v4058 = vpack.c.bf16 %v3857, %v3856
      %v4059 = vpack.c.bf16 %v3858, %v3858
      %v4060 = vpack.c.bf16 %v3860, %v3859
      %v4061 = vpack.c.bf16 %v3861, %v3861
      %v4062 = vpack.c.bf16 %v3863, %v3862
      %v4063 = vpack.c.bf16 %v3864, %v3864
      %v4064 = vpack.c.bf16 %v3866, %v3865
      %v4065 = vpack.c.bf16 %v3867, %v3867
      %v4066 = vpack.c.bf16 %v3869, %v3868
      %v4067 = vpack.c.bf16 %v3870, %v3870
      %v4068 = vpack.c.bf16 %v3872, %v3871
      %v4069 = vpack.c.bf16 %v3873, %v3873
      %v4070 = vpack.c.bf16 %v3875, %v3874
      %v4071 = vpack.c.bf16 %v3876, %v3876
      %v4072 = vpack.c.bf16 %v3878, %v3877
      %v4073 = vpack.c.bf16 %v3879, %v3879
      %v4074 = vpack.c.bf16 %v3881, %v3880
      %v4075 = vpack.c.bf16 %v3882, %v3882
      %v4076 = vpack.c.bf16 %v3884, %v3883
      %v4077 = vpack.c.bf16 %v3885, %v3885
      %v4078 = vpack.c.bf16 %v3887, %v3886
      %v4079 = vpack.c.bf16 %v3888, %v3888
      %v4080 = vpack.c.bf16 %v3890, %v3889
      %v4081 = vpack.c.bf16 %v3891, %v3891
      %v4082 = vpack.c.bf16 %v3893, %v3892
      %v4083 = vpack.c.bf16 %v3894, %v3894
      %v4084 = vpack.c.bf16 %v3896, %v3895
      %v4085 = vpack.c.bf16 %v3897, %v3897
      %v4118 = vunpack.c.l.b16 %v4054
      %v4119 = vunpack.c.h.b16 %v4054
      %v4120 = vunpack.c.l.b16 %v4055
      %v4121 = vunpack.c.l.b16 %v4056
      %v4122 = vunpack.c.h.b16 %v4056
      %v4123 = vunpack.c.l.b16 %v4057
      %v4124 = vunpack.c.l.b16 %v4058
      %v4125 = vunpack.c.h.b16 %v4058
      %v4126 = vunpack.c.l.b16 %v4059
      %v4127 = vunpack.c.l.b16 %v4060
      %v4128 = vunpack.c.h.b16 %v4060
      %v4129 = vunpack.c.l.b16 %v4061
      %v4130 = vunpack.c.l.b16 %v4062
      %v4131 = vunpack.c.h.b16 %v4062
      %v4132 = vunpack.c.l.b16 %v4063
      %v4133 = vunpack.c.l.b16 %v4064
      %v4134 = vunpack.c.h.b16 %v4064
      %v4135 = vunpack.c.l.b16 %v4065
      %v4136 = vunpack.c.l.b16 %v4066
      %v4137 = vunpack.c.h.b16 %v4066
      %v4138 = vunpack.c.l.b16 %v4067
      %v4139 = vunpack.c.l.b16 %v4068
      %v4140 = vunpack.c.h.b16 %v4068
      %v4141 = vunpack.c.l.b16 %v4069
      %v4142 = vunpack.c.l.b16 %v4070
      %v4143 = vunpack.c.h.b16 %v4070
      %v4144 = vunpack.c.l.b16 %v4071
      %v4145 = vunpack.c.l.b16 %v4072
      %v4146 = vunpack.c.h.b16 %v4072
      %v4147 = vunpack.c.l.b16 %v4073
      %v4148 = vunpack.c.l.b16 %v4074
      %v4149 = vunpack.c.h.b16 %v4074
      %v4150 = vunpack.c.l.b16 %v4075
      %v4151 = vunpack.c.l.b16 %v4076
      %v4152 = vunpack.c.h.b16 %v4076
      %v4153 = vunpack.c.l.b16 %v4077
      %v4154 = vunpack.c.l.b16 %v4078
      %v4155 = vunpack.c.h.b16 %v4078
      %v4156 = vunpack.c.l.b16 %v4079
      %v4157 = vunpack.c.l.b16 %v4080
      %v4158 = vunpack.c.h.b16 %v4080
      %v4159 = vunpack.c.l.b16 %v4081
      %v4160 = vunpack.c.l.b16 %v4082
      %v4161 = vunpack.c.h.b16 %v4082
      %v4162 = vunpack.c.l.b16 %v4083
      %v4163 = vunpack.c.l.b16 %v4084
      %v4164 = vunpack.c.h.b16 %v4084
      %v4165 = vunpack.c.l.b16 %v4085
      %v4166 = vpack.c.b16 %v4118, %v4118
      %v4167 = vpack.c.b16 %v4119, %v4119
      %v4168 = vpack.c.b16 %v4120, %v4120
      %v4169 = vpack.c.b16 %v4121, %v4121
      %v4170 = vpack.c.b16 %v4122, %v4122
      %v4171 = vpack.c.b16 %v4123, %v4123
      %v4172 = vpack.c.b16 %v4124, %v4124
      %v4173 = vpack.c.b16 %v4125, %v4125
      %v4174 = vpack.c.b16 %v4126, %v4126
      %v4175 = vpack.c.b16 %v4127, %v4127
      %v4176 = vpack.c.b16 %v4128, %v4128
      %v4177 = vpack.c.b16 %v4129, %v4129
      %v4178 = vpack.c.b16 %v4130, %v4130
      %v4179 = vpack.c.b16 %v4131, %v4131
      %v4180 = vpack.c.b16 %v4132, %v4132
      %v4181 = vpack.c.b16 %v4133, %v4133
      %v4182 = vpack.c.b16 %v4134, %v4134
      %v4183 = vpack.c.b16 %v4135, %v4135
      %v4184 = vpack.c.b16 %v4136, %v4136
      %v4185 = vpack.c.b16 %v4137, %v4137
      %v4186 = vpack.c.b16 %v4138, %v4138
      %v4187 = vpack.c.b16 %v4139, %v4139
      %v4188 = vpack.c.b16 %v4140, %v4140
      %v4189 = vpack.c.b16 %v4141, %v4141
      %v4190 = vpack.c.b16 %v4142, %v4142
      %v4191 = vpack.c.b16 %v4143, %v4143
      %v4192 = vpack.c.b16 %v4144, %v4144
      %v4193 = vpack.c.b16 %v4145, %v4145
      %v4194 = vpack.c.b16 %v4146, %v4146
      %v4195 = vpack.c.b16 %v4147, %v4147
      %v4196 = vpack.c.b16 %v4148, %v4148
      %v4197 = vpack.c.b16 %v4149, %v4149
      %v4198 = vpack.c.b16 %v4150, %v4150
      %v4199 = vpack.c.b16 %v4151, %v4151
      %v4200 = vpack.c.b16 %v4152, %v4152
      %v4201 = vpack.c.b16 %v4153, %v4153
      %v4202 = vpack.c.b16 %v4154, %v4154
      %v4203 = vpack.c.b16 %v4155, %v4155
      %v4204 = vpack.c.b16 %v4156, %v4156
      %v4205 = vpack.c.b16 %v4157, %v4157
      %v4206 = vpack.c.b16 %v4158, %v4158
      %v4207 = vpack.c.b16 %v4159, %v4159
      %v4208 = vpack.c.b16 %v4160, %v4160
      %v4209 = vpack.c.b16 %v4161, %v4161
      %v4210 = vpack.c.b16 %v4162, %v4162
      %v4211 = vpack.c.b16 %v4163, %v4163
      %v4212 = vpack.c.b16 %v4164, %v4164
      %v4213 = vpack.c.b16 %v4165, %v4165
      %4262 = vst [vmem:[%s208] sm:$0xf] %v4166
      %4263 = vst [vmem:[%s208 + $0x4] sm:$0xf] %v4167
      %4264 = vst [vmem:[%s208 + $0x8] sm:$0xf] %v4168
      %4265 = vst [vmem:[%s208 + $0xc] sm:$0xf] %v4169
      %4266 = vst [vmem:[%s208 + $0x10] sm:$0xf] %v4170
      %4267 = vst [vmem:[%s208 + $0x14] sm:$0xf] %v4171
      %4268 = vst [vmem:[%s208 + $0x18] sm:$0xf] %v4172
      %4269 = vst [vmem:[%s208 + $0x1c] sm:$0xf] %v4173
      %4270 = vst [vmem:[%s208 + $0x20] sm:$0xf] %v4174
      %4271 = vst [vmem:[%s208 + $0x24] sm:$0xf] %v4175
      %4272 = vst [vmem:[%s208 + $0x28] sm:$0xf] %v4176
      %4273 = vst [vmem:[%s208 + $0x2c] sm:$0xf] %v4177
      %4274 = vst [vmem:[%s208 + $0x30] sm:$0xf] %v4178
      %4275 = vst [vmem:[%s208 + $0x34] sm:$0xf] %v4179
      %4276 = vst [vmem:[%s208 + $0x38] sm:$0xf] %v4180
      %4277 = vst [vmem:[%s208 + $0x3c] sm:$0xf] %v4181
      %4278 = vst [vmem:[%s208 + $0x40] sm:$0xf] %v4182
      %4279 = vst [vmem:[%s208 + $0x44] sm:$0xf] %v4183
      %4280 = vst [vmem:[%s208 + $0x48] sm:$0xf] %v4184
      %4281 = vst [vmem:[%s208 + $0x4c] sm:$0xf] %v4185
      %4282 = vst [vmem:[%s208 + $0x50] sm:$0xf] %v4186
      %4283 = vst [vmem:[%s208 + $0x54] sm:$0xf] %v4187
      %4284 = vst [vmem:[%s208 + $0x58] sm:$0xf] %v4188
      %4285 = vst [vmem:[%s208 + $0x5c] sm:$0xf] %v4189
      %4286 = vst [vmem:[%s208 + $0x60] sm:$0xf] %v4190
      %4287 = vst [vmem:[%s208 + $0x64] sm:$0xf] %v4191
      %4288 = vst [vmem:[%s208 + $0x68] sm:$0xf] %v4192
      %4289 = vst [vmem:[%s208 + $0x6c] sm:$0xf] %v4193
      %4290 = vst [vmem:[%s208 + $0x70] sm:$0xf] %v4194
      %4291 = vst [vmem:[%s208 + $0x74] sm:$0xf] %v4195
      %4292 = vst [vmem:[%s208 + $0x78] sm:$0xf] %v4196
      %4293 = vst [vmem:[%s208 + $0x7c] sm:$0xf] %v4197
      %4294 = vst [vmem:[%s208 + $0x80] sm:$0xf] %v4198
      %4295 = vst [vmem:[%s208 + $0x84] sm:$0xf] %v4199
      %4296 = vst [vmem:[%s208 + $0x88] sm:$0xf] %v4200
      %4297 = vst [vmem:[%s208 + $0x8c] sm:$0xf] %v4201
      %4298 = vst [vmem:[%s208 + $0x90] sm:$0xf] %v4202
      %4299 = vst [vmem:[%s208 + $0x94] sm:$0xf] %v4203
      %4300 = vst [vmem:[%s208 + $0x98] sm:$0xf] %v4204
      %4301 = vst [vmem:[%s208 + $0x9c] sm:$0xf] %v4205
      %4302 = vst [vmem:[%s208 + $0xa0] sm:$0xf] %v4206
      %4303 = vst [vmem:[%s208 + $0xa4] sm:$0xf] %v4207
      %4304 = vst [vmem:[%s208 + $0xa8] sm:$0xf] %v4208
      %4305 = vst [vmem:[%s208 + $0xac] sm:$0xf] %v4209
      %4306 = vst [vmem:[%s208 + $0xb0] sm:$0xf] %v4210
      %4307 = vst [vmem:[%s208 + $0xb4] sm:$0xf] %v4211
      %4308 = vst [vmem:[%s208 + $0xb8] sm:$0xf] %v4212
      %4309 = vst [vmem:[%s208 + $0xbc] sm:$0xf] %v4213
      %p4310 = scmp.lt.s32.totalorder %s16, 1
      %s4311 = scalar_select %p4310, %s16, 1
      %s4312 = smul.addr %s4311, 48
      %s4313 = smul.addr %s4312, 4
      %s4314 = scalar_lea.vmem %s2, %s4313
      %p4315 = scmp.lt.s32.totalorder %s16, 1
      %s4316 = scalar_select %p4315, %s16, 1
      %s4317 = scalar_lea.vmem %s3, %s4316
      %p4318 = scmp.lt.s32.totalorder %s16, 1
      %s4319 = scalar_select %p4318, %s16, 1
      %s4320 = scalar_lea.vmem %s4, %s4319
      // Predicated region
      $region29: #{basic_block_forward.4} parent=27 // pred_check
        %p4321 = pneg %p81
      $region30: #{basic_block_forward.4} parent=27 // pred_check_branch
        %4323 = sbr.rel (%p4321) target = $region32
      $region31: #{basic_block_forward.4} parent=27 // pred_region
        _
      $region32: #{basic_block_forward.4} parent=27 // pred_fallthru
        _
      // Predicated region
      $region33: #{basic_block_forward.4} parent=27 // pred_check
        %p4324 = pneg %p107
      $region34: #{basic_block_forward.4} parent=27 // pred_check_branch
        %4326 = sbr.rel (%p4324) target = $region36
      $region35: #{basic_block_forward.4} parent=27 // pred_region
        _
      $region36: #{basic_block_forward.4} parent=27 // pred_fallthru
        _
      // Predicated region
      $region37: #{basic_block_forward.4} parent=27 // pred_check
        %p4327 = pneg %p133
      $region38: #{basic_block_forward.4} parent=27 // pred_check_branch
        %4329 = sbr.rel (%p4327) target = $region40
      $region39: #{basic_block_forward.4} parent=27 // pred_region
        _
      $region40: #{basic_block_forward.4} parent=27 // pred_fallthru
        _
    $region28: #{basic_block_forward.4} parent=5 // pred_fallthru
      _
    %p4330 = scmp.le.s32.totalorder 2, %s11
    // Predicated region
    $region41: #{basic_block_forward.4} parent=5 // pred_check
      %p4331 = pneg %p4330
    $region42: #{basic_block_forward.4} parent=5 // pred_check_branch
      %4333 = sbr.rel (%p4331) target = $region44
    $region43: #{basic_block_forward.4} parent=5 // pred_region
      %s4334 = ssub.s32 %s11, 2
      // Predicated region
      $region45: #{basic_block_forward.4} parent=43 // pred_check
        %p4335 = pneg %p87
      $region46: #{basic_block_forward.4} parent=43 // pred_check_branch
        %4337 = sbr.rel (%p4335) target = $region48
      $region47: #{basic_block_forward.4} parent=43 // pred_region
        %p4338 = scmp.lt.s32.totalorder %s17, 1
        %s4339 = scalar_select %p4338, %s17, 1
        %s4340 = smul.addr %s4339, 48
        %s4341 = smul.addr %s4340, 4
        %s4342 = scalar_lea.vmem %s2, %s4341
      $region48: #{basic_block_forward.4} parent=43 // pred_fallthru
        _
      // Predicated region
      $region49: #{basic_block_forward.4} parent=43 // pred_check
        %p4343 = pneg %p113
      $region50: #{basic_block_forward.4} parent=43 // pred_check_branch
        %4345 = sbr.rel (%p4343) target = $region52
      $region51: #{basic_block_forward.4} parent=43 // pred_region
        %p4346 = scmp.lt.s32.totalorder %s17, 1
        %s4347 = scalar_select %p4346, %s17, 1
        %s4348 = scalar_lea.vmem %s3, %s4347
      $region52: #{basic_block_forward.4} parent=43 // pred_fallthru
        _
      // Predicated region
      $region53: #{basic_block_forward.4} parent=43 // pred_check
        %p4349 = pneg %p139
      $region54: #{basic_block_forward.4} parent=43 // pred_check_branch
        %4351 = sbr.rel (%p4349) target = $region56
      $region55: #{basic_block_forward.4} parent=43 // pred_region
        %p4352 = scmp.lt.s32.totalorder %s17, 1
        %s4353 = scalar_select %p4352, %s17, 1
        %s4354 = scalar_lea.vmem %s4, %s4353
      $region56: #{basic_block_forward.4} parent=43 // pred_fallthru
        _
    $region44: #{basic_block_forward.4} parent=5 // pred_fallthru
      _
  $region6: #{basic_block_forward.4} parent=0 // loop_footer
    %s15 = sadd.s32 1, %s11
  $region7: #{basic_block_forward.4} parent=0 // loop_footer_branch
    %10 = sbr.rel target = $region3
  $region8: #{basic_block_forward.4} parent=0 // loop_exit
    _

</llo_original>
